<compile_context>
chip_gen: v5e
topology: v5e:2x2
jax: 0.10.0
libtpu: 0.0.40
codegen_flags: <defaults>
</compile_context>

<pallas_src>
import functools

import numpy as np
import jax
import jax.numpy as jnp
from jax.experimental import pallas as pl
from jax.experimental.pallas import tpu as pltpu

F32 = jnp.float32
SEG_ATT = 15            # fixed in the PyTorch module
DILATIONS = (1, 3, 6, 12)


def _ln_group(vals, axis):
    """stratified_layerNorm over one subject group.

    vals: per-sample 2-D arrays.  Each feature (the non-`axis` dim) is
    normalized over (samples x `axis` dim) with torch-style unbiased std and
    the +0.001-on-std epsilon.
    """
    cnt = len(vals) * vals[0].shape[axis]
    ssum = None
    for v in vals:
        r = jnp.sum(v, axis=axis, keepdims=True)
        ssum = r if ssum is None else ssum + r
    mean = ssum * (1.0 / cnt)
    centred = [v - mean for v in vals]
    vsum = None
    for d in centred:
        r = jnp.sum(d * d, axis=axis, keepdims=True)
        vsum = r if vsum is None else vsum + r
    std = jnp.sqrt(vsum * (1.0 / (cnt - 1)))
    inv = pl.reciprocal(std + 0.001, approx=True)          # EUP, not VPU divide
    return [d * inv for d in centred]


def _convnet_attention_kernel(
    x_ref,        # (B, C, T)            one stratification group of inputs
    wt_ref,       # (Ft, KT0)  SMEM      timeConv weights (scalars)
    bt_ref,       # (Ft,)      SMEM
    wms_ref,      # (Cms, nD*KT*Ft*C)    fused block multi-scale conv weights
    bms_ref,      # (Cms, 1)
    watt_ref,     # (Cms, KA)            depthwise attention conv weights
    batt_ref,     # (Cms, 1)
    wpt_ref,      # (Cms, Cms)           attention pointwise conv
    bpt_ref,      # (Cms, 1)
    box_ref,      # (Tt, Tt)             causal box Toeplitz (att_pool / KA)
    poolT_ref,    # (Tq, Tt)             transposed stride-L avg-pool matrix
    r1t_ref,      # (Cms, Cms*MF)        channel-repeat (transposed) for timeConv1
    w1t_ref,      # (KL, Cms*MF)
    b1r_ref,      # (1, Cms*MF)
    r2t_ref,      # (Cms*MF, CMM)        channel-repeat (transposed) for timeConv2
    w2t_ref,      # (KL, CMM)
    b2r_ref,      # (1, CMM)
    o_ref,        # saveFea: (B, Cms, Tt)   else: (B, T2, CMM)  (lane-dense)
    xpad_s,       # VMEM (C, T + 2*pad0)
    toutp_s,      # VMEM (Ft*C, PL + Tt + PR)
    im2_s,        # VMEM (nD*KT*Ft*C, Tt)
    msp_s,        # VMEM (Cms, KA-1 + Tt)
    *, B, C, T, Ft, S, KT0, KT, dils, KA, L, KL, MF,
    ln_initial, ln_middle1, ln_middle2, activ, temp, save_fea,
):
    pad0 = (KT0 - 1) // 2
    Tt = T + 2 * pad0 - KT0 + 1
    nD = len(dils)
    Cms = Ft * S * nD
    FtC = Ft * C
    PL = max((d * (KT - 1)) // 2 for d in dils)
    PR = max(d * (KT - 1) - (d * (KT - 1)) // 2 for d in dils)
    Tq = Tt // L
    T1 = Tq - KL + 1
    T2 = T1 - KL + 1
    CMM = Cms * MF * MF

    # Zero the halo regions of the persistent padded scratches.  This is done
    # once per grid step (cheap) so the scratch is always valid regardless of
    # how megacore instantiates per-core scratch memory.
    if pad0 > 0:
        xpad_s[:, 0:pad0] = jnp.zeros((C, pad0), F32)
        xpad_s[:, T + pad0:T + 2 * pad0] = jnp.zeros((C, pad0), F32)
    if PL > 0:
        toutp_s[:, 0:PL] = jnp.zeros((FtC, PL), F32)
    if PR > 0:
        toutp_s[:, PL + Tt:PL + Tt + PR] = jnp.zeros((FtC, PR), F32)
    msp_s[:, 0:KA - 1] = jnp.zeros((Cms, KA - 1), F32)

    wms = wms_ref[...]
    bms = bms_ref[...]
    watt = watt_ref[...]
    watt_cols = [watt[:, k:k + 1] for k in range(KA)]
    batt = batt_ref[...]
    wpt = wpt_ref[...]
    bpt = bpt_ref[...]
    box_m = box_ref[...]

    # ---- stage 0: optional initial stratified layer norm --------------------
    xs = [x_ref[b] for b in range(B)]                      # each (C, T)
    if ln_initial:
        xs = _ln_group(xs, axis=-1)

    pools = []
    for b in range(B):
        # ---- timeConv: Conv2d(1, Ft, (1, KT0), pad (KT0-1)//2) --------------
        xpad_s[:, pad0:pad0 + T] = xs[b]
        xp = xpad_s[...]                                   # (C, T + 2*pad0)
        for f in range(Ft):
            acc = wt_ref[f, 0] * xp[:, 0:Tt]
            for k in range(1, KT0):
                acc = acc + wt_ref[f, k] * xp[:, k:k + Tt]
            toutp_s[f * C:(f + 1) * C, PL:PL + Tt] = acc + bt_ref[f]

        # ---- msConv1..4: ONE fused MXU matmul over a stacked im2col ---------
        toutp = toutp_s[...]                               # (FtC, PL+Tt+PR)
        for di, d in enumerate(dils):
            left = (d * (KT - 1)) // 2
            for k in range(KT):
                off = PL - left + k * d
                r0 = (di * KT + k) * FtC
                im2_s[r0:r0 + FtC, :] = toutp[:, off:off + Tt]
        ms = jnp.dot(wms, im2_s[...], preferred_element_type=F32) + bms   # (Cms, Tt)

        # ---- attention branch ------------------------------------------------
        msp_s[:, KA - 1:KA - 1 + Tt] = ms                  # causal left pad (14, 0)
        msl = msp_s[...]                                   # (Cms, KA-1+Tt)
        attc = watt_cols[0] * msl[:, 0:Tt]
        for k in range(1, KA):
            attc = attc + watt_cols[k] * msl[:, k:k + Tt]
        attc = jnp.maximum(attc + batt, 0.0)               # relu(att_conv)
        # att_pool (causal window of KA, count_include_pad) as one MXU matmul.
        attp = jnp.dot(attc, box_m, preferred_element_type=F32)          # (Cms, Tt)
        attw = jnp.dot(wpt, attp, preferred_element_type=F32) + bpt
        if activ == 'relu':
            attw = jnp.maximum(attw, 0.0)
        elif activ == 'softmax':
            z = attw * (1.0 / temp)
            z = z - jnp.max(z, axis=0, keepdims=True)
            e = jnp.exp(z)
            attw = e * pl.reciprocal(jnp.sum(e, axis=0, keepdims=True),
                                     approx=True)
        fea = attw * jnp.maximum(ms, 0.0)                  # (Cms, Tt)

        if save_fea:
            # TODO(synk): saveFea output stays channel-major (Tt lanes); make it
            # lane-dense too if production Tt stays below 128.
            o_ref[b] = fea
        else:
            # stride-L avg-pool straight into (time, channel) layout on the MXU:
            # poolT[q, c] = sum_t pool_mT[q, t] * fea[c, t]
            pools.append(jnp.einsum('qt,ct->qc', poolT_ref[...], fea,
                                    preferred_element_type=F32))          # (Tq, Cms)

    if save_fea:
        return

    if ln_middle1:
        pools = _ln_group(pools, axis=0)

    r1t = r1t_ref[...]
    w1_rows = [w1t_ref[k:k + 1, :] for k in range(KL)]
    b1r = b1r_ref[...]
    r2t = r2t_ref[...]
    w2_rows = [w2t_ref[k:k + 1, :] for k in range(KL)]
    b2r = b2r_ref[...]

    outs = []
    for b in range(B):
        # timeConv1: grouped (groups=Cms, multiplier MF); channel repeat on MXU.
        rep1 = jnp.dot(pools[b], r1t, preferred_element_type=F32)  # (Tq, Cms*MF)
        h1 = w1_rows[0] * rep1[0:T1, :]
        for k in range(1, KL):
            h1 = h1 + w1_rows[k] * rep1[k:k + T1, :]
        h1 = jnp.maximum(h1 + b1r, 0.0)                            # (T1, Cms*MF)
        # timeConv2: grouped (groups=Cms*MF, multiplier MF).
        rep2 = jnp.dot(h1, r2t, preferred_element_type=F32)        # (T1, CMM)
        h2 = w2_rows[0] * rep2[0:T2, :]
        for k in range(1, KL):
            h2 = h2 + w2_rows[k] * rep2[k:k + T2, :]
        h2 = jnp.maximum(h2 + b2r, 0.0)                            # (T2, CMM)
        outs.append(h2)

    if ln_middle2:
        outs = _ln_group(outs, axis=0)
    for b in range(B):
        o_ref[b] = outs[b]            # lane-dense store: last dim = CMM (128)


class ConvNetAttentionSimple:
    """JAX/Pallas port of the PyTorch ConvNet_attention_simple forward pass."""

    def __init__(self, key, n_timeFilters, timeFilterLen0, n_msFilters,
                 timeFilterLen, avgPoolLen, timeSmootherLen, n_channs,
                 stratified, multiFact, activ, temp, saveFea):
        self.Ft = n_timeFilters
        self.KT0 = timeFilterLen0
        self.S = n_msFilters
        self.KT = timeFilterLen
        self.L = avgPoolLen
        self.KL = timeSmootherLen
        self.C = n_channs
        self.stratified = stratified
        self.MF = multiFact
        self.activ = activ
        self.temp = float(temp)
        self.saveFea = saveFea
        self.dils = DILATIONS
        self.KA = SEG_ATT

        Ft, S, C = self.Ft, self.S, self.C
        KT0, KT, KL, MF, KA = self.KT0, self.KT, self.KL, self.MF, self.KA
        nD = len(self.dils)
        Cms = Ft * S * nD
        FtC = Ft * C
        CMM = Cms * MF * MF
        self.Cms = Cms
        self.CMM = CMM

        ks = jax.random.split(key, 18)

        def u(k, shape, fan_in):
            b = 1.0 / float(fan_in) ** 0.5
            return jax.random.uniform(k, shape, F32, -b, b)

        # torch Conv2d-shaped parameters (deterministic synthetic init).
        w_time = u(ks[0], (Ft, 1, 1, KT0), KT0)
        b_time = u(ks[1], (Ft,), KT0)
        w_ms = [u(ks[2 + i], (Ft * S, 1, C, KT), C * KT) for i in range(nD)]
        b_ms = [u(ks[6 + i], (Ft * S,), C * KT) for i in range(nD)]
        w_att = u(ks[10], (Cms, 1, 1, KA), KA)
        b_att = u(ks[11], (Cms,), KA)
        w_pt = u(ks[12], (Cms, Cms, 1, 1), Cms)
        b_pt = u(ks[13], (Cms,), Cms)
        w_tc1 = u(ks[14], (Cms * MF, 1, 1, KL), KL)
        b_tc1 = u(ks[15], (Cms * MF,), KL)
        w_tc2 = u(ks[16], (CMM, 1, 1, KL), KL)
        b_tc2 = u(ks[17], (CMM,), KL)

        # ---- repack into kernel-friendly layouts (host side, once) ----------
        self.wt_sm = jnp.asarray(np.asarray(w_time, np.float32).reshape(Ft, KT0))
        self.bt_sm = jnp.asarray(np.asarray(b_time, np.float32))

        # one fused block matrix for all 4 dilated grouped convs:
        # rows = torch cat order (di, f, s); cols = im2col rows (di, k, f, c)
        Wf = np.zeros((Cms, nD * KT * FtC), np.float32)
        for di in range(nD):
            w = np.asarray(w_ms[di], np.float32).reshape(Ft, S, C, KT)
            for f in range(Ft):
                for k in range(KT):
                    r0 = di * Ft * S + f * S
                    c0 = (di * KT + k) * FtC + f * C
                    Wf[r0:r0 + S, c0:c0 + C] = w[f, :, :, k]
        self.wms_f = jnp.asarray(Wf)
        self.bms_col = jnp.asarray(
            np.concatenate([np.asarray(b, np.float32) for b in b_ms])[:, None])

        self.watt = jnp.asarray(np.asarray(w_att, np.float32).reshape(Cms, KA))
        self.batt_col = jnp.asarray(np.asarray(b_att, np.float32)[:, None])
        self.wpt = jnp.asarray(np.asarray(w_pt, np.float32).reshape(Cms, Cms))
        self.bpt_col = jnp.asarray(np.asarray(b_pt, np.float32)[:, None])

        # back end operates in (time, channel) layout -> transposed constants
        self.R1T = jnp.asarray(np.kron(np.eye(Cms, dtype=np.float32),
                                       np.ones((1, MF), np.float32)))
        self.w1T = jnp.asarray(
            np.asarray(w_tc1, np.float32).reshape(Cms * MF, KL).T.copy())
        self.b1_row = jnp.asarray(np.asarray(b_tc1, np.float32)[None, :])
        self.R2T = jnp.asarray(np.kron(np.eye(Cms * MF, dtype=np.float32),
                                       np.ones((1, MF), np.float32)))
        self.w2T = jnp.asarray(
            np.asarray(w_tc2, np.float32).reshape(CMM, KL).T.copy())
        self.b2_row = jnp.asarray(np.asarray(b_tc2, np.float32)[None, :])

    def __call__(self, x):
        # x: (N, 1, n_channs, T) float32 (PyTorch NCHW)
        N = x.shape[0]
        C, T = self.C, x.shape[-1]
        Ft, S, KT0, KT, KA = self.Ft, self.S, self.KT0, self.KT, self.KA
        L, KL, MF = self.L, self.KL, self.MF
        nD = len(self.dils)
        Cms, CMM = self.Cms, self.CMM
        FtC = Ft * C
        pad0 = (KT0 - 1) // 2
        Tt = T + 2 * pad0 - KT0 + 1
        Tq = Tt // L
        T1 = Tq - KL + 1
        T2 = T1 - KL + 1
        PL = max((d * (KT - 1)) // 2 for d in self.dils)
        PR = max(d * (KT - 1) - (d * (KT - 1)) // 2 for d in self.dils)

        use_ln = any(tag in self.stratified
                     for tag in ('initial', 'middle1', 'middle2'))
        B = (N // 2) if use_ln else 1         # samples per stratification group
        assert B >= 1 and N % B == 0
        n_groups = N // B

        x3 = x.reshape(N, C, T)

        # time-domain constants (host, per call), both consumed on the MXU:
        #  - causal box Toeplitz matrix for att_pool (divisor = KA, count_include_pad)
        #  - transposed stride-L average-pool matrix (floor mode)
        jj = np.arange(Tt)
        box = np.where((jj[:, None] <= jj[None, :]) & (jj[:, None] > jj[None, :] - KA),
                       1.0 / KA, 0.0).astype(np.float32)
        box_m = jnp.asarray(box)
        qq = np.arange(Tq)
        pool = np.where((jj[None, :] >= qq[:, None] * L) &
                        (jj[None, :] < (qq[:, None] + 1) * L),
                        1.0 / L, 0.0).astype(np.float32)
        pool_mT = jnp.asarray(pool)

        kernel = functools.partial(
            _convnet_attention_kernel,
            B=B, C=C, T=T, Ft=Ft, S=S, KT0=KT0, KT=KT, dils=self.dils, KA=KA,
            L=L, KL=KL, MF=MF,
            ln_initial='initial' in self.stratified,
            ln_middle1='middle1' in self.stratified,
            ln_middle2='middle2' in self.stratified,
            activ=self.activ, temp=self.temp, save_fea=self.saveFea)

        vmem_weights = (self.wms_f, self.bms_col, self.watt, self.batt_col,
                        self.wpt, self.bpt_col, box_m, pool_mT,
                        self.R1T, self.w1T, self.b1_row,
                        self.R2T, self.w2T, self.b2_row)

        def _whole(arr):
            zeros = (0,) * arr.ndim
            return pl.BlockSpec(arr.shape, lambda i, _z=zeros: _z)

        smem_spec = pl.BlockSpec(memory_space=pltpu.MemorySpace.SMEM)
        in_specs = [pl.BlockSpec((B, C, T), lambda i: (i, 0, 0)),
                    smem_spec, smem_spec]
        in_specs += [_whole(w) for w in vmem_weights]

        if self.saveFea:
            out_shape = jax.ShapeDtypeStruct((N, Cms, Tt), F32)
            out_spec = pl.BlockSpec((B, Cms, Tt), lambda i: (i, 0, 0))
            out_elems = N * Cms * Tt
        else:
            # lane-dense output: last dim = Cms*MF*MF (multiple of 128 in prod).
            out_shape = jax.ShapeDtypeStruct((N, T2, CMM), F32)
            out_spec = pl.BlockSpec((B, T2, CMM), lambda i: (i, 0, 0))
            out_elems = N * CMM * T2

        scratch_shapes = [
            pltpu.VMEM((C, T + 2 * pad0), F32),            # padded input
            pltpu.VMEM((FtC, PL + Tt + PR), F32),          # padded timeConv out
            pltpu.VMEM((nD * KT * FtC, Tt), F32),          # stacked im2col
            pltpu.VMEM((Cms, KA - 1 + Tt), F32),           # causally padded ms
        ]

        # rough cost hint so XLA schedules the fused custom call sensibly
        flops_b = (2 * Ft * C * KT0 * Tt
                   + 2 * Cms * (nD * KT * FtC) * Tt
                   + 2 * Cms * KA * Tt
                   + 2 * Cms * Tt * Tt
                   + 2 * Cms * Cms * Tt
                   + 2 * Cms * Tt)
        if not self.saveFea:
            flops_b += (2 * Tq * Tt * Cms
                        + 2 * Tq * Cms * (Cms * MF)
                        + 2 * T1 * (Cms * MF) * KL
                        + 2 * T1 * (Cms * MF) * CMM
                        + 2 * T2 * CMM * KL)
        in_bytes = 4 * (int(x3.size) + sum(int(w.size) for w in vmem_weights)
                        + int(self.wt_sm.size) + int(self.bt_sm.size))
        cost = pl.CostEstimate(
            flops=int(N * flops_b),
            transcendentals=int(N * Cms * Tt) if self.activ == 'softmax' else 0,
            bytes_accessed=int(in_bytes + 4 * out_elems))

        out = pl.pallas_call(
            kernel,
            grid=(n_groups,),
            in_specs=in_specs,
            out_specs=out_spec,
            out_shape=out_shape,
            scratch_shapes=scratch_shapes,
            compiler_params=pltpu.CompilerParams(
                dimension_semantics=("parallel",),
                vmem_limit_bytes=64 * 1024 * 1024),
            cost_estimate=cost,
        )(x3, self.wt_sm, self.bt_sm, *vmem_weights)

        if self.saveFea:
            return out[:, :, None, :]                       # (N, Cms, 1, Tt)
        # kernel emits (N, T2, CMM); restore torch's channel-major flatten order
        return jnp.transpose(out, (0, 2, 1)).reshape(N, -1)


if __name__ == "__main__":
    key = jax.random.PRNGKey(0)
    k_in, k_par = jax.random.split(key)

    model = ConvNetAttentionSimple(
        k_par,
        n_timeFilters=4, timeFilterLen0=5, n_msFilters=2, timeFilterLen=3,
        avgPoolLen=4, timeSmootherLen=3, n_channs=8,
        stratified='initial', multiFact=2, activ='softmax', temp=1.0,
        saveFea=False)

    # input: (batch=4, 1, n_channs=8, time=64)
    x = jax.random.normal(k_in, (4, 1, 8, 64), dtype=jnp.float32)

    proj = model(x)
    jax.block_until_ready(proj)
    Cms = 4 * 2 * 4
    assert proj.shape == (4, Cms * 2 * 2 * 12), proj.shape
    assert bool(jnp.all(jnp.isfinite(proj)))

    # exercise the saveFea branch too (returns the attention-weighted features)
    model.saveFea = True
    fea = model(x)
    jax.block_until_ready(fea)
    assert fea.shape == (4, Cms, 1, 64), fea.shape
    assert bool(jnp.all(jnp.isfinite(fea)))

    print("KERNEL_OK")
</pallas_src>

<mosaic_0001>
module attributes {stable_mosaic.version = 11 : i64} {
  func.func @_convnet_attention_kernel(%arg0: i32, %arg1: memref<2x8x64xf32, #tpu.memory_space<vmem>>, %arg2: memref<4x5xf32, #tpu.memory_space<smem>>, %arg3: memref<4xf32, #tpu.memory_space<smem>>, %arg4: memref<32x384xf32, #tpu.memory_space<vmem>>, %arg5: memref<32x1xf32, #tpu.memory_space<vmem>>, %arg6: memref<32x15xf32, #tpu.memory_space<vmem>>, %arg7: memref<32x1xf32, #tpu.memory_space<vmem>>, %arg8: memref<32x32xf32, #tpu.memory_space<vmem>>, %arg9: memref<32x1xf32, #tpu.memory_space<vmem>>, %arg10: memref<64x64xf32, #tpu.memory_space<vmem>>, %arg11: memref<16x64xf32, #tpu.memory_space<vmem>>, %arg12: memref<32x64xf32, #tpu.memory_space<vmem>>, %arg13: memref<3x64xf32, #tpu.memory_space<vmem>>, %arg14: memref<1x64xf32, #tpu.memory_space<vmem>>, %arg15: memref<64x128xf32, #tpu.memory_space<vmem>>, %arg16: memref<3x128xf32, #tpu.memory_space<vmem>>, %arg17: memref<1x128xf32, #tpu.memory_space<vmem>>, %arg18: memref<2x12x128xf32, #tpu.memory_space<vmem>>, %arg19: memref<8x68xf32, #tpu.memory_space<vmem>>, %arg20: memref<32x88xf32, #tpu.memory_space<vmem>>, %arg21: memref<384x64xf32, #tpu.memory_space<vmem>>, %arg22: memref<32x78xf32, #tpu.memory_space<vmem>>) attributes {dimension_semantics = [#tpu.dimension_semantics<parallel>], iteration_bounds = array<i64: 2>, scalar_prefetch = 0 : i64, scratch_operands = 4 : i64, tpu.core_type = #tpu.core_type<tc>, window_params = [{transform_indices = @transform_0, window_bounds = array<i64: 2, 8, 64>}, {transform_indices = @transform_1, window_bounds = array<i64: 4, 5>}, {transform_indices = @transform_2, window_bounds = array<i64: 4>}, {pipeline_mode = #tpu.pipeline_mode<synchronous>, transform_indices = @transform_3, window_bounds = array<i64: 32, 384>}, {pipeline_mode = #tpu.pipeline_mode<synchronous>, transform_indices = @transform_4, window_bounds = array<i64: 32, 1>}, {pipeline_mode = #tpu.pipeline_mode<synchronous>, transform_indices = @transform_5, window_bounds = array<i64: 32, 15>}, {pipeline_mode = #tpu.pipeline_mode<synchronous>, transform_indices = @transform_6, window_bounds = array<i64: 32, 1>}, {pipeline_mode = #tpu.pipeline_mode<synchronous>, transform_indices = @transform_7, window_bounds = array<i64: 32, 32>}, {pipeline_mode = #tpu.pipeline_mode<synchronous>, transform_indices = @transform_8, window_bounds = array<i64: 32, 1>}, {pipeline_mode = #tpu.pipeline_mode<synchronous>, transform_indices = @transform_9, window_bounds = array<i64: 64, 64>}, {pipeline_mode = #tpu.pipeline_mode<synchronous>, transform_indices = @transform_10, window_bounds = array<i64: 16, 64>}, {pipeline_mode = #tpu.pipeline_mode<synchronous>, transform_indices = @transform_11, window_bounds = array<i64: 32, 64>}, {pipeline_mode = #tpu.pipeline_mode<synchronous>, transform_indices = @transform_12, window_bounds = array<i64: 3, 64>}, {pipeline_mode = #tpu.pipeline_mode<synchronous>, transform_indices = @transform_13, window_bounds = array<i64: 1, 64>}, {pipeline_mode = #tpu.pipeline_mode<synchronous>, transform_indices = @transform_14, window_bounds = array<i64: 64, 128>}, {pipeline_mode = #tpu.pipeline_mode<synchronous>, transform_indices = @transform_15, window_bounds = array<i64: 3, 128>}, {pipeline_mode = #tpu.pipeline_mode<synchronous>, transform_indices = @transform_16, window_bounds = array<i64: 1, 128>}, {transform_indices = @transform_17, window_bounds = array<i64: 2, 12, 128>}]} {
    %cst = arith.constant 0.000000e+00 : f32
    %0 = vector.broadcast %cst : f32 to vector<8x2xf32>
    %c0 = arith.constant 0 : index
    %c0_0 = arith.constant 0 : index
    %1 = vector.load %arg19[%c0, %c0_0] : memref<8x68xf32, #tpu.memory_space<vmem>>, vector<8x2xf32>
    tpu.vector_store %arg19[%c0, %c0_0], %0 {strides = array<i32>} : memref<8x68xf32, #tpu.memory_space<vmem>>, vector<8x2xf32>,
    %cst_1 = arith.constant 0.000000e+00 : f32
    %2 = vector.broadcast %cst_1 : f32 to vector<8x2xf32>
    %c0_2 = arith.constant 0 : index
    %c66 = arith.constant 66 : index
    %3 = vector.load %arg19[%c0_2, %c66] : memref<8x68xf32, #tpu.memory_space<vmem>>, vector<8x2xf32>
    tpu.vector_store %arg19[%c0_2, %c66], %2 {strides = array<i32>} : memref<8x68xf32, #tpu.memory_space<vmem>>, vector<8x2xf32>,
    %cst_3 = arith.constant 0.000000e+00 : f32
    %4 = vector.broadcast %cst_3 : f32 to vector<32x12xf32>
    %c0_4 = arith.constant 0 : index
    %c0_5 = arith.constant 0 : index
    %5 = vector.load %arg20[%c0_4, %c0_5] : memref<32x88xf32, #tpu.memory_space<vmem>>, vector<32x12xf32>
    tpu.vector_store %arg20[%c0_4, %c0_5], %4 {strides = array<i32>} : memref<32x88xf32, #tpu.memory_space<vmem>>, vector<32x12xf32>,
    %cst_6 = arith.constant 0.000000e+00 : f32
    %6 = vector.broadcast %cst_6 : f32 to vector<32x12xf32>
    %c0_7 = arith.constant 0 : index
    %c76 = arith.constant 76 : index
    %7 = vector.load %arg20[%c0_7, %c76] : memref<32x88xf32, #tpu.memory_space<vmem>>, vector<32x12xf32>
    tpu.vector_store %arg20[%c0_7, %c76], %6 {strides = array<i32>} : memref<32x88xf32, #tpu.memory_space<vmem>>, vector<32x12xf32>,
    %cst_8 = arith.constant 0.000000e+00 : f32
    %8 = vector.broadcast %cst_8 : f32 to vector<32x14xf32>
    %c0_9 = arith.constant 0 : index
    %c0_10 = arith.constant 0 : index
    %9 = vector.load %arg22[%c0_9, %c0_10] : memref<32x78xf32, #tpu.memory_space<vmem>>, vector<32x14xf32>
    tpu.vector_store %arg22[%c0_9, %c0_10], %8 {strides = array<i32>} : memref<32x78xf32, #tpu.memory_space<vmem>>, vector<32x14xf32>,
    %c0_11 = arith.constant 0 : index
    %c0_12 = arith.constant 0 : index
    %10 = vector.load %arg4[%c0_11, %c0_12] : memref<32x384xf32, #tpu.memory_space<vmem>>, vector<32x384xf32>
    %c0_13 = arith.constant 0 : index
    %c0_14 = arith.constant 0 : index
    %11 = vector.load %arg5[%c0_13, %c0_14] : memref<32x1xf32, #tpu.memory_space<vmem>>, vector<32x1xf32>
    %c0_15 = arith.constant 0 : index
    %c0_16 = arith.constant 0 : index
    %12 = vector.load %arg6[%c0_15, %c0_16] : memref<32x15xf32, #tpu.memory_space<vmem>>, vector<32x15xf32>
    %13 = vector.extract_strided_slice %12 {offsets = [0, 0], sizes = [32, 1], strides = [1, 1]} : vector<32x15xf32> to vector<32x1xf32>
    %14 = vector.extract_strided_slice %12 {offsets = [0, 1], sizes = [32, 1], strides = [1, 1]} : vector<32x15xf32> to vector<32x1xf32>
    %15 = vector.extract_strided_slice %12 {offsets = [0, 2], sizes = [32, 1], strides = [1, 1]} : vector<32x15xf32> to vector<32x1xf32>
    %16 = vector.extract_strided_slice %12 {offsets = [0, 3], sizes = [32, 1], strides = [1, 1]} : vector<32x15xf32> to vector<32x1xf32>
    %17 = vector.extract_strided_slice %12 {offsets = [0, 4], sizes = [32, 1], strides = [1, 1]} : vector<32x15xf32> to vector<32x1xf32>
    %18 = vector.extract_strided_slice %12 {offsets = [0, 5], sizes = [32, 1], strides = [1, 1]} : vector<32x15xf32> to vector<32x1xf32>
    %19 = vector.extract_strided_slice %12 {offsets = [0, 6], sizes = [32, 1], strides = [1, 1]} : vector<32x15xf32> to vector<32x1xf32>
    %20 = vector.extract_strided_slice %12 {offsets = [0, 7], sizes = [32, 1], strides = [1, 1]} : vector<32x15xf32> to vector<32x1xf32>
    %21 = vector.extract_strided_slice %12 {offsets = [0, 8], sizes = [32, 1], strides = [1, 1]} : vector<32x15xf32> to vector<32x1xf32>
    %22 = vector.extract_strided_slice %12 {offsets = [0, 9], sizes = [32, 1], strides = [1, 1]} : vector<32x15xf32> to vector<32x1xf32>
    %23 = vector.extract_strided_slice %12 {offsets = [0, 10], sizes = [32, 1], strides = [1, 1]} : vector<32x15xf32> to vector<32x1xf32>
    %24 = vector.extract_strided_slice %12 {offsets = [0, 11], sizes = [32, 1], strides = [1, 1]} : vector<32x15xf32> to vector<32x1xf32>
    %25 = vector.extract_strided_slice %12 {offsets = [0, 12], sizes = [32, 1], strides = [1, 1]} : vector<32x15xf32> to vector<32x1xf32>
    %26 = vector.extract_strided_slice %12 {offsets = [0, 13], sizes = [32, 1], strides = [1, 1]} : vector<32x15xf32> to vector<32x1xf32>
    %27 = vector.extract_strided_slice %12 {offsets = [0, 14], sizes = [32, 1], strides = [1, 1]} : vector<32x15xf32> to vector<32x1xf32>
    %c0_17 = arith.constant 0 : index
    %c0_18 = arith.constant 0 : index
    %28 = vector.load %arg7[%c0_17, %c0_18] : memref<32x1xf32, #tpu.memory_space<vmem>>, vector<32x1xf32>
    %c0_19 = arith.constant 0 : index
    %c0_20 = arith.constant 0 : index
    %29 = vector.load %arg8[%c0_19, %c0_20] : memref<32x32xf32, #tpu.memory_space<vmem>>, vector<32x32xf32>
    %c0_21 = arith.constant 0 : index
    %c0_22 = arith.constant 0 : index
    %30 = vector.load %arg9[%c0_21, %c0_22] : memref<32x1xf32, #tpu.memory_space<vmem>>, vector<32x1xf32>
    %c0_23 = arith.constant 0 : index
    %c0_24 = arith.constant 0 : index
    %31 = vector.load %arg10[%c0_23, %c0_24] : memref<64x64xf32, #tpu.memory_space<vmem>>, vector<64x64xf32>
    %c0_25 = arith.constant 0 : index
    %c0_26 = arith.constant 0 : index
    %c0_27 = arith.constant 0 : index
    %32 = vector.load %arg1[%c0_25, %c0_26, %c0_27] : memref<2x8x64xf32, #tpu.memory_space<vmem>>, vector<1x8x64xf32>
    %33 = vector.shape_cast %32 : vector<1x8x64xf32> to vector<8x64xf32>
    %c1 = arith.constant 1 : index
    %c0_28 = arith.constant 0 : index
    %c0_29 = arith.constant 0 : index
    %34 = vector.load %arg1[%c1, %c0_28, %c0_29] : memref<2x8x64xf32, #tpu.memory_space<vmem>>, vector<1x8x64xf32>
    %35 = vector.shape_cast %34 : vector<1x8x64xf32> to vector<8x64xf32>
    %cst_30 = arith.constant dense<0.000000e+00> : vector<8xf32>
    %36 = vector.multi_reduction <add>, %33, %cst_30 [1] : vector<8x64xf32> to vector<8xf32>
    %37 = vector.shape_cast %36 : vector<8xf32> to vector<8x1xf32>
    %cst_31 = arith.constant dense<0.000000e+00> : vector<8xf32>
    %38 = vector.multi_reduction <add>, %35, %cst_31 [1] : vector<8x64xf32> to vector<8xf32>
    %39 = vector.shape_cast %38 : vector<8xf32> to vector<8x1xf32>
    %40 = arith.addf %37, %39 : vector<8x1xf32>
    %cst_32 = arith.constant 7.812500e-03 : f32
    %41 = vector.broadcast %cst_32 : f32 to vector<8x1xf32>
    %42 = arith.mulf %40, %41 : vector<8x1xf32>
    %43 = vector.broadcast %42 : vector<8x1xf32> to vector<8x64xf32>
    %44 = arith.subf %33, %43 : vector<8x64xf32>
    %45 = vector.broadcast %42 : vector<8x1xf32> to vector<8x64xf32>
    %46 = arith.subf %35, %45 : vector<8x64xf32>
    %47 = arith.mulf %44, %44 : vector<8x64xf32>
    %cst_33 = arith.constant dense<0.000000e+00> : vector<8xf32>
    %48 = vector.multi_reduction <add>, %47, %cst_33 [1] : vector<8x64xf32> to vector<8xf32>
    %49 = vector.shape_cast %48 : vector<8xf32> to vector<8x1xf32>
    %50 = arith.mulf %46, %46 : vector<8x64xf32>
    %cst_34 = arith.constant dense<0.000000e+00> : vector<8xf32>
    %51 = vector.multi_reduction <add>, %50, %cst_34 [1] : vector<8x64xf32> to vector<8xf32>
    %52 = vector.shape_cast %51 : vector<8xf32> to vector<8x1xf32>
    %53 = arith.addf %49, %52 : vector<8x1xf32>
    %cst_35 = arith.constant 0.00787401571 : f32
    %54 = vector.broadcast %cst_35 : f32 to vector<8x1xf32>
    %55 = arith.mulf %53, %54 : vector<8x1xf32>
    %56 = math.sqrt %55 : vector<8x1xf32>
    %cst_36 = arith.constant 1.000000e-03 : f32
    %57 = vector.broadcast %cst_36 : f32 to vector<8x1xf32>
    %58 = arith.addf %56, %57 : vector<8x1xf32>
    %59 = tpu.reciprocal %58 {approx = true} : vector<8x1xf32> -> vector<8x1xf32>
    %60 = vector.broadcast %59 : vector<8x1xf32> to vector<8x64xf32>
    %61 = arith.mulf %44, %60 : vector<8x64xf32>
    %62 = vector.broadcast %59 : vector<8x1xf32> to vector<8x64xf32>
    %63 = arith.mulf %46, %62 : vector<8x64xf32>
    %c0_37 = arith.constant 0 : index
    %c2 = arith.constant 2 : index
    %64 = vector.load %arg19[%c0_37, %c2] : memref<8x68xf32, #tpu.memory_space<vmem>>, vector<8x64xf32>
    tpu.vector_store %arg19[%c0_37, %c2], %61 {strides = array<i32>} : memref<8x68xf32, #tpu.memory_space<vmem>>, vector<8x64xf32>,
    %c0_38 = arith.constant 0 : index
    %c0_39 = arith.constant 0 : index
    %65 = vector.load %arg19[%c0_38, %c0_39] : memref<8x68xf32, #tpu.memory_space<vmem>>, vector<8x68xf32>
    %c0_40 = arith.constant 0 : index
    %c0_41 = arith.constant 0 : index
    %66 = memref.load %arg2[%c0_40, %c0_41] : memref<4x5xf32, #tpu.memory_space<smem>>
    %67 = vector.extract_strided_slice %65 {offsets = [0, 0], sizes = [8, 64], strides = [1, 1]} : vector<8x68xf32> to vector<8x64xf32>
    %68 = vector.broadcast %66 : f32 to vector<8x64xf32>
    %69 = arith.mulf %68, %67 : vector<8x64xf32>
    %c0_42 = arith.constant 0 : index
    %c1_43 = arith.constant 1 : index
    %70 = memref.load %arg2[%c0_42, %c1_43] : memref<4x5xf32, #tpu.memory_space<smem>>
    %71 = vector.extract_strided_slice %65 {offsets = [0, 1], sizes = [8, 64], strides = [1, 1]} : vector<8x68xf32> to vector<8x64xf32>
    %72 = vector.broadcast %70 : f32 to vector<8x64xf32>
    %73 = arith.mulf %72, %71 : vector<8x64xf32>
    %74 = arith.addf %69, %73 : vector<8x64xf32>
    %c0_44 = arith.constant 0 : index
    %c2_45 = arith.constant 2 : index
    %75 = memref.load %arg2[%c0_44, %c2_45] : memref<4x5xf32, #tpu.memory_space<smem>>
    %76 = vector.extract_strided_slice %65 {offsets = [0, 2], sizes = [8, 64], strides = [1, 1]} : vector<8x68xf32> to vector<8x64xf32>
    %77 = vector.broadcast %75 : f32 to vector<8x64xf32>
    %78 = arith.mulf %77, %76 : vector<8x64xf32>
    %79 = arith.addf %74, %78 : vector<8x64xf32>
    %c0_46 = arith.constant 0 : index
    %c3 = arith.constant 3 : index
    %80 = memref.load %arg2[%c0_46, %c3] : memref<4x5xf32, #tpu.memory_space<smem>>
    %81 = vector.extract_strided_slice %65 {offsets = [0, 3], sizes = [8, 64], strides = [1, 1]} : vector<8x68xf32> to vector<8x64xf32>
    %82 = vector.broadcast %80 : f32 to vector<8x64xf32>
    %83 = arith.mulf %82, %81 : vector<8x64xf32>
    %84 = arith.addf %79, %83 : vector<8x64xf32>
    %c0_47 = arith.constant 0 : index
    %c4 = arith.constant 4 : index
    %85 = memref.load %arg2[%c0_47, %c4] : memref<4x5xf32, #tpu.memory_space<smem>>
    %86 = vector.extract_strided_slice %65 {offsets = [0, 4], sizes = [8, 64], strides = [1, 1]} : vector<8x68xf32> to vector<8x64xf32>
    %87 = vector.broadcast %85 : f32 to vector<8x64xf32>
    %88 = arith.mulf %87, %86 : vector<8x64xf32>
    %89 = arith.addf %84, %88 : vector<8x64xf32>
    %c0_48 = arith.constant 0 : index
    %90 = memref.load %arg3[%c0_48] : memref<4xf32, #tpu.memory_space<smem>>
    %91 = vector.broadcast %90 : f32 to vector<8x64xf32>
    %92 = arith.addf %89, %91 : vector<8x64xf32>
    %c0_49 = arith.constant 0 : index
    %c12 = arith.constant 12 : index
    %93 = vector.load %arg20[%c0_49, %c12] : memref<32x88xf32, #tpu.memory_space<vmem>>, vector<8x64xf32>
    tpu.vector_store %arg20[%c0_49, %c12], %92 {strides = array<i32>} : memref<32x88xf32, #tpu.memory_space<vmem>>, vector<8x64xf32>,
    %c1_50 = arith.constant 1 : index
    %c0_51 = arith.constant 0 : index
    %94 = memref.load %arg2[%c1_50, %c0_51] : memref<4x5xf32, #tpu.memory_space<smem>>
    %95 = vector.extract_strided_slice %65 {offsets = [0, 0], sizes = [8, 64], strides = [1, 1]} : vector<8x68xf32> to vector<8x64xf32>
    %96 = vector.broadcast %94 : f32 to vector<8x64xf32>
    %97 = arith.mulf %96, %95 : vector<8x64xf32>
    %c1_52 = arith.constant 1 : index
    %c1_53 = arith.constant 1 : index
    %98 = memref.load %arg2[%c1_52, %c1_53] : memref<4x5xf32, #tpu.memory_space<smem>>
    %99 = vector.extract_strided_slice %65 {offsets = [0, 1], sizes = [8, 64], strides = [1, 1]} : vector<8x68xf32> to vector<8x64xf32>
    %100 = vector.broadcast %98 : f32 to vector<8x64xf32>
    %101 = arith.mulf %100, %99 : vector<8x64xf32>
    %102 = arith.addf %97, %101 : vector<8x64xf32>
    %c1_54 = arith.constant 1 : index
    %c2_55 = arith.constant 2 : index
    %103 = memref.load %arg2[%c1_54, %c2_55] : memref<4x5xf32, #tpu.memory_space<smem>>
    %104 = vector.extract_strided_slice %65 {offsets = [0, 2], sizes = [8, 64], strides = [1, 1]} : vector<8x68xf32> to vector<8x64xf32>
    %105 = vector.broadcast %103 : f32 to vector<8x64xf32>
    %106 = arith.mulf %105, %104 : vector<8x64xf32>
    %107 = arith.addf %102, %106 : vector<8x64xf32>
    %c1_56 = arith.constant 1 : index
    %c3_57 = arith.constant 3 : index
    %108 = memref.load %arg2[%c1_56, %c3_57] : memref<4x5xf32, #tpu.memory_space<smem>>
    %109 = vector.extract_strided_slice %65 {offsets = [0, 3], sizes = [8, 64], strides = [1, 1]} : vector<8x68xf32> to vector<8x64xf32>
    %110 = vector.broadcast %108 : f32 to vector<8x64xf32>
    %111 = arith.mulf %110, %109 : vector<8x64xf32>
    %112 = arith.addf %107, %111 : vector<8x64xf32>
    %c1_58 = arith.constant 1 : index
    %c4_59 = arith.constant 4 : index
    %113 = memref.load %arg2[%c1_58, %c4_59] : memref<4x5xf32, #tpu.memory_space<smem>>
    %114 = vector.extract_strided_slice %65 {offsets = [0, 4], sizes = [8, 64], strides = [1, 1]} : vector<8x68xf32> to vector<8x64xf32>
    %115 = vector.broadcast %113 : f32 to vector<8x64xf32>
    %116 = arith.mulf %115, %114 : vector<8x64xf32>
    %117 = arith.addf %112, %116 : vector<8x64xf32>
    %c1_60 = arith.constant 1 : index
    %118 = memref.load %arg3[%c1_60] : memref<4xf32, #tpu.memory_space<smem>>
    %119 = vector.broadcast %118 : f32 to vector<8x64xf32>
    %120 = arith.addf %117, %119 : vector<8x64xf32>
    %c8 = arith.constant 8 : index
    %c12_61 = arith.constant 12 : index
    %121 = vector.load %arg20[%c8, %c12_61] : memref<32x88xf32, #tpu.memory_space<vmem>>, vector<8x64xf32>
    tpu.vector_store %arg20[%c8, %c12_61], %120 {strides = array<i32>} : memref<32x88xf32, #tpu.memory_space<vmem>>, vector<8x64xf32>,
    %c2_62 = arith.constant 2 : index
    %c0_63 = arith.constant 0 : index
    %122 = memref.load %arg2[%c2_62, %c0_63] : memref<4x5xf32, #tpu.memory_space<smem>>
    %123 = vector.extract_strided_slice %65 {offsets = [0, 0], sizes = [8, 64], strides = [1, 1]} : vector<8x68xf32> to vector<8x64xf32>
    %124 = vector.broadcast %122 : f32 to vector<8x64xf32>
    %125 = arith.mulf %124, %123 : vector<8x64xf32>
    %c2_64 = arith.constant 2 : index
    %c1_65 = arith.constant 1 : index
    %126 = memref.load %arg2[%c2_64, %c1_65] : memref<4x5xf32, #tpu.memory_space<smem>>
    %127 = vector.extract_strided_slice %65 {offsets = [0, 1], sizes = [8, 64], strides = [1, 1]} : vector<8x68xf32> to vector<8x64xf32>
    %128 = vector.broadcast %126 : f32 to vector<8x64xf32>
    %129 = arith.mulf %128, %127 : vector<8x64xf32>
    %130 = arith.addf %125, %129 : vector<8x64xf32>
    %c2_66 = arith.constant 2 : index
    %c2_67 = arith.constant 2 : index
    %131 = memref.load %arg2[%c2_66, %c2_67] : memref<4x5xf32, #tpu.memory_space<smem>>
    %132 = vector.extract_strided_slice %65 {offsets = [0, 2], sizes = [8, 64], strides = [1, 1]} : vector<8x68xf32> to vector<8x64xf32>
    %133 = vector.broadcast %131 : f32 to vector<8x64xf32>
    %134 = arith.mulf %133, %132 : vector<8x64xf32>
    %135 = arith.addf %130, %134 : vector<8x64xf32>
    %c2_68 = arith.constant 2 : index
    %c3_69 = arith.constant 3 : index
    %136 = memref.load %arg2[%c2_68, %c3_69] : memref<4x5xf32, #tpu.memory_space<smem>>
    %137 = vector.extract_strided_slice %65 {offsets = [0, 3], sizes = [8, 64], strides = [1, 1]} : vector<8x68xf32> to vector<8x64xf32>
    %138 = vector.broadcast %136 : f32 to vector<8x64xf32>
    %139 = arith.mulf %138, %137 : vector<8x64xf32>
    %140 = arith.addf %135, %139 : vector<8x64xf32>
    %c2_70 = arith.constant 2 : index
    %c4_71 = arith.constant 4 : index
    %141 = memref.load %arg2[%c2_70, %c4_71] : memref<4x5xf32, #tpu.memory_space<smem>>
    %142 = vector.extract_strided_slice %65 {offsets = [0, 4], sizes = [8, 64], strides = [1, 1]} : vector<8x68xf32> to vector<8x64xf32>
    %143 = vector.broadcast %141 : f32 to vector<8x64xf32>
    %144 = arith.mulf %143, %142 : vector<8x64xf32>
    %145 = arith.addf %140, %144 : vector<8x64xf32>
    %c2_72 = arith.constant 2 : index
    %146 = memref.load %arg3[%c2_72] : memref<4xf32, #tpu.memory_space<smem>>
    %147 = vector.broadcast %146 : f32 to vector<8x64xf32>
    %148 = arith.addf %145, %147 : vector<8x64xf32>
    %c16 = arith.constant 16 : index
    %c12_73 = arith.constant 12 : index
    %149 = vector.load %arg20[%c16, %c12_73] : memref<32x88xf32, #tpu.memory_space<vmem>>, vector<8x64xf32>
    tpu.vector_store %arg20[%c16, %c12_73], %148 {strides = array<i32>} : memref<32x88xf32, #tpu.memory_space<vmem>>, vector<8x64xf32>,
    %c3_74 = arith.constant 3 : index
    %c0_75 = arith.constant 0 : index
    %150 = memref.load %arg2[%c3_74, %c0_75] : memref<4x5xf32, #tpu.memory_space<smem>>
    %151 = vector.extract_strided_slice %65 {offsets = [0, 0], sizes = [8, 64], strides = [1, 1]} : vector<8x68xf32> to vector<8x64xf32>
    %152 = vector.broadcast %150 : f32 to vector<8x64xf32>
    %153 = arith.mulf %152, %151 : vector<8x64xf32>
    %c3_76 = arith.constant 3 : index
    %c1_77 = arith.constant 1 : index
    %154 = memref.load %arg2[%c3_76, %c1_77] : memref<4x5xf32, #tpu.memory_space<smem>>
    %155 = vector.extract_strided_slice %65 {offsets = [0, 1], sizes = [8, 64], strides = [1, 1]} : vector<8x68xf32> to vector<8x64xf32>
    %156 = vector.broadcast %154 : f32 to vector<8x64xf32>
    %157 = arith.mulf %156, %155 : vector<8x64xf32>
    %158 = arith.addf %153, %157 : vector<8x64xf32>
    %c3_78 = arith.constant 3 : index
    %c2_79 = arith.constant 2 : index
    %159 = memref.load %arg2[%c3_78, %c2_79] : memref<4x5xf32, #tpu.memory_space<smem>>
    %160 = vector.extract_strided_slice %65 {offsets = [0, 2], sizes = [8, 64], strides = [1, 1]} : vector<8x68xf32> to vector<8x64xf32>
    %161 = vector.broadcast %159 : f32 to vector<8x64xf32>
    %162 = arith.mulf %161, %160 : vector<8x64xf32>
    %163 = arith.addf %158, %162 : vector<8x64xf32>
    %c3_80 = arith.constant 3 : index
    %c3_81 = arith.constant 3 : index
    %164 = memref.load %arg2[%c3_80, %c3_81] : memref<4x5xf32, #tpu.memory_space<smem>>
    %165 = vector.extract_strided_slice %65 {offsets = [0, 3], sizes = [8, 64], strides = [1, 1]} : vector<8x68xf32> to vector<8x64xf32>
    %166 = vector.broadcast %164 : f32 to vector<8x64xf32>
    %167 = arith.mulf %166, %165 : vector<8x64xf32>
    %168 = arith.addf %163, %167 : vector<8x64xf32>
    %c3_82 = arith.constant 3 : index
    %c4_83 = arith.constant 4 : index
    %169 = memref.load %arg2[%c3_82, %c4_83] : memref<4x5xf32, #tpu.memory_space<smem>>
    %170 = vector.extract_strided_slice %65 {offsets = [0, 4], sizes = [8, 64], strides = [1, 1]} : vector<8x68xf32> to vector<8x64xf32>
    %171 = vector.broadcast %169 : f32 to vector<8x64xf32>
    %172 = arith.mulf %171, %170 : vector<8x64xf32>
    %173 = arith.addf %168, %172 : vector<8x64xf32>
    %c3_84 = arith.constant 3 : index
    %174 = memref.load %arg3[%c3_84] : memref<4xf32, #tpu.memory_space<smem>>
    %175 = vector.broadcast %174 : f32 to vector<8x64xf32>
    %176 = arith.addf %173, %175 : vector<8x64xf32>
    %c24 = arith.constant 24 : index
    %c12_85 = arith.constant 12 : index
    %177 = vector.load %arg20[%c24, %c12_85] : memref<32x88xf32, #tpu.memory_space<vmem>>, vector<8x64xf32>
    tpu.vector_store %arg20[%c24, %c12_85], %176 {strides = array<i32>} : memref<32x88xf32, #tpu.memory_space<vmem>>, vector<8x64xf32>,
    %c0_86 = arith.constant 0 : index
    %c0_87 = arith.constant 0 : index
    %178 = vector.load %arg20[%c0_86, %c0_87] : memref<32x88xf32, #tpu.memory_space<vmem>>, vector<32x88xf32>
    %179 = vector.extract_strided_slice %178 {offsets = [0, 11], sizes = [32, 64], strides = [1, 1]} : vector<32x88xf32> to vector<32x64xf32>
    %c0_88 = arith.constant 0 : index
    %c0_89 = arith.constant 0 : index
    %180 = vector.load %arg21[%c0_88, %c0_89] : memref<384x64xf32, #tpu.memory_space<vmem>>, vector<32x64xf32>
    tpu.vector_store %arg21[%c0_88, %c0_89], %179 {strides = array<i32>} : memref<384x64xf32, #tpu.memory_space<vmem>>, vector<32x64xf32>,
    %181 = vector.extract_strided_slice %178 {offsets = [0, 12], sizes = [32, 64], strides = [1, 1]} : vector<32x88xf32> to vector<32x64xf32>
    %c32 = arith.constant 32 : index
    %c0_90 = arith.constant 0 : index
    %182 = vector.load %arg21[%c32, %c0_90] : memref<384x64xf32, #tpu.memory_space<vmem>>, vector<32x64xf32>
    tpu.vector_store %arg21[%c32, %c0_90], %181 {strides = array<i32>} : memref<384x64xf32, #tpu.memory_space<vmem>>, vector<32x64xf32>,
    %183 = vector.extract_strided_slice %178 {offsets = [0, 13], sizes = [32, 64], strides = [1, 1]} : vector<32x88xf32> to vector<32x64xf32>
    %c64 = arith.constant 64 : index
    %c0_91 = arith.constant 0 : index
    %184 = vector.load %arg21[%c64, %c0_91] : memref<384x64xf32, #tpu.memory_space<vmem>>, vector<32x64xf32>
    tpu.vector_store %arg21[%c64, %c0_91], %183 {strides = array<i32>} : memref<384x64xf32, #tpu.memory_space<vmem>>, vector<32x64xf32>,
    %185 = vector.extract_strided_slice %178 {offsets = [0, 9], sizes = [32, 64], strides = [1, 1]} : vector<32x88xf32> to vector<32x64xf32>
    %c96 = arith.constant 96 : index
    %c0_92 = arith.constant 0 : index
    %186 = vector.load %arg21[%c96, %c0_92] : memref<384x64xf32, #tpu.memory_space<vmem>>, vector<32x64xf32>
    tpu.vector_store %arg21[%c96, %c0_92], %185 {strides = array<i32>} : memref<384x64xf32, #tpu.memory_space<vmem>>, vector<32x64xf32>,
    %187 = vector.extract_strided_slice %178 {offsets = [0, 12], sizes = [32, 64], strides = [1, 1]} : vector<32x88xf32> to vector<32x64xf32>
    %c128 = arith.constant 128 : index
    %c0_93 = arith.constant 0 : index
    %188 = vector.load %arg21[%c128, %c0_93] : memref<384x64xf32, #tpu.memory_space<vmem>>, vector<32x64xf32>
    tpu.vector_store %arg21[%c128, %c0_93], %187 {strides = array<i32>} : memref<384x64xf32, #tpu.memory_space<vmem>>, vector<32x64xf32>,
    %189 = vector.extract_strided_slice %178 {offsets = [0, 15], sizes = [32, 64], strides = [1, 1]} : vector<32x88xf32> to vector<32x64xf32>
    %c160 = arith.constant 160 : index
    %c0_94 = arith.constant 0 : index
    %190 = vector.load %arg21[%c160, %c0_94] : memref<384x64xf32, #tpu.memory_space<vmem>>, vector<32x64xf32>
    tpu.vector_store %arg21[%c160, %c0_94], %189 {strides = array<i32>} : memref<384x64xf32, #tpu.memory_space<vmem>>, vector<32x64xf32>,
    %191 = vector.extract_strided_slice %178 {offsets = [0, 6], sizes = [32, 64], strides = [1, 1]} : vector<32x88xf32> to vector<32x64xf32>
    %c192 = arith.constant 192 : index
    %c0_95 = arith.constant 0 : index
    %192 = vector.load %arg21[%c192, %c0_95] : memref<384x64xf32, #tpu.memory_space<vmem>>, vector<32x64xf32>
    tpu.vector_store %arg21[%c192, %c0_95], %191 {strides = array<i32>} : memref<384x64xf32, #tpu.memory_space<vmem>>, vector<32x64xf32>,
    %193 = vector.extract_strided_slice %178 {offsets = [0, 12], sizes = [32, 64], strides = [1, 1]} : vector<32x88xf32> to vector<32x64xf32>
    %c224 = arith.constant 224 : index
    %c0_96 = arith.constant 0 : index
    %194 = vector.load %arg21[%c224, %c0_96] : memref<384x64xf32, #tpu.memory_space<vmem>>, vector<32x64xf32>
    tpu.vector_store %arg21[%c224, %c0_96], %193 {strides = array<i32>} : memref<384x64xf32, #tpu.memory_space<vmem>>, vector<32x64xf32>,
    %195 = vector.extract_strided_slice %178 {offsets = [0, 18], sizes = [32, 64], strides = [1, 1]} : vector<32x88xf32> to vector<32x64xf32>
    %c256 = arith.constant 256 : index
    %c0_97 = arith.constant 0 : index
    %196 = vector.load %arg21[%c256, %c0_97] : memref<384x64xf32, #tpu.memory_space<vmem>>, vector<32x64xf32>
    tpu.vector_store %arg21[%c256, %c0_97], %195 {strides = array<i32>} : memref<384x64xf32, #tpu.memory_space<vmem>>, vector<32x64xf32>,
    %197 = vector.extract_strided_slice %178 {offsets = [0, 0], sizes = [32, 64], strides = [1, 1]} : vector<32x88xf32> to vector<32x64xf32>
    %c288 = arith.constant 288 : index
    %c0_98 = arith.constant 0 : index
    %198 = vector.load %arg21[%c288, %c0_98] : memref<384x64xf32, #tpu.memory_space<vmem>>, vector<32x64xf32>
    tpu.vector_store %arg21[%c288, %c0_98], %197 {strides = array<i32>} : memref<384x64xf32, #tpu.memory_space<vmem>>, vector<32x64xf32>,
    %199 = vector.extract_strided_slice %178 {offsets = [0, 12], sizes = [32, 64], strides = [1, 1]} : vector<32x88xf32> to vector<32x64xf32>
    %c320 = arith.constant 320 : index
    %c0_99 = arith.constant 0 : index
    %200 = vector.load %arg21[%c320, %c0_99] : memref<384x64xf32, #tpu.memory_space<vmem>>, vector<32x64xf32>
    tpu.vector_store %arg21[%c320, %c0_99], %199 {strides = array<i32>} : memref<384x64xf32, #tpu.memory_space<vmem>>, vector<32x64xf32>,
    %201 = vector.extract_strided_slice %178 {offsets = [0, 24], sizes = [32, 64], strides = [1, 1]} : vector<32x88xf32> to vector<32x64xf32>
    %c352 = arith.constant 352 : index
    %c0_100 = arith.constant 0 : index
    %202 = vector.load %arg21[%c352, %c0_100] : memref<384x64xf32, #tpu.memory_space<vmem>>, vector<32x64xf32>
    tpu.vector_store %arg21[%c352, %c0_100], %201 {strides = array<i32>} : memref<384x64xf32, #tpu.memory_space<vmem>>, vector<32x64xf32>,
    %c0_101 = arith.constant 0 : index
    %c0_102 = arith.constant 0 : index
    %203 = vector.load %arg21[%c0_101, %c0_102] : memref<384x64xf32, #tpu.memory_space<vmem>>, vector<384x64xf32>
    %cst_103 = arith.constant dense<0.000000e+00> : vector<32x64xf32>
    %204 = tpu.matmul %10, %203, %cst_103 {dimension_numbers = #tpu.dot_dimension_numbers<[1], [0], [0], [1], [0, 0, 1, 1], [], []>} : vector<32x384xf32>, vector<384x64xf32>, vector<32x64xf32> -> vector<32x64xf32>
    %205 = vector.broadcast %11 : vector<32x1xf32> to vector<32x64xf32>
    %206 = arith.addf %204, %205 : vector<32x64xf32>
    %c0_104 = arith.constant 0 : index
    %c14 = arith.constant 14 : index
    %207 = vector.load %arg22[%c0_104, %c14] : memref<32x78xf32, #tpu.memory_space<vmem>>, vector<32x64xf32>
    tpu.vector_store %arg22[%c0_104, %c14], %206 {strides = array<i32>} : memref<32x78xf32, #tpu.memory_space<vmem>>, vector<32x64xf32>,
    %c0_105 = arith.constant 0 : index
    %c0_106 = arith.constant 0 : index
    %208 = vector.load %arg22[%c0_105, %c0_106] : memref<32x78xf32, #tpu.memory_space<vmem>>, vector<32x78xf32>
    %209 = vector.extract_strided_slice %208 {offsets = [0, 0], sizes = [32, 64], strides = [1, 1]} : vector<32x78xf32> to vector<32x64xf32>
    %210 = vector.broadcast %13 : vector<32x1xf32> to vector<32x64xf32>
    %211 = arith.mulf %210, %209 : vector<32x64xf32>
    %212 = vector.extract_strided_slice %208 {offsets = [0, 1], sizes = [32, 64], strides = [1, 1]} : vector<32x78xf32> to vector<32x64xf32>
    %213 = vector.broadcast %14 : vector<32x1xf32> to vector<32x64xf32>
    %214 = arith.mulf %213, %212 : vector<32x64xf32>
    %215 = arith.addf %211, %214 : vector<32x64xf32>
    %216 = vector.extract_strided_slice %208 {offsets = [0, 2], sizes = [32, 64], strides = [1, 1]} : vector<32x78xf32> to vector<32x64xf32>
    %217 = vector.broadcast %15 : vector<32x1xf32> to vector<32x64xf32>
    %218 = arith.mulf %217, %216 : vector<32x64xf32>
    %219 = arith.addf %215, %218 : vector<32x64xf32>
    %220 = vector.extract_strided_slice %208 {offsets = [0, 3], sizes = [32, 64], strides = [1, 1]} : vector<32x78xf32> to vector<32x64xf32>
    %221 = vector.broadcast %16 : vector<32x1xf32> to vector<32x64xf32>
    %222 = arith.mulf %221, %220 : vector<32x64xf32>
    %223 = arith.addf %219, %222 : vector<32x64xf32>
    %224 = vector.extract_strided_slice %208 {offsets = [0, 4], sizes = [32, 64], strides = [1, 1]} : vector<32x78xf32> to vector<32x64xf32>
    %225 = vector.broadcast %17 : vector<32x1xf32> to vector<32x64xf32>
    %226 = arith.mulf %225, %224 : vector<32x64xf32>
    %227 = arith.addf %223, %226 : vector<32x64xf32>
    %228 = vector.extract_strided_slice %208 {offsets = [0, 5], sizes = [32, 64], strides = [1, 1]} : vector<32x78xf32> to vector<32x64xf32>
    %229 = vector.broadcast %18 : vector<32x1xf32> to vector<32x64xf32>
    %230 = arith.mulf %229, %228 : vector<32x64xf32>
    %231 = arith.addf %227, %230 : vector<32x64xf32>
    %232 = vector.extract_strided_slice %208 {offsets = [0, 6], sizes = [32, 64], strides = [1, 1]} : vector<32x78xf32> to vector<32x64xf32>
    %233 = vector.broadcast %19 : vector<32x1xf32> to vector<32x64xf32>
    %234 = arith.mulf %233, %232 : vector<32x64xf32>
    %235 = arith.addf %231, %234 : vector<32x64xf32>
    %236 = vector.extract_strided_slice %208 {offsets = [0, 7], sizes = [32, 64], strides = [1, 1]} : vector<32x78xf32> to vector<32x64xf32>
    %237 = vector.broadcast %20 : vector<32x1xf32> to vector<32x64xf32>
    %238 = arith.mulf %237, %236 : vector<32x64xf32>
    %239 = arith.addf %235, %238 : vector<32x64xf32>
    %240 = vector.extract_strided_slice %208 {offsets = [0, 8], sizes = [32, 64], strides = [1, 1]} : vector<32x78xf32> to vector<32x64xf32>
    %241 = vector.broadcast %21 : vector<32x1xf32> to vector<32x64xf32>
    %242 = arith.mulf %241, %240 : vector<32x64xf32>
    %243 = arith.addf %239, %242 : vector<32x64xf32>
    %244 = vector.extract_strided_slice %208 {offsets = [0, 9], sizes = [32, 64], strides = [1, 1]} : vector<32x78xf32> to vector<32x64xf32>
    %245 = vector.broadcast %22 : vector<32x1xf32> to vector<32x64xf32>
    %246 = arith.mulf %245, %244 : vector<32x64xf32>
    %247 = arith.addf %243, %246 : vector<32x64xf32>
    %248 = vector.extract_strided_slice %208 {offsets = [0, 10], sizes = [32, 64], strides = [1, 1]} : vector<32x78xf32> to vector<32x64xf32>
    %249 = vector.broadcast %23 : vector<32x1xf32> to vector<32x64xf32>
    %250 = arith.mulf %249, %248 : vector<32x64xf32>
    %251 = arith.addf %247, %250 : vector<32x64xf32>
    %252 = vector.extract_strided_slice %208 {offsets = [0, 11], sizes = [32, 64], strides = [1, 1]} : vector<32x78xf32> to vector<32x64xf32>
    %253 = vector.broadcast %24 : vector<32x1xf32> to vector<32x64xf32>
    %254 = arith.mulf %253, %252 : vector<32x64xf32>
    %255 = arith.addf %251, %254 : vector<32x64xf32>
    %256 = vector.extract_strided_slice %208 {offsets = [0, 12], sizes = [32, 64], strides = [1, 1]} : vector<32x78xf32> to vector<32x64xf32>
    %257 = vector.broadcast %25 : vector<32x1xf32> to vector<32x64xf32>
    %258 = arith.mulf %257, %256 : vector<32x64xf32>
    %259 = arith.addf %255, %258 : vector<32x64xf32>
    %260 = vector.extract_strided_slice %208 {offsets = [0, 13], sizes = [32, 64], strides = [1, 1]} : vector<32x78xf32> to vector<32x64xf32>
    %261 = vector.broadcast %26 : vector<32x1xf32> to vector<32x64xf32>
    %262 = arith.mulf %261, %260 : vector<32x64xf32>
    %263 = arith.addf %259, %262 : vector<32x64xf32>
    %264 = vector.extract_strided_slice %208 {offsets = [0, 14], sizes = [32, 64], strides = [1, 1]} : vector<32x78xf32> to vector<32x64xf32>
    %265 = vector.broadcast %27 : vector<32x1xf32> to vector<32x64xf32>
    %266 = arith.mulf %265, %264 : vector<32x64xf32>
    %267 = arith.addf %263, %266 : vector<32x64xf32>
    %268 = vector.broadcast %28 : vector<32x1xf32> to vector<32x64xf32>
    %269 = arith.addf %267, %268 : vector<32x64xf32>
    %cst_107 = arith.constant 0.000000e+00 : f32
    %270 = vector.broadcast %cst_107 : f32 to vector<32x64xf32>
    %271 = arith.maximumf %269, %270 : vector<32x64xf32>
    %cst_108 = arith.constant dense<0.000000e+00> : vector<32x64xf32>
    %272 = tpu.matmul %271, %31, %cst_108 {dimension_numbers = #tpu.dot_dimension_numbers<[1], [0], [0], [1], [0, 0, 1, 1], [], []>} : vector<32x64xf32>, vector<64x64xf32>, vector<32x64xf32> -> vector<32x64xf32>
    %cst_109 = arith.constant dense<0.000000e+00> : vector<32x64xf32>
    %273 = tpu.matmul %29, %272, %cst_109 {dimension_numbers = #tpu.dot_dimension_numbers<[1], [0], [0], [1], [0, 0, 1, 1], [], []>} : vector<32x32xf32>, vector<32x64xf32>, vector<32x64xf32> -> vector<32x64xf32>
    %274 = vector.broadcast %30 : vector<32x1xf32> to vector<32x64xf32>
    %275 = arith.addf %273, %274 : vector<32x64xf32>
    %cst_110 = arith.constant 1.000000e+00 : f32
    %276 = vector.broadcast %cst_110 : f32 to vector<32x64xf32>
    %277 = arith.mulf %275, %276 : vector<32x64xf32>
    %cst_111 = arith.constant dense<0xFF800000> : vector<64xf32>
    %278 = vector.multi_reduction <maximumf>, %277, %cst_111 [0] : vector<32x64xf32> to vector<64xf32>
    %279 = vector.shape_cast %278 : vector<64xf32> to vector<1x64xf32>
    %280 = vector.broadcast %279 : vector<1x64xf32> to vector<32x64xf32>
    %281 = arith.subf %277, %280 : vector<32x64xf32>
    %282 = math.exp %281 : vector<32x64xf32>
    %cst_112 = arith.constant dense<0.000000e+00> : vector<64xf32>
    %283 = vector.multi_reduction <add>, %282, %cst_112 [0] : vector<32x64xf32> to vector<64xf32>
    %284 = vector.shape_cast %283 : vector<64xf32> to vector<1x64xf32>
    %285 = tpu.reciprocal %284 {approx = true} : vector<1x64xf32> -> vector<1x64xf32>
    %286 = vector.broadcast %285 : vector<1x64xf32> to vector<32x64xf32>
    %287 = arith.mulf %282, %286 : vector<32x64xf32>
    %cst_113 = arith.constant 0.000000e+00 : f32
    %288 = vector.broadcast %cst_113 : f32 to vector<32x64xf32>
    %289 = arith.maximumf %206, %288 : vector<32x64xf32>
    %290 = arith.mulf %287, %289 : vector<32x64xf32>
    %c0_114 = arith.constant 0 : index
    %c0_115 = arith.constant 0 : index
    %291 = vector.load %arg11[%c0_114, %c0_115] : memref<16x64xf32, #tpu.memory_space<vmem>>, vector<16x64xf32>
    "tpu.trace_start"() <{level = 10 : i32, message = "qt,ct->qc"}> : () -> ()
    %cst_116 = arith.constant dense<0.000000e+00> : vector<16x32xf32>
    %292 = tpu.matmul %291, %290, %cst_116 {dimension_numbers = #tpu.dot_dimension_numbers<[1], [1], [0], [0], [0, 0, 1, 0], [], []>} : vector<16x64xf32>, vector<32x64xf32>, vector<16x32xf32> -> vector<16x32xf32>
    "tpu.trace_stop"() : () -> ()
    %c0_117 = arith.constant 0 : index
    %c2_118 = arith.constant 2 : index
    %293 = vector.load %arg19[%c0_117, %c2_118] : memref<8x68xf32, #tpu.memory_space<vmem>>, vector<8x64xf32>
    tpu.vector_store %arg19[%c0_117, %c2_118], %63 {strides = array<i32>} : memref<8x68xf32, #tpu.memory_space<vmem>>, vector<8x64xf32>,
    %c0_119 = arith.constant 0 : index
    %c0_120 = arith.constant 0 : index
    %294 = vector.load %arg19[%c0_119, %c0_120] : memref<8x68xf32, #tpu.memory_space<vmem>>, vector<8x68xf32>
    %c0_121 = arith.constant 0 : index
    %c0_122 = arith.constant 0 : index
    %295 = memref.load %arg2[%c0_121, %c0_122] : memref<4x5xf32, #tpu.memory_space<smem>>
    %296 = vector.extract_strided_slice %294 {offsets = [0, 0], sizes = [8, 64], strides = [1, 1]} : vector<8x68xf32> to vector<8x64xf32>
    %297 = vector.broadcast %295 : f32 to vector<8x64xf32>
    %298 = arith.mulf %297, %296 : vector<8x64xf32>
    %c0_123 = arith.constant 0 : index
    %c1_124 = arith.constant 1 : index
    %299 = memref.load %arg2[%c0_123, %c1_124] : memref<4x5xf32, #tpu.memory_space<smem>>
    %300 = vector.extract_strided_slice %294 {offsets = [0, 1], sizes = [8, 64], strides = [1, 1]} : vector<8x68xf32> to vector<8x64xf32>
    %301 = vector.broadcast %299 : f32 to vector<8x64xf32>
    %302 = arith.mulf %301, %300 : vector<8x64xf32>
    %303 = arith.addf %298, %302 : vector<8x64xf32>
    %c0_125 = arith.constant 0 : index
    %c2_126 = arith.constant 2 : index
    %304 = memref.load %arg2[%c0_125, %c2_126] : memref<4x5xf32, #tpu.memory_space<smem>>
    %305 = vector.extract_strided_slice %294 {offsets = [0, 2], sizes = [8, 64], strides = [1, 1]} : vector<8x68xf32> to vector<8x64xf32>
    %306 = vector.broadcast %304 : f32 to vector<8x64xf32>
    %307 = arith.mulf %306, %305 : vector<8x64xf32>
    %308 = arith.addf %303, %307 : vector<8x64xf32>
    %c0_127 = arith.constant 0 : index
    %c3_128 = arith.constant 3 : index
    %309 = memref.load %arg2[%c0_127, %c3_128] : memref<4x5xf32, #tpu.memory_space<smem>>
    %310 = vector.extract_strided_slice %294 {offsets = [0, 3], sizes = [8, 64], strides = [1, 1]} : vector<8x68xf32> to vector<8x64xf32>
    %311 = vector.broadcast %309 : f32 to vector<8x64xf32>
    %312 = arith.mulf %311, %310 : vector<8x64xf32>
    %313 = arith.addf %308, %312 : vector<8x64xf32>
    %c0_129 = arith.constant 0 : index
    %c4_130 = arith.constant 4 : index
    %314 = memref.load %arg2[%c0_129, %c4_130] : memref<4x5xf32, #tpu.memory_space<smem>>
    %315 = vector.extract_strided_slice %294 {offsets = [0, 4], sizes = [8, 64], strides = [1, 1]} : vector<8x68xf32> to vector<8x64xf32>
    %316 = vector.broadcast %314 : f32 to vector<8x64xf32>
    %317 = arith.mulf %316, %315 : vector<8x64xf32>
    %318 = arith.addf %313, %317 : vector<8x64xf32>
    %c0_131 = arith.constant 0 : index
    %319 = memref.load %arg3[%c0_131] : memref<4xf32, #tpu.memory_space<smem>>
    %320 = vector.broadcast %319 : f32 to vector<8x64xf32>
    %321 = arith.addf %318, %320 : vector<8x64xf32>
    %c0_132 = arith.constant 0 : index
    %c12_133 = arith.constant 12 : index
    %322 = vector.load %arg20[%c0_132, %c12_133] : memref<32x88xf32, #tpu.memory_space<vmem>>, vector<8x64xf32>
    tpu.vector_store %arg20[%c0_132, %c12_133], %321 {strides = array<i32>} : memref<32x88xf32, #tpu.memory_space<vmem>>, vector<8x64xf32>,
    %c1_134 = arith.constant 1 : index
    %c0_135 = arith.constant 0 : index
    %323 = memref.load %arg2[%c1_134, %c0_135] : memref<4x5xf32, #tpu.memory_space<smem>>
    %324 = vector.extract_strided_slice %294 {offsets = [0, 0], sizes = [8, 64], strides = [1, 1]} : vector<8x68xf32> to vector<8x64xf32>
    %325 = vector.broadcast %323 : f32 to vector<8x64xf32>
    %326 = arith.mulf %325, %324 : vector<8x64xf32>
    %c1_136 = arith.constant 1 : index
    %c1_137 = arith.constant 1 : index
    %327 = memref.load %arg2[%c1_136, %c1_137] : memref<4x5xf32, #tpu.memory_space<smem>>
    %328 = vector.extract_strided_slice %294 {offsets = [0, 1], sizes = [8, 64], strides = [1, 1]} : vector<8x68xf32> to vector<8x64xf32>
    %329 = vector.broadcast %327 : f32 to vector<8x64xf32>
    %330 = arith.mulf %329, %328 : vector<8x64xf32>
    %331 = arith.addf %326, %330 : vector<8x64xf32>
    %c1_138 = arith.constant 1 : index
    %c2_139 = arith.constant 2 : index
    %332 = memref.load %arg2[%c1_138, %c2_139] : memref<4x5xf32, #tpu.memory_space<smem>>
    %333 = vector.extract_strided_slice %294 {offsets = [0, 2], sizes = [8, 64], strides = [1, 1]} : vector<8x68xf32> to vector<8x64xf32>
    %334 = vector.broadcast %332 : f32 to vector<8x64xf32>
    %335 = arith.mulf %334, %333 : vector<8x64xf32>
    %336 = arith.addf %331, %335 : vector<8x64xf32>
    %c1_140 = arith.constant 1 : index
    %c3_141 = arith.constant 3 : index
    %337 = memref.load %arg2[%c1_140, %c3_141] : memref<4x5xf32, #tpu.memory_space<smem>>
    %338 = vector.extract_strided_slice %294 {offsets = [0, 3], sizes = [8, 64], strides = [1, 1]} : vector<8x68xf32> to vector<8x64xf32>
    %339 = vector.broadcast %337 : f32 to vector<8x64xf32>
    %340 = arith.mulf %339, %338 : vector<8x64xf32>
    %341 = arith.addf %336, %340 : vector<8x64xf32>
    %c1_142 = arith.constant 1 : index
    %c4_143 = arith.constant 4 : index
    %342 = memref.load %arg2[%c1_142, %c4_143] : memref<4x5xf32, #tpu.memory_space<smem>>
    %343 = vector.extract_strided_slice %294 {offsets = [0, 4], sizes = [8, 64], strides = [1, 1]} : vector<8x68xf32> to vector<8x64xf32>
    %344 = vector.broadcast %342 : f32 to vector<8x64xf32>
    %345 = arith.mulf %344, %343 : vector<8x64xf32>
    %346 = arith.addf %341, %345 : vector<8x64xf32>
    %c1_144 = arith.constant 1 : index
    %347 = memref.load %arg3[%c1_144] : memref<4xf32, #tpu.memory_space<smem>>
    %348 = vector.broadcast %347 : f32 to vector<8x64xf32>
    %349 = arith.addf %346, %348 : vector<8x64xf32>
    %c8_145 = arith.constant 8 : index
    %c12_146 = arith.constant 12 : index
    %350 = vector.load %arg20[%c8_145, %c12_146] : memref<32x88xf32, #tpu.memory_space<vmem>>, vector<8x64xf32>
    tpu.vector_store %arg20[%c8_145, %c12_146], %349 {strides = array<i32>} : memref<32x88xf32, #tpu.memory_space<vmem>>, vector<8x64xf32>,
    %c2_147 = arith.constant 2 : index
    %c0_148 = arith.constant 0 : index
    %351 = memref.load %arg2[%c2_147, %c0_148] : memref<4x5xf32, #tpu.memory_space<smem>>
    %352 = vector.extract_strided_slice %294 {offsets = [0, 0], sizes = [8, 64], strides = [1, 1]} : vector<8x68xf32> to vector<8x64xf32>
    %353 = vector.broadcast %351 : f32 to vector<8x64xf32>
    %354 = arith.mulf %353, %352 : vector<8x64xf32>
    %c2_149 = arith.constant 2 : index
    %c1_150 = arith.constant 1 : index
    %355 = memref.load %arg2[%c2_149, %c1_150] : memref<4x5xf32, #tpu.memory_space<smem>>
    %356 = vector.extract_strided_slice %294 {offsets = [0, 1], sizes = [8, 64], strides = [1, 1]} : vector<8x68xf32> to vector<8x64xf32>
    %357 = vector.broadcast %355 : f32 to vector<8x64xf32>
    %358 = arith.mulf %357, %356 : vector<8x64xf32>
    %359 = arith.addf %354, %358 : vector<8x64xf32>
    %c2_151 = arith.constant 2 : index
    %c2_152 = arith.constant 2 : index
    %360 = memref.load %arg2[%c2_151, %c2_152] : memref<4x5xf32, #tpu.memory_space<smem>>
    %361 = vector.extract_strided_slice %294 {offsets = [0, 2], sizes = [8, 64], strides = [1, 1]} : vector<8x68xf32> to vector<8x64xf32>
    %362 = vector.broadcast %360 : f32 to vector<8x64xf32>
    %363 = arith.mulf %362, %361 : vector<8x64xf32>
    %364 = arith.addf %359, %363 : vector<8x64xf32>
    %c2_153 = arith.constant 2 : index
    %c3_154 = arith.constant 3 : index
    %365 = memref.load %arg2[%c2_153, %c3_154] : memref<4x5xf32, #tpu.memory_space<smem>>
    %366 = vector.extract_strided_slice %294 {offsets = [0, 3], sizes = [8, 64], strides = [1, 1]} : vector<8x68xf32> to vector<8x64xf32>
    %367 = vector.broadcast %365 : f32 to vector<8x64xf32>
    %368 = arith.mulf %367, %366 : vector<8x64xf32>
    %369 = arith.addf %364, %368 : vector<8x64xf32>
    %c2_155 = arith.constant 2 : index
    %c4_156 = arith.constant 4 : index
    %370 = memref.load %arg2[%c2_155, %c4_156] : memref<4x5xf32, #tpu.memory_space<smem>>
    %371 = vector.extract_strided_slice %294 {offsets = [0, 4], sizes = [8, 64], strides = [1, 1]} : vector<8x68xf32> to vector<8x64xf32>
    %372 = vector.broadcast %370 : f32 to vector<8x64xf32>
    %373 = arith.mulf %372, %371 : vector<8x64xf32>
    %374 = arith.addf %369, %373 : vector<8x64xf32>
    %c2_157 = arith.constant 2 : index
    %375 = memref.load %arg3[%c2_157] : memref<4xf32, #tpu.memory_space<smem>>
    %376 = vector.broadcast %375 : f32 to vector<8x64xf32>
    %377 = arith.addf %374, %376 : vector<8x64xf32>
    %c16_158 = arith.constant 16 : index
    %c12_159 = arith.constant 12 : index
    %378 = vector.load %arg20[%c16_158, %c12_159] : memref<32x88xf32, #tpu.memory_space<vmem>>, vector<8x64xf32>
    tpu.vector_store %arg20[%c16_158, %c12_159], %377 {strides = array<i32>} : memref<32x88xf32, #tpu.memory_space<vmem>>, vector<8x64xf32>,
    %c3_160 = arith.constant 3 : index
    %c0_161 = arith.constant 0 : index
    %379 = memref.load %arg2[%c3_160, %c0_161] : memref<4x5xf32, #tpu.memory_space<smem>>
    %380 = vector.extract_strided_slice %294 {offsets = [0, 0], sizes = [8, 64], strides = [1, 1]} : vector<8x68xf32> to vector<8x64xf32>
    %381 = vector.broadcast %379 : f32 to vector<8x64xf32>
    %382 = arith.mulf %381, %380 : vector<8x64xf32>
    %c3_162 = arith.constant 3 : index
    %c1_163 = arith.constant 1 : index
    %383 = memref.load %arg2[%c3_162, %c1_163] : memref<4x5xf32, #tpu.memory_space<smem>>
    %384 = vector.extract_strided_slice %294 {offsets = [0, 1], sizes = [8, 64], strides = [1, 1]} : vector<8x68xf32> to vector<8x64xf32>
    %385 = vector.broadcast %383 : f32 to vector<8x64xf32>
    %386 = arith.mulf %385, %384 : vector<8x64xf32>
    %387 = arith.addf %382, %386 : vector<8x64xf32>
    %c3_164 = arith.constant 3 : index
    %c2_165 = arith.constant 2 : index
    %388 = memref.load %arg2[%c3_164, %c2_165] : memref<4x5xf32, #tpu.memory_space<smem>>
    %389 = vector.extract_strided_slice %294 {offsets = [0, 2], sizes = [8, 64], strides = [1, 1]} : vector<8x68xf32> to vector<8x64xf32>
    %390 = vector.broadcast %388 : f32 to vector<8x64xf32>
    %391 = arith.mulf %390, %389 : vector<8x64xf32>
    %392 = arith.addf %387, %391 : vector<8x64xf32>
    %c3_166 = arith.constant 3 : index
    %c3_167 = arith.constant 3 : index
    %393 = memref.load %arg2[%c3_166, %c3_167] : memref<4x5xf32, #tpu.memory_space<smem>>
    %394 = vector.extract_strided_slice %294 {offsets = [0, 3], sizes = [8, 64], strides = [1, 1]} : vector<8x68xf32> to vector<8x64xf32>
    %395 = vector.broadcast %393 : f32 to vector<8x64xf32>
    %396 = arith.mulf %395, %394 : vector<8x64xf32>
    %397 = arith.addf %392, %396 : vector<8x64xf32>
    %c3_168 = arith.constant 3 : index
    %c4_169 = arith.constant 4 : index
    %398 = memref.load %arg2[%c3_168, %c4_169] : memref<4x5xf32, #tpu.memory_space<smem>>
    %399 = vector.extract_strided_slice %294 {offsets = [0, 4], sizes = [8, 64], strides = [1, 1]} : vector<8x68xf32> to vector<8x64xf32>
    %400 = vector.broadcast %398 : f32 to vector<8x64xf32>
    %401 = arith.mulf %400, %399 : vector<8x64xf32>
    %402 = arith.addf %397, %401 : vector<8x64xf32>
    %c3_170 = arith.constant 3 : index
    %403 = memref.load %arg3[%c3_170] : memref<4xf32, #tpu.memory_space<smem>>
    %404 = vector.broadcast %403 : f32 to vector<8x64xf32>
    %405 = arith.addf %402, %404 : vector<8x64xf32>
    %c24_171 = arith.constant 24 : index
    %c12_172 = arith.constant 12 : index
    %406 = vector.load %arg20[%c24_171, %c12_172] : memref<32x88xf32, #tpu.memory_space<vmem>>, vector<8x64xf32>
    tpu.vector_store %arg20[%c24_171, %c12_172], %405 {strides = array<i32>} : memref<32x88xf32, #tpu.memory_space<vmem>>, vector<8x64xf32>,
    %c0_173 = arith.constant 0 : index
    %c0_174 = arith.constant 0 : index
    %407 = vector.load %arg20[%c0_173, %c0_174] : memref<32x88xf32, #tpu.memory_space<vmem>>, vector<32x88xf32>
    %408 = vector.extract_strided_slice %407 {offsets = [0, 11], sizes = [32, 64], strides = [1, 1]} : vector<32x88xf32> to vector<32x64xf32>
    %c0_175 = arith.constant 0 : index
    %c0_176 = arith.constant 0 : index
    %409 = vector.load %arg21[%c0_175, %c0_176] : memref<384x64xf32, #tpu.memory_space<vmem>>, vector<32x64xf32>
    tpu.vector_store %arg21[%c0_175, %c0_176], %408 {strides = array<i32>} : memref<384x64xf32, #tpu.memory_space<vmem>>, vector<32x64xf32>,
    %410 = vector.extract_strided_slice %407 {offsets = [0, 12], sizes = [32, 64], strides = [1, 1]} : vector<32x88xf32> to vector<32x64xf32>
    %c32_177 = arith.constant 32 : index
    %c0_178 = arith.constant 0 : index
    %411 = vector.load %arg21[%c32_177, %c0_178] : memref<384x64xf32, #tpu.memory_space<vmem>>, vector<32x64xf32>
    tpu.vector_store %arg21[%c32_177, %c0_178], %410 {strides = array<i32>} : memref<384x64xf32, #tpu.memory_space<vmem>>, vector<32x64xf32>,
    %412 = vector.extract_strided_slice %407 {offsets = [0, 13], sizes = [32, 64], strides = [1, 1]} : vector<32x88xf32> to vector<32x64xf32>
    %c64_179 = arith.constant 64 : index
    %c0_180 = arith.constant 0 : index
    %413 = vector.load %arg21[%c64_179, %c0_180] : memref<384x64xf32, #tpu.memory_space<vmem>>, vector<32x64xf32>
    tpu.vector_store %arg21[%c64_179, %c0_180], %412 {strides = array<i32>} : memref<384x64xf32, #tpu.memory_space<vmem>>, vector<32x64xf32>,
    %414 = vector.extract_strided_slice %407 {offsets = [0, 9], sizes = [32, 64], strides = [1, 1]} : vector<32x88xf32> to vector<32x64xf32>
    %c96_181 = arith.constant 96 : index
    %c0_182 = arith.constant 0 : index
    %415 = vector.load %arg21[%c96_181, %c0_182] : memref<384x64xf32, #tpu.memory_space<vmem>>, vector<32x64xf32>
    tpu.vector_store %arg21[%c96_181, %c0_182], %414 {strides = array<i32>} : memref<384x64xf32, #tpu.memory_space<vmem>>, vector<32x64xf32>,
    %416 = vector.extract_strided_slice %407 {offsets = [0, 12], sizes = [32, 64], strides = [1, 1]} : vector<32x88xf32> to vector<32x64xf32>
    %c128_183 = arith.constant 128 : index
    %c0_184 = arith.constant 0 : index
    %417 = vector.load %arg21[%c128_183, %c0_184] : memref<384x64xf32, #tpu.memory_space<vmem>>, vector<32x64xf32>
    tpu.vector_store %arg21[%c128_183, %c0_184], %416 {strides = array<i32>} : memref<384x64xf32, #tpu.memory_space<vmem>>, vector<32x64xf32>,
    %418 = vector.extract_strided_slice %407 {offsets = [0, 15], sizes = [32, 64], strides = [1, 1]} : vector<32x88xf32> to vector<32x64xf32>
    %c160_185 = arith.constant 160 : index
    %c0_186 = arith.constant 0 : index
    %419 = vector.load %arg21[%c160_185, %c0_186] : memref<384x64xf32, #tpu.memory_space<vmem>>, vector<32x64xf32>
    tpu.vector_store %arg21[%c160_185, %c0_186], %418 {strides = array<i32>} : memref<384x64xf32, #tpu.memory_space<vmem>>, vector<32x64xf32>,
    %420 = vector.extract_strided_slice %407 {offsets = [0, 6], sizes = [32, 64], strides = [1, 1]} : vector<32x88xf32> to vector<32x64xf32>
    %c192_187 = arith.constant 192 : index
    %c0_188 = arith.constant 0 : index
    %421 = vector.load %arg21[%c192_187, %c0_188] : memref<384x64xf32, #tpu.memory_space<vmem>>, vector<32x64xf32>
    tpu.vector_store %arg21[%c192_187, %c0_188], %420 {strides = array<i32>} : memref<384x64xf32, #tpu.memory_space<vmem>>, vector<32x64xf32>,
    %422 = vector.extract_strided_slice %407 {offsets = [0, 12], sizes = [32, 64], strides = [1, 1]} : vector<32x88xf32> to vector<32x64xf32>
    %c224_189 = arith.constant 224 : index
    %c0_190 = arith.constant 0 : index
    %423 = vector.load %arg21[%c224_189, %c0_190] : memref<384x64xf32, #tpu.memory_space<vmem>>, vector<32x64xf32>
    tpu.vector_store %arg21[%c224_189, %c0_190], %422 {strides = array<i32>} : memref<384x64xf32, #tpu.memory_space<vmem>>, vector<32x64xf32>,
    %424 = vector.extract_strided_slice %407 {offsets = [0, 18], sizes = [32, 64], strides = [1, 1]} : vector<32x88xf32> to vector<32x64xf32>
    %c256_191 = arith.constant 256 : index
    %c0_192 = arith.constant 0 : index
    %425 = vector.load %arg21[%c256_191, %c0_192] : memref<384x64xf32, #tpu.memory_space<vmem>>, vector<32x64xf32>
    tpu.vector_store %arg21[%c256_191, %c0_192], %424 {strides = array<i32>} : memref<384x64xf32, #tpu.memory_space<vmem>>, vector<32x64xf32>,
    %426 = vector.extract_strided_slice %407 {offsets = [0, 0], sizes = [32, 64], strides = [1, 1]} : vector<32x88xf32> to vector<32x64xf32>
    %c288_193 = arith.constant 288 : index
    %c0_194 = arith.constant 0 : index
    %427 = vector.load %arg21[%c288_193, %c0_194] : memref<384x64xf32, #tpu.memory_space<vmem>>, vector<32x64xf32>
    tpu.vector_store %arg21[%c288_193, %c0_194], %426 {strides = array<i32>} : memref<384x64xf32, #tpu.memory_space<vmem>>, vector<32x64xf32>,
    %428 = vector.extract_strided_slice %407 {offsets = [0, 12], sizes = [32, 64], strides = [1, 1]} : vector<32x88xf32> to vector<32x64xf32>
    %c320_195 = arith.constant 320 : index
    %c0_196 = arith.constant 0 : index
    %429 = vector.load %arg21[%c320_195, %c0_196] : memref<384x64xf32, #tpu.memory_space<vmem>>, vector<32x64xf32>
    tpu.vector_store %arg21[%c320_195, %c0_196], %428 {strides = array<i32>} : memref<384x64xf32, #tpu.memory_space<vmem>>, vector<32x64xf32>,
    %430 = vector.extract_strided_slice %407 {offsets = [0, 24], sizes = [32, 64], strides = [1, 1]} : vector<32x88xf32> to vector<32x64xf32>
    %c352_197 = arith.constant 352 : index
    %c0_198 = arith.constant 0 : index
    %431 = vector.load %arg21[%c352_197, %c0_198] : memref<384x64xf32, #tpu.memory_space<vmem>>, vector<32x64xf32>
    tpu.vector_store %arg21[%c352_197, %c0_198], %430 {strides = array<i32>} : memref<384x64xf32, #tpu.memory_space<vmem>>, vector<32x64xf32>,
    %c0_199 = arith.constant 0 : index
    %c0_200 = arith.constant 0 : index
    %432 = vector.load %arg21[%c0_199, %c0_200] : memref<384x64xf32, #tpu.memory_space<vmem>>, vector<384x64xf32>
    %cst_201 = arith.constant dense<0.000000e+00> : vector<32x64xf32>
    %433 = tpu.matmul %10, %432, %cst_201 {dimension_numbers = #tpu.dot_dimension_numbers<[1], [0], [0], [1], [0, 0, 1, 1], [], []>} : vector<32x384xf32>, vector<384x64xf32>, vector<32x64xf32> -> vector<32x64xf32>
    %434 = vector.broadcast %11 : vector<32x1xf32> to vector<32x64xf32>
    %435 = arith.addf %433, %434 : vector<32x64xf32>
    %c0_202 = arith.constant 0 : index
    %c14_203 = arith.constant 14 : index
    %436 = vector.load %arg22[%c0_202, %c14_203] : memref<32x78xf32, #tpu.memory_space<vmem>>, vector<32x64xf32>
    tpu.vector_store %arg22[%c0_202, %c14_203], %435 {strides = array<i32>} : memref<32x78xf32, #tpu.memory_space<vmem>>, vector<32x64xf32>,
    %c0_204 = arith.constant 0 : index
    %c0_205 = arith.constant 0 : index
    %437 = vector.load %arg22[%c0_204, %c0_205] : memref<32x78xf32, #tpu.memory_space<vmem>>, vector<32x78xf32>
    %438 = vector.extract_strided_slice %437 {offsets = [0, 0], sizes = [32, 64], strides = [1, 1]} : vector<32x78xf32> to vector<32x64xf32>
    %439 = vector.broadcast %13 : vector<32x1xf32> to vector<32x64xf32>
    %440 = arith.mulf %439, %438 : vector<32x64xf32>
    %441 = vector.extract_strided_slice %437 {offsets = [0, 1], sizes = [32, 64], strides = [1, 1]} : vector<32x78xf32> to vector<32x64xf32>
    %442 = vector.broadcast %14 : vector<32x1xf32> to vector<32x64xf32>
    %443 = arith.mulf %442, %441 : vector<32x64xf32>
    %444 = arith.addf %440, %443 : vector<32x64xf32>
    %445 = vector.extract_strided_slice %437 {offsets = [0, 2], sizes = [32, 64], strides = [1, 1]} : vector<32x78xf32> to vector<32x64xf32>
    %446 = vector.broadcast %15 : vector<32x1xf32> to vector<32x64xf32>
    %447 = arith.mulf %446, %445 : vector<32x64xf32>
    %448 = arith.addf %444, %447 : vector<32x64xf32>
    %449 = vector.extract_strided_slice %437 {offsets = [0, 3], sizes = [32, 64], strides = [1, 1]} : vector<32x78xf32> to vector<32x64xf32>
    %450 = vector.broadcast %16 : vector<32x1xf32> to vector<32x64xf32>
    %451 = arith.mulf %450, %449 : vector<32x64xf32>
    %452 = arith.addf %448, %451 : vector<32x64xf32>
    %453 = vector.extract_strided_slice %437 {offsets = [0, 4], sizes = [32, 64], strides = [1, 1]} : vector<32x78xf32> to vector<32x64xf32>
    %454 = vector.broadcast %17 : vector<32x1xf32> to vector<32x64xf32>
    %455 = arith.mulf %454, %453 : vector<32x64xf32>
    %456 = arith.addf %452, %455 : vector<32x64xf32>
    %457 = vector.extract_strided_slice %437 {offsets = [0, 5], sizes = [32, 64], strides = [1, 1]} : vector<32x78xf32> to vector<32x64xf32>
    %458 = vector.broadcast %18 : vector<32x1xf32> to vector<32x64xf32>
    %459 = arith.mulf %458, %457 : vector<32x64xf32>
    %460 = arith.addf %456, %459 : vector<32x64xf32>
    %461 = vector.extract_strided_slice %437 {offsets = [0, 6], sizes = [32, 64], strides = [1, 1]} : vector<32x78xf32> to vector<32x64xf32>
    %462 = vector.broadcast %19 : vector<32x1xf32> to vector<32x64xf32>
    %463 = arith.mulf %462, %461 : vector<32x64xf32>
    %464 = arith.addf %460, %463 : vector<32x64xf32>
    %465 = vector.extract_strided_slice %437 {offsets = [0, 7], sizes = [32, 64], strides = [1, 1]} : vector<32x78xf32> to vector<32x64xf32>
    %466 = vector.broadcast %20 : vector<32x1xf32> to vector<32x64xf32>
    %467 = arith.mulf %466, %465 : vector<32x64xf32>
    %468 = arith.addf %464, %467 : vector<32x64xf32>
    %469 = vector.extract_strided_slice %437 {offsets = [0, 8], sizes = [32, 64], strides = [1, 1]} : vector<32x78xf32> to vector<32x64xf32>
    %470 = vector.broadcast %21 : vector<32x1xf32> to vector<32x64xf32>
    %471 = arith.mulf %470, %469 : vector<32x64xf32>
    %472 = arith.addf %468, %471 : vector<32x64xf32>
    %473 = vector.extract_strided_slice %437 {offsets = [0, 9], sizes = [32, 64], strides = [1, 1]} : vector<32x78xf32> to vector<32x64xf32>
    %474 = vector.broadcast %22 : vector<32x1xf32> to vector<32x64xf32>
    %475 = arith.mulf %474, %473 : vector<32x64xf32>
    %476 = arith.addf %472, %475 : vector<32x64xf32>
    %477 = vector.extract_strided_slice %437 {offsets = [0, 10], sizes = [32, 64], strides = [1, 1]} : vector<32x78xf32> to vector<32x64xf32>
    %478 = vector.broadcast %23 : vector<32x1xf32> to vector<32x64xf32>
    %479 = arith.mulf %478, %477 : vector<32x64xf32>
    %480 = arith.addf %476, %479 : vector<32x64xf32>
    %481 = vector.extract_strided_slice %437 {offsets = [0, 11], sizes = [32, 64], strides = [1, 1]} : vector<32x78xf32> to vector<32x64xf32>
    %482 = vector.broadcast %24 : vector<32x1xf32> to vector<32x64xf32>
    %483 = arith.mulf %482, %481 : vector<32x64xf32>
    %484 = arith.addf %480, %483 : vector<32x64xf32>
    %485 = vector.extract_strided_slice %437 {offsets = [0, 12], sizes = [32, 64], strides = [1, 1]} : vector<32x78xf32> to vector<32x64xf32>
    %486 = vector.broadcast %25 : vector<32x1xf32> to vector<32x64xf32>
    %487 = arith.mulf %486, %485 : vector<32x64xf32>
    %488 = arith.addf %484, %487 : vector<32x64xf32>
    %489 = vector.extract_strided_slice %437 {offsets = [0, 13], sizes = [32, 64], strides = [1, 1]} : vector<32x78xf32> to vector<32x64xf32>
    %490 = vector.broadcast %26 : vector<32x1xf32> to vector<32x64xf32>
    %491 = arith.mulf %490, %489 : vector<32x64xf32>
    %492 = arith.addf %488, %491 : vector<32x64xf32>
    %493 = vector.extract_strided_slice %437 {offsets = [0, 14], sizes = [32, 64], strides = [1, 1]} : vector<32x78xf32> to vector<32x64xf32>
    %494 = vector.broadcast %27 : vector<32x1xf32> to vector<32x64xf32>
    %495 = arith.mulf %494, %493 : vector<32x64xf32>
    %496 = arith.addf %492, %495 : vector<32x64xf32>
    %497 = vector.broadcast %28 : vector<32x1xf32> to vector<32x64xf32>
    %498 = arith.addf %496, %497 : vector<32x64xf32>
    %cst_206 = arith.constant 0.000000e+00 : f32
    %499 = vector.broadcast %cst_206 : f32 to vector<32x64xf32>
    %500 = arith.maximumf %498, %499 : vector<32x64xf32>
    %cst_207 = arith.constant dense<0.000000e+00> : vector<32x64xf32>
    %501 = tpu.matmul %500, %31, %cst_207 {dimension_numbers = #tpu.dot_dimension_numbers<[1], [0], [0], [1], [0, 0, 1, 1], [], []>} : vector<32x64xf32>, vector<64x64xf32>, vector<32x64xf32> -> vector<32x64xf32>
    %cst_208 = arith.constant dense<0.000000e+00> : vector<32x64xf32>
    %502 = tpu.matmul %29, %501, %cst_208 {dimension_numbers = #tpu.dot_dimension_numbers<[1], [0], [0], [1], [0, 0, 1, 1], [], []>} : vector<32x32xf32>, vector<32x64xf32>, vector<32x64xf32> -> vector<32x64xf32>
    %503 = vector.broadcast %30 : vector<32x1xf32> to vector<32x64xf32>
    %504 = arith.addf %502, %503 : vector<32x64xf32>
    %cst_209 = arith.constant 1.000000e+00 : f32
    %505 = vector.broadcast %cst_209 : f32 to vector<32x64xf32>
    %506 = arith.mulf %504, %505 : vector<32x64xf32>
    %cst_210 = arith.constant dense<0xFF800000> : vector<64xf32>
    %507 = vector.multi_reduction <maximumf>, %506, %cst_210 [0] : vector<32x64xf32> to vector<64xf32>
    %508 = vector.shape_cast %507 : vector<64xf32> to vector<1x64xf32>
    %509 = vector.broadcast %508 : vector<1x64xf32> to vector<32x64xf32>
    %510 = arith.subf %506, %509 : vector<32x64xf32>
    %511 = math.exp %510 : vector<32x64xf32>
    %cst_211 = arith.constant dense<0.000000e+00> : vector<64xf32>
    %512 = vector.multi_reduction <add>, %511, %cst_211 [0] : vector<32x64xf32> to vector<64xf32>
    %513 = vector.shape_cast %512 : vector<64xf32> to vector<1x64xf32>
    %514 = tpu.reciprocal %513 {approx = true} : vector<1x64xf32> -> vector<1x64xf32>
    %515 = vector.broadcast %514 : vector<1x64xf32> to vector<32x64xf32>
    %516 = arith.mulf %511, %515 : vector<32x64xf32>
    %cst_212 = arith.constant 0.000000e+00 : f32
    %517 = vector.broadcast %cst_212 : f32 to vector<32x64xf32>
    %518 = arith.maximumf %435, %517 : vector<32x64xf32>
    %519 = arith.mulf %516, %518 : vector<32x64xf32>
    %c0_213 = arith.constant 0 : index
    %c0_214 = arith.constant 0 : index
    %520 = vector.load %arg11[%c0_213, %c0_214] : memref<16x64xf32, #tpu.memory_space<vmem>>, vector<16x64xf32>
    "tpu.trace_start"() <{level = 10 : i32, message = "qt,ct->qc"}> : () -> ()
    %cst_215 = arith.constant dense<0.000000e+00> : vector<16x32xf32>
    %521 = tpu.matmul %520, %519, %cst_215 {dimension_numbers = #tpu.dot_dimension_numbers<[1], [1], [0], [0], [0, 0, 1, 0], [], []>} : vector<16x64xf32>, vector<32x64xf32>, vector<16x32xf32> -> vector<16x32xf32>
    "tpu.trace_stop"() : () -> ()
    %c0_216 = arith.constant 0 : index
    %c0_217 = arith.constant 0 : index
    %522 = vector.load %arg12[%c0_216, %c0_217] : memref<32x64xf32, #tpu.memory_space<vmem>>, vector<32x64xf32>
    %c0_218 = arith.constant 0 : index
    %c0_219 = arith.constant 0 : index
    %523 = vector.load %arg13[%c0_218, %c0_219] : memref<3x64xf32, #tpu.memory_space<vmem>>, vector<1x64xf32>
    %c1_220 = arith.constant 1 : index
    %c0_221 = arith.constant 0 : index
    %524 = vector.load %arg13[%c1_220, %c0_221] : memref<3x64xf32, #tpu.memory_space<vmem>>, vector<1x64xf32>
    %c2_222 = arith.constant 2 : index
    %c0_223 = arith.constant 0 : index
    %525 = vector.load %arg13[%c2_222, %c0_223] : memref<3x64xf32, #tpu.memory_space<vmem>>, vector<1x64xf32>
    %c0_224 = arith.constant 0 : index
    %c0_225 = arith.constant 0 : index
    %526 = vector.load %arg14[%c0_224, %c0_225] : memref<1x64xf32, #tpu.memory_space<vmem>>, vector<1x64xf32>
    %c0_226 = arith.constant 0 : index
    %c0_227 = arith.constant 0 : index
    %527 = vector.load %arg15[%c0_226, %c0_227] : memref<64x128xf32, #tpu.memory_space<vmem>>, vector<64x128xf32>
    %c0_228 = arith.constant 0 : index
    %c0_229 = arith.constant 0 : index
    %528 = vector.load %arg16[%c0_228, %c0_229] : memref<3x128xf32, #tpu.memory_space<vmem>>, vector<1x128xf32>
    %c1_230 = arith.constant 1 : index
    %c0_231 = arith.constant 0 : index
    %529 = vector.load %arg16[%c1_230, %c0_231] : memref<3x128xf32, #tpu.memory_space<vmem>>, vector<1x128xf32>
    %c2_232 = arith.constant 2 : index
    %c0_233 = arith.constant 0 : index
    %530 = vector.load %arg16[%c2_232, %c0_233] : memref<3x128xf32, #tpu.memory_space<vmem>>, vector<1x128xf32>
    %c0_234 = arith.constant 0 : index
    %c0_235 = arith.constant 0 : index
    %531 = vector.load %arg17[%c0_234, %c0_235] : memref<1x128xf32, #tpu.memory_space<vmem>>, vector<1x128xf32>
    %cst_236 = arith.constant dense<0.000000e+00> : vector<16x64xf32>
    %532 = tpu.matmul %292, %522, %cst_236 {dimension_numbers = #tpu.dot_dimension_numbers<[1], [0], [0], [1], [0, 0, 1, 1], [], []>} : vector<16x32xf32>, vector<32x64xf32>, vector<16x64xf32> -> vector<16x64xf32>
    %533 = vector.extract_strided_slice %532 {offsets = [0, 0], sizes = [14, 64], strides = [1, 1]} : vector<16x64xf32> to vector<14x64xf32>
    %534 = vector.broadcast %523 : vector<1x64xf32> to vector<14x64xf32>
    %535 = arith.mulf %534, %533 : vector<14x64xf32>
    %536 = vector.extract_strided_slice %532 {offsets = [1, 0], sizes = [14, 64], strides = [1, 1]} : vector<16x64xf32> to vector<14x64xf32>
    %537 = vector.broadcast %524 : vector<1x64xf32> to vector<14x64xf32>
    %538 = arith.mulf %537, %536 : vector<14x64xf32>
    %539 = arith.addf %535, %538 : vector<14x64xf32>
    %540 = vector.extract_strided_slice %532 {offsets = [2, 0], sizes = [14, 64], strides = [1, 1]} : vector<16x64xf32> to vector<14x64xf32>
    %541 = vector.broadcast %525 : vector<1x64xf32> to vector<14x64xf32>
    %542 = arith.mulf %541, %540 : vector<14x64xf32>
    %543 = arith.addf %539, %542 : vector<14x64xf32>
    %544 = vector.broadcast %526 : vector<1x64xf32> to vector<14x64xf32>
    %545 = arith.addf %543, %544 : vector<14x64xf32>
    %cst_237 = arith.constant 0.000000e+00 : f32
    %546 = vector.broadcast %cst_237 : f32 to vector<14x64xf32>
    %547 = arith.maximumf %545, %546 : vector<14x64xf32>
    %cst_238 = arith.constant dense<0.000000e+00> : vector<14x128xf32>
    %548 = tpu.matmul %547, %527, %cst_238 {dimension_numbers = #tpu.dot_dimension_numbers<[1], [0], [0], [1], [0, 0, 1, 1], [], []>} : vector<14x64xf32>, vector<64x128xf32>, vector<14x128xf32> -> vector<14x128xf32>
    %549 = vector.extract_strided_slice %548 {offsets = [0, 0], sizes = [12, 128], strides = [1, 1]} : vector<14x128xf32> to vector<12x128xf32>
    %550 = vector.broadcast %528 : vector<1x128xf32> to vector<12x128xf32>
    %551 = arith.mulf %550, %549 : vector<12x128xf32>
    %552 = vector.extract_strided_slice %548 {offsets = [1, 0], sizes = [12, 128], strides = [1, 1]} : vector<14x128xf32> to vector<12x128xf32>
    %553 = vector.broadcast %529 : vector<1x128xf32> to vector<12x128xf32>
    %554 = arith.mulf %553, %552 : vector<12x128xf32>
    %555 = arith.addf %551, %554 : vector<12x128xf32>
    %556 = vector.extract_strided_slice %548 {offsets = [2, 0], sizes = [12, 128], strides = [1, 1]} : vector<14x128xf32> to vector<12x128xf32>
    %557 = vector.broadcast %530 : vector<1x128xf32> to vector<12x128xf32>
    %558 = arith.mulf %557, %556 : vector<12x128xf32>
    %559 = arith.addf %555, %558 : vector<12x128xf32>
    %560 = vector.broadcast %531 : vector<1x128xf32> to vector<12x128xf32>
    %561 = arith.addf %559, %560 : vector<12x128xf32>
    %cst_239 = arith.constant 0.000000e+00 : f32
    %562 = vector.broadcast %cst_239 : f32 to vector<12x128xf32>
    %563 = arith.maximumf %561, %562 : vector<12x128xf32>
    %cst_240 = arith.constant dense<0.000000e+00> : vector<16x64xf32>
    %564 = tpu.matmul %521, %522, %cst_240 {dimension_numbers = #tpu.dot_dimension_numbers<[1], [0], [0], [1], [0, 0, 1, 1], [], []>} : vector<16x32xf32>, vector<32x64xf32>, vector<16x64xf32> -> vector<16x64xf32>
    %565 = vector.extract_strided_slice %564 {offsets = [0, 0], sizes = [14, 64], strides = [1, 1]} : vector<16x64xf32> to vector<14x64xf32>
    %566 = vector.broadcast %523 : vector<1x64xf32> to vector<14x64xf32>
    %567 = arith.mulf %566, %565 : vector<14x64xf32>
    %568 = vector.extract_strided_slice %564 {offsets = [1, 0], sizes = [14, 64], strides = [1, 1]} : vector<16x64xf32> to vector<14x64xf32>
    %569 = vector.broadcast %524 : vector<1x64xf32> to vector<14x64xf32>
    %570 = arith.mulf %569, %568 : vector<14x64xf32>
    %571 = arith.addf %567, %570 : vector<14x64xf32>
    %572 = vector.extract_strided_slice %564 {offsets = [2, 0], sizes = [14, 64], strides = [1, 1]} : vector<16x64xf32> to vector<14x64xf32>
    %573 = vector.broadcast %525 : vector<1x64xf32> to vector<14x64xf32>
    %574 = arith.mulf %573, %572 : vector<14x64xf32>
    %575 = arith.addf %571, %574 : vector<14x64xf32>
    %576 = vector.broadcast %526 : vector<1x64xf32> to vector<14x64xf32>
    %577 = arith.addf %575, %576 : vector<14x64xf32>
    %cst_241 = arith.constant 0.000000e+00 : f32
    %578 = vector.broadcast %cst_241 : f32 to vector<14x64xf32>
    %579 = arith.maximumf %577, %578 : vector<14x64xf32>
    %cst_242 = arith.constant dense<0.000000e+00> : vector<14x128xf32>
    %580 = tpu.matmul %579, %527, %cst_242 {dimension_numbers = #tpu.dot_dimension_numbers<[1], [0], [0], [1], [0, 0, 1, 1], [], []>} : vector<14x64xf32>, vector<64x128xf32>, vector<14x128xf32> -> vector<14x128xf32>
    %581 = vector.extract_strided_slice %580 {offsets = [0, 0], sizes = [12, 128], strides = [1, 1]} : vector<14x128xf32> to vector<12x128xf32>
    %582 = vector.broadcast %528 : vector<1x128xf32> to vector<12x128xf32>
    %583 = arith.mulf %582, %581 : vector<12x128xf32>
    %584 = vector.extract_strided_slice %580 {offsets = [1, 0], sizes = [12, 128], strides = [1, 1]} : vector<14x128xf32> to vector<12x128xf32>
    %585 = vector.broadcast %529 : vector<1x128xf32> to vector<12x128xf32>
    %586 = arith.mulf %585, %584 : vector<12x128xf32>
    %587 = arith.addf %583, %586 : vector<12x128xf32>
    %588 = vector.extract_strided_slice %580 {offsets = [2, 0], sizes = [12, 128], strides = [1, 1]} : vector<14x128xf32> to vector<12x128xf32>
    %589 = vector.broadcast %530 : vector<1x128xf32> to vector<12x128xf32>
    %590 = arith.mulf %589, %588 : vector<12x128xf32>
    %591 = arith.addf %587, %590 : vector<12x128xf32>
    %592 = vector.broadcast %531 : vector<1x128xf32> to vector<12x128xf32>
    %593 = arith.addf %591, %592 : vector<12x128xf32>
    %cst_243 = arith.constant 0.000000e+00 : f32
    %594 = vector.broadcast %cst_243 : f32 to vector<12x128xf32>
    %595 = arith.maximumf %593, %594 : vector<12x128xf32>
    %c0_244 = arith.constant 0 : index
    %c0_245 = arith.constant 0 : index
    %c0_246 = arith.constant 0 : index
    %596 = vector.load %arg18[%c0_244, %c0_245, %c0_246] : memref<2x12x128xf32, #tpu.memory_space<vmem>>, vector<1x12x128xf32>
    %597 = vector.shape_cast %596 : vector<1x12x128xf32> to vector<12x128xf32>
    %598 = vector.shape_cast %563 : vector<12x128xf32> to vector<1x12x128xf32>
    tpu.vector_store %arg18[%c0_244, %c0_245, %c0_246], %598 {strides = array<i32>} : memref<2x12x128xf32, #tpu.memory_space<vmem>>, vector<1x12x128xf32>,
    %c1_247 = arith.constant 1 : index
    %c0_248 = arith.constant 0 : index
    %c0_249 = arith.constant 0 : index
    %599 = vector.load %arg18[%c1_247, %c0_248, %c0_249] : memref<2x12x128xf32, #tpu.memory_space<vmem>>, vector<1x12x128xf32>
    %600 = vector.shape_cast %599 : vector<1x12x128xf32> to vector<12x128xf32>
    %601 = vector.shape_cast %595 : vector<12x128xf32> to vector<1x12x128xf32>
    tpu.vector_store %arg18[%c1_247, %c0_248, %c0_249], %601 {strides = array<i32>} : memref<2x12x128xf32, #tpu.memory_space<vmem>>, vector<1x12x128xf32>,
    return
  }
  func.func @transform_0(%arg0: i32) -> (i32, i32, i32) {
    %c0_i32 = arith.constant 0 : i32
    %c0_i32_0 = arith.constant 0 : i32
    %c0_i32_1 = arith.constant 0 : i32
    return %arg0, %c0_i32, %c0_i32_0 : i32, i32, i32
  }
  func.func @transform_1(%arg0: i32) -> (i32, i32) {
    %c0_i32 = arith.constant 0 : i32
    %c0_i32_0 = arith.constant 0 : i32
    %c0_i32_1 = arith.constant 0 : i32
    return %c0_i32, %c0_i32_0 : i32, i32
  }
  func.func @transform_2(%arg0: i32) -> i32 {
    %c0_i32 = arith.constant 0 : i32
    %c0_i32_0 = arith.constant 0 : i32
    return %c0_i32 : i32
  }
  func.func @transform_3(%arg0: i32) -> (i32, i32) {
    %c0_i32 = arith.constant 0 : i32
    %c0_i32_0 = arith.constant 0 : i32
    %c0_i32_1 = arith.constant 0 : i32
    return %c0_i32, %c0_i32_0 : i32, i32
  }
  func.func @transform_4(%arg0: i32) -> (i32, i32) {
    %c0_i32 = arith.constant 0 : i32
    %c0_i32_0 = arith.constant 0 : i32
    %c0_i32_1 = arith.constant 0 : i32
    return %c0_i32, %c0_i32_0 : i32, i32
  }
  func.func @transform_5(%arg0: i32) -> (i32, i32) {
    %c0_i32 = arith.constant 0 : i32
    %c0_i32_0 = arith.constant 0 : i32
    %c0_i32_1 = arith.constant 0 : i32
    return %c0_i32, %c0_i32_0 : i32, i32
  }
  func.func @transform_6(%arg0: i32) -> (i32, i32) {
    %c0_i32 = arith.constant 0 : i32
    %c0_i32_0 = arith.constant 0 : i32
    %c0_i32_1 = arith.constant 0 : i32
    return %c0_i32, %c0_i32_0 : i32, i32
  }
  func.func @transform_7(%arg0: i32) -> (i32, i32) {
    %c0_i32 = arith.constant 0 : i32
    %c0_i32_0 = arith.constant 0 : i32
    %c0_i32_1 = arith.constant 0 : i32
    return %c0_i32, %c0_i32_0 : i32, i32
  }
  func.func @transform_8(%arg0: i32) -> (i32, i32) {
    %c0_i32 = arith.constant 0 : i32
    %c0_i32_0 = arith.constant 0 : i32
    %c0_i32_1 = arith.constant 0 : i32
    return %c0_i32, %c0_i32_0 : i32, i32
  }
  func.func @transform_9(%arg0: i32) -> (i32, i32) {
    %c0_i32 = arith.constant 0 : i32
    %c0_i32_0 = arith.constant 0 : i32
    %c0_i32_1 = arith.constant 0 : i32
    return %c0_i32, %c0_i32_0 : i32, i32
  }
  func.func @transform_10(%arg0: i32) -> (i32, i32) {
    %c0_i32 = arith.constant 0 : i32
    %c0_i32_0 = arith.constant 0 : i32
    %c0_i32_1 = arith.constant 0 : i32
    return %c0_i32, %c0_i32_0 : i32, i32
  }
  func.func @transform_11(%arg0: i32) -> (i32, i32) {
    %c0_i32 = arith.constant 0 : i32
    %c0_i32_0 = arith.constant 0 : i32
    %c0_i32_1 = arith.constant 0 : i32
    return %c0_i32, %c0_i32_0 : i32, i32
  }
  func.func @transform_12(%arg0: i32) -> (i32, i32) {
    %c0_i32 = arith.constant 0 : i32
    %c0_i32_0 = arith.constant 0 : i32
    %c0_i32_1 = arith.constant 0 : i32
    return %c0_i32, %c0_i32_0 : i32, i32
  }
  func.func @transform_13(%arg0: i32) -> (i32, i32) {
    %c0_i32 = arith.constant 0 : i32
    %c0_i32_0 = arith.constant 0 : i32
    %c0_i32_1 = arith.constant 0 : i32
    return %c0_i32, %c0_i32_0 : i32, i32
  }
  func.func @transform_14(%arg0: i32) -> (i32, i32) {
    %c0_i32 = arith.constant 0 : i32
    %c0_i32_0 = arith.constant 0 : i32
    %c0_i32_1 = arith.constant 0 : i32
    return %c0_i32, %c0_i32_0 : i32, i32
  }
  func.func @transform_15(%arg0: i32) -> (i32, i32) {
    %c0_i32 = arith.constant 0 : i32
    %c0_i32_0 = arith.constant 0 : i32
    %c0_i32_1 = arith.constant 0 : i32
    return %c0_i32, %c0_i32_0 : i32, i32
  }
  func.func @transform_16(%arg0: i32) -> (i32, i32) {
    %c0_i32 = arith.constant 0 : i32
    %c0_i32_0 = arith.constant 0 : i32
    %c0_i32_1 = arith.constant 0 : i32
    return %c0_i32, %c0_i32_0 : i32, i32
  }
  func.func @transform_17(%arg0: i32) -> (i32, i32, i32) {
    %c0_i32 = arith.constant 0 : i32
    %c0_i32_0 = arith.constant 0 : i32
    %c0_i32_1 = arith.constant 0 : i32
    return %arg0, %c0_i32, %c0_i32_0 : i32, i32, i32
  }
}

</mosaic_0001>

<llo_original>
// kernel: tpu_custom_call.1
$region0: #{tpu_custom_call.1}
  #allocation0 [shape = 'u32[]', space=smem, size = 0x4, offset = 0x4, fixed_abs, tag = 'smem constant byte address 0x4 - core index']
  #allocation1 [shape = 'u32[72,128]{1,0:T(1,128)}', space=vmem, size = 0x9000, scoped, tag = 'internal scratch']
  #allocation2 [shape = 'f32[8,68]{1,0:T(8,128)}', space=vmem, size = 0x1000, scoped, tag = 'scratch operand']
  #allocation3 [shape = 'f32[32,88]{1,0:T(8,128)}', space=vmem, size = 0x4000, scoped, tag = 'scratch operand']
  #allocation4 [shape = 'f32[384,64]{1,0:T(8,128)}', space=vmem, size = 0x30000, scoped, tag = 'scratch operand']
  #allocation5 [shape = 'f32[32,78]{1,0:T(8,128)}', space=vmem, size = 0x4000, scoped, tag = 'scratch operand']
  %s0 = inlined_call_operand.vmem [shape: f32[4,8,64], index: 0, kind: input, shape index: {}]
  %s1 = inlined_call_operand.vmem [shape: f32[4,5], index: 1, kind: input, shape index: {}]
  %s2 = inlined_call_operand.hbm [shape: f32[4], index: 2, kind: input, shape index: {}]
  %s3 = inlined_call_operand.vmem [shape: f32[32,384], index: 3, kind: input, shape index: {}]
  %s4 = inlined_call_operand.vmem [shape: f32[32,1], index: 4, kind: input, shape index: {}]
  %s5 = inlined_call_operand.vmem [shape: f32[32,15], index: 5, kind: input, shape index: {}]
  %s6 = inlined_call_operand.vmem [shape: f32[32,1], index: 6, kind: input, shape index: {}]
  %s7 = inlined_call_operand.hbm [shape: f32[32,32], index: 7, kind: input, shape index: {}]
  %s8 = inlined_call_operand.vmem [shape: f32[32,1], index: 8, kind: input, shape index: {}]
  %s9 = inlined_call_operand.hbm [shape: f32[64,64], index: 9, kind: input, shape index: {}]
  %s10 = inlined_call_operand.hbm [shape: f32[16,64], index: 10, kind: input, shape index: {}]
  %s11 = inlined_call_operand.hbm [shape: f32[32,64], index: 11, kind: input, shape index: {}]
  %s12 = inlined_call_operand.vmem [shape: f32[3,64], index: 12, kind: input, shape index: {}]
  %s13 = inlined_call_operand.vmem [shape: f32[1,64], index: 13, kind: input, shape index: {}]
  %s14 = inlined_call_operand.hbm [shape: f32[64,128], index: 14, kind: input, shape index: {}]
  %s15 = inlined_call_operand.vmem [shape: f32[3,128], index: 15, kind: input, shape index: {}]
  %s16 = inlined_call_operand.vmem [shape: f32[1,128], index: 16, kind: input, shape index: {}]
  %s17 = inlined_call_operand.vmem [shape: f32[4,12,128], index: 17, kind: output, shape index: {}]
  %s18 = sld [smem:[#allocation0]]
  $region129: #{tpu_custom_call.1} parent=0
    _
  %s20 = ssub.s32 1, %s18
  %s21 = scalar_select 0, %s20, %s18
  $region1: #{tpu_custom_call.1} parent=0
    #allocation6 [shape = 'u8[2048]{0}', space=smem, size = 0x800, scoped, tag = 'input window, operand 1, single buffered']
    #allocation7 [shape = 's32[2]{0}', space=sflag, size = 0x8, scoped, tag = 'scoped memory for tpu_custom_call.1']
    #allocation8 [shape = 's32[2]{0}', space=sflag, size = 0x8, scoped, tag = 'scoped memory for tpu_custom_call.1']
    #allocation9 [shape = 's32[2]{0}', space=sflag, size = 0x8, scoped, tag = 'scoped memory for tpu_custom_call.1']
    #allocation10 [shape = 'u8[512]{0}', space=smem, size = 0x200, scoped, tag = 'input window, operand 2, single buffered']
    #allocation11 [shape = 'u8[16384]{0}', space=vmem, size = 0x4000, scoped, tag = 'input window, operand 7, single buffered']
    #allocation12 [shape = 'u8[32768]{0}', space=vmem, size = 0x8000, scoped, tag = 'input window, operand 9, single buffered']
    #allocation13 [shape = 's32[1]{0}', space=sflag, size = 0x4, scoped, tag = 'scoped memory for tpu_custom_call.1']
    #allocation14 [shape = 'u8[8192]{0}', space=vmem, size = 0x2000, scoped, tag = 'input window, operand 10, single buffered']
    #allocation15 [shape = 'u8[16384]{0}', space=vmem, size = 0x4000, scoped, tag = 'input window, operand 11, single buffered']
    #allocation16 [shape = 's32[1]{0}', space=sflag, size = 0x4, scoped, tag = 'scoped memory for tpu_custom_call.1']
    #allocation17 [shape = 'u8[32768]{0}', space=vmem, size = 0x8000, scoped, tag = 'input window, operand 14, single buffered']
    %22 = vsyncpa [#allocation9], 0
    %23 = vsyncpa [#allocation8], 0
    %24 = vsyncpa [#allocation7], 0
    %25 = vsyncpa [#allocation13], 0
    %26 = vsyncpa [#allocation16], 0
    loop: start=0, step=1, limit=4
    $region2: #{tpu_custom_call.1} parent=1 // loop_pre_header
      _
    $region3: #{tpu_custom_call.1} parent=1 // loop_header
      %s28 = sphi 0, %s32
      %p29 = scmp.ge.s32.totalorder %s28, 4
      %s38 = sphi 0, %s40
      %s41 = sphi 0, %s38
      %s42 = sphi 0, %s41
      %s58 = sphi 0, %s42
      %s62 = sphi 0, %s62
      %s64 = sphi 0, %s62
      %s65 = sphi 0, %s64
      %s79 = sphi 0, %s65
      %s83 = sphi 0, %s83
      %s85 = sphi 0, %s83
      %s86 = sphi 0, %s85
      %s100 = sphi 0, %s86
      %s104 = sphi 0, %s104
      %s106 = sphi 0, %s104
      %s107 = sphi 0, %s106
      %s121 = sphi 0, %s107
      %s125 = sphi 0, %s125
      %s127 = sphi 0, %s125
      %s128 = sphi 0, %s127
      %s142 = sphi 0, %s128
      %s146 = sphi 0, %s146
      %s148 = sphi 0, %s146
      %s149 = sphi 0, %s148
      %s163 = sphi 0, %s149
      %s167 = sphi 0, %s167
      %s169 = sphi 0, %s167
      %s170 = sphi 0, %s169
      %s184 = sphi 0, %s170
      %s188 = sphi 0, %s188
      %s190 = sphi 0, %s188
      %s191 = sphi 0, %s190
      %s205 = sphi 0, %s191
      %s209 = sphi 0, %s209
      %s211 = sphi 0, %s209
      %s212 = sphi 0, %s211
      %s226 = sphi 0, %s212
      %s230 = sphi 0, %s230
      %s232 = sphi 0, %s230
      %s233 = sphi 0, %s232
      %s247 = sphi 0, %s233
      %s251 = sphi 0, %s251
      %s253 = sphi 0, %s251
      %s254 = sphi 0, %s253
      %s268 = sphi 0, %s254
      %s272 = sphi 0, %s272
      %s274 = sphi 0, %s272
      %s275 = sphi 0, %s274
      %s289 = sphi 0, %s275
      %s293 = sphi 0, %s293
      %s295 = sphi 0, %s293
      %s296 = sphi 0, %s295
      %s310 = sphi 0, %s296
      %s314 = sphi 0, %s314
      %s316 = sphi 0, %s314
      %s317 = sphi 0, %s316
      %s331 = sphi 0, %s317
      %s335 = sphi 0, %s335
      %s337 = sphi 0, %s335
      %s338 = sphi 0, %s337
      %s352 = sphi 0, %s338
      %s356 = sphi 0, %s356
      %s358 = sphi 0, %s356
      %s359 = sphi 0, %s358
      %s373 = sphi 0, %s359
      %s377 = sphi 0, %s377
      %s379 = sphi 0, %s377
      %s380 = sphi 0, %s379
      %s394 = sphi 0, %s380
      %s400 = sphi 0, %s402
      %s403 = sphi 0, %s400
      %s404 = sphi 0, %s403
      %s420 = sphi 0, %s404
    $region4: #{tpu_custom_call.1} parent=1 // loop_header_branch
      %31 = sbr.rel (%p29) target = $region8
    $region5: #{tpu_custom_call.1} parent=1 // loop_body
      %s33 = ssub.s32 %s28, 1
      %s34 = ssub.s32 %s28, 2
      %s35 = sadd.s32 %s28, 1
      %s36 = ssub.s32 %s28, %s35
      %p37 = scmp.eq.s32.totalorder %s36, 0
      %s39 = sadd.s32 %s38, 1
      %s40 = scalar_select %p37, %s38, %s39
      %p43 = pneg %p37
      %p44 = scmp.eq.s32.totalorder %s28, 1
      %p45 = por %p43, %p44
      %p46 = scmp.ne.s32.totalorder %s38, %s41
      %p47 = scmp.eq.s32.totalorder %s28, 0
      %p48 = por %p46, %p47
      %p49 = scmp.ne.s32.totalorder %s38, %s41
      %p50 = scmp.eq.s32.totalorder %s33, 1
      %p51 = por %p49, %p50
      %p52 = scmp.ne.s32.totalorder %s41, %s42
      %p53 = scmp.eq.s32.totalorder %s33, 0
      %p54 = por %p52, %p53
      %p55 = scmp.ne.s32.totalorder %s41, %s42
      %p56 = scmp.eq.s32.totalorder %s34, 1
      %p57 = por %p55, %p56
      %p59 = scmp.ne.s32.totalorder %s42, %s58
      %p60 = scmp.eq.s32.totalorder %s34, 0
      %p61 = por %p59, %p60
      %s63 = sadd.s32 %s62, 1
      %p66 = scmp.eq.s32.totalorder %s28, 1
      %p67 = scmp.ne.s32.totalorder %s62, %s64
      %p68 = scmp.eq.s32.totalorder %s28, 0
      %p69 = por %p67, %p68
      %p70 = scmp.ne.s32.totalorder %s62, %s64
      %p71 = scmp.eq.s32.totalorder %s33, 1
      %p72 = por %p70, %p71
      %p73 = scmp.ne.s32.totalorder %s64, %s65
      %p74 = scmp.eq.s32.totalorder %s33, 0
      %p75 = por %p73, %p74
      %p76 = scmp.ne.s32.totalorder %s64, %s65
      %p77 = scmp.eq.s32.totalorder %s34, 1
      %p78 = por %p76, %p77
      %p80 = scmp.ne.s32.totalorder %s65, %s79
      %p81 = scmp.eq.s32.totalorder %s34, 0
      %p82 = por %p80, %p81
      %s84 = sadd.s32 %s83, 1
      %p87 = scmp.eq.s32.totalorder %s28, 1
      %p88 = scmp.ne.s32.totalorder %s83, %s85
      %p89 = scmp.eq.s32.totalorder %s28, 0
      %p90 = por %p88, %p89
      %p91 = scmp.ne.s32.totalorder %s83, %s85
      %p92 = scmp.eq.s32.totalorder %s33, 1
      %p93 = por %p91, %p92
      %p94 = scmp.ne.s32.totalorder %s85, %s86
      %p95 = scmp.eq.s32.totalorder %s33, 0
      %p96 = por %p94, %p95
      %p97 = scmp.ne.s32.totalorder %s85, %s86
      %p98 = scmp.eq.s32.totalorder %s34, 1
      %p99 = por %p97, %p98
      %p101 = scmp.ne.s32.totalorder %s86, %s100
      %p102 = scmp.eq.s32.totalorder %s34, 0
      %p103 = por %p101, %p102
      %s105 = sadd.s32 %s104, 1
      %p108 = scmp.eq.s32.totalorder %s28, 1
      %p109 = scmp.ne.s32.totalorder %s104, %s106
      %p110 = scmp.eq.s32.totalorder %s28, 0
      %p111 = por %p109, %p110
      %p112 = scmp.ne.s32.totalorder %s104, %s106
      %p113 = scmp.eq.s32.totalorder %s33, 1
      %p114 = por %p112, %p113
      %p115 = scmp.ne.s32.totalorder %s106, %s107
      %p116 = scmp.eq.s32.totalorder %s33, 0
      %p117 = por %p115, %p116
      %p118 = scmp.ne.s32.totalorder %s106, %s107
      %p119 = scmp.eq.s32.totalorder %s34, 1
      %p120 = por %p118, %p119
      %p122 = scmp.ne.s32.totalorder %s107, %s121
      %p123 = scmp.eq.s32.totalorder %s34, 0
      %p124 = por %p122, %p123
      %s126 = sadd.s32 %s125, 1
      %p129 = scmp.eq.s32.totalorder %s28, 1
      %p130 = scmp.ne.s32.totalorder %s125, %s127
      %p131 = scmp.eq.s32.totalorder %s28, 0
      %p132 = por %p130, %p131
      %p133 = scmp.ne.s32.totalorder %s125, %s127
      %p134 = scmp.eq.s32.totalorder %s33, 1
      %p135 = por %p133, %p134
      %p136 = scmp.ne.s32.totalorder %s127, %s128
      %p137 = scmp.eq.s32.totalorder %s33, 0
      %p138 = por %p136, %p137
      %p139 = scmp.ne.s32.totalorder %s127, %s128
      %p140 = scmp.eq.s32.totalorder %s34, 1
      %p141 = por %p139, %p140
      %p143 = scmp.ne.s32.totalorder %s128, %s142
      %p144 = scmp.eq.s32.totalorder %s34, 0
      %p145 = por %p143, %p144
      %s147 = sadd.s32 %s146, 1
      %p150 = scmp.eq.s32.totalorder %s28, 1
      %p151 = scmp.ne.s32.totalorder %s146, %s148
      %p152 = scmp.eq.s32.totalorder %s28, 0
      %p153 = por %p151, %p152
      %p154 = scmp.ne.s32.totalorder %s146, %s148
      %p155 = scmp.eq.s32.totalorder %s33, 1
      %p156 = por %p154, %p155
      %p157 = scmp.ne.s32.totalorder %s148, %s149
      %p158 = scmp.eq.s32.totalorder %s33, 0
      %p159 = por %p157, %p158
      %p160 = scmp.ne.s32.totalorder %s148, %s149
      %p161 = scmp.eq.s32.totalorder %s34, 1
      %p162 = por %p160, %p161
      %p164 = scmp.ne.s32.totalorder %s149, %s163
      %p165 = scmp.eq.s32.totalorder %s34, 0
      %p166 = por %p164, %p165
      %s168 = sadd.s32 %s167, 1
      %p171 = scmp.eq.s32.totalorder %s28, 1
      %p172 = scmp.ne.s32.totalorder %s167, %s169
      %p173 = scmp.eq.s32.totalorder %s28, 0
      %p174 = por %p172, %p173
      %p175 = scmp.ne.s32.totalorder %s167, %s169
      %p176 = scmp.eq.s32.totalorder %s33, 1
      %p177 = por %p175, %p176
      %p178 = scmp.ne.s32.totalorder %s169, %s170
      %p179 = scmp.eq.s32.totalorder %s33, 0
      %p180 = por %p178, %p179
      %p181 = scmp.ne.s32.totalorder %s169, %s170
      %p182 = scmp.eq.s32.totalorder %s34, 1
      %p183 = por %p181, %p182
      %p185 = scmp.ne.s32.totalorder %s170, %s184
      %p186 = scmp.eq.s32.totalorder %s34, 0
      %p187 = por %p185, %p186
      %s189 = sadd.s32 %s188, 1
      %p192 = scmp.eq.s32.totalorder %s28, 1
      %p193 = scmp.ne.s32.totalorder %s188, %s190
      %p194 = scmp.eq.s32.totalorder %s28, 0
      %p195 = por %p193, %p194
      %p196 = scmp.ne.s32.totalorder %s188, %s190
      %p197 = scmp.eq.s32.totalorder %s33, 1
      %p198 = por %p196, %p197
      %p199 = scmp.ne.s32.totalorder %s190, %s191
      %p200 = scmp.eq.s32.totalorder %s33, 0
      %p201 = por %p199, %p200
      %p202 = scmp.ne.s32.totalorder %s190, %s191
      %p203 = scmp.eq.s32.totalorder %s34, 1
      %p204 = por %p202, %p203
      %p206 = scmp.ne.s32.totalorder %s191, %s205
      %p207 = scmp.eq.s32.totalorder %s34, 0
      %p208 = por %p206, %p207
      %s210 = sadd.s32 %s209, 1
      %p213 = scmp.eq.s32.totalorder %s28, 1
      %p214 = scmp.ne.s32.totalorder %s209, %s211
      %p215 = scmp.eq.s32.totalorder %s28, 0
      %p216 = por %p214, %p215
      %p217 = scmp.ne.s32.totalorder %s209, %s211
      %p218 = scmp.eq.s32.totalorder %s33, 1
      %p219 = por %p217, %p218
      %p220 = scmp.ne.s32.totalorder %s211, %s212
      %p221 = scmp.eq.s32.totalorder %s33, 0
      %p222 = por %p220, %p221
      %p223 = scmp.ne.s32.totalorder %s211, %s212
      %p224 = scmp.eq.s32.totalorder %s34, 1
      %p225 = por %p223, %p224
      %p227 = scmp.ne.s32.totalorder %s212, %s226
      %p228 = scmp.eq.s32.totalorder %s34, 0
      %p229 = por %p227, %p228
      %s231 = sadd.s32 %s230, 1
      %p234 = scmp.eq.s32.totalorder %s28, 1
      %p235 = scmp.ne.s32.totalorder %s230, %s232
      %p236 = scmp.eq.s32.totalorder %s28, 0
      %p237 = por %p235, %p236
      %p238 = scmp.ne.s32.totalorder %s230, %s232
      %p239 = scmp.eq.s32.totalorder %s33, 1
      %p240 = por %p238, %p239
      %p241 = scmp.ne.s32.totalorder %s232, %s233
      %p242 = scmp.eq.s32.totalorder %s33, 0
      %p243 = por %p241, %p242
      %p244 = scmp.ne.s32.totalorder %s232, %s233
      %p245 = scmp.eq.s32.totalorder %s34, 1
      %p246 = por %p244, %p245
      %p248 = scmp.ne.s32.totalorder %s233, %s247
      %p249 = scmp.eq.s32.totalorder %s34, 0
      %p250 = por %p248, %p249
      %s252 = sadd.s32 %s251, 1
      %p255 = scmp.eq.s32.totalorder %s28, 1
      %p256 = scmp.ne.s32.totalorder %s251, %s253
      %p257 = scmp.eq.s32.totalorder %s28, 0
      %p258 = por %p256, %p257
      %p259 = scmp.ne.s32.totalorder %s251, %s253
      %p260 = scmp.eq.s32.totalorder %s33, 1
      %p261 = por %p259, %p260
      %p262 = scmp.ne.s32.totalorder %s253, %s254
      %p263 = scmp.eq.s32.totalorder %s33, 0
      %p264 = por %p262, %p263
      %p265 = scmp.ne.s32.totalorder %s253, %s254
      %p266 = scmp.eq.s32.totalorder %s34, 1
      %p267 = por %p265, %p266
      %p269 = scmp.ne.s32.totalorder %s254, %s268
      %p270 = scmp.eq.s32.totalorder %s34, 0
      %p271 = por %p269, %p270
      %s273 = sadd.s32 %s272, 1
      %p276 = scmp.eq.s32.totalorder %s28, 1
      %p277 = scmp.ne.s32.totalorder %s272, %s274
      %p278 = scmp.eq.s32.totalorder %s28, 0
      %p279 = por %p277, %p278
      %p280 = scmp.ne.s32.totalorder %s272, %s274
      %p281 = scmp.eq.s32.totalorder %s33, 1
      %p282 = por %p280, %p281
      %p283 = scmp.ne.s32.totalorder %s274, %s275
      %p284 = scmp.eq.s32.totalorder %s33, 0
      %p285 = por %p283, %p284
      %p286 = scmp.ne.s32.totalorder %s274, %s275
      %p287 = scmp.eq.s32.totalorder %s34, 1
      %p288 = por %p286, %p287
      %p290 = scmp.ne.s32.totalorder %s275, %s289
      %p291 = scmp.eq.s32.totalorder %s34, 0
      %p292 = por %p290, %p291
      %s294 = sadd.s32 %s293, 1
      %p297 = scmp.eq.s32.totalorder %s28, 1
      %p298 = scmp.ne.s32.totalorder %s293, %s295
      %p299 = scmp.eq.s32.totalorder %s28, 0
      %p300 = por %p298, %p299
      %p301 = scmp.ne.s32.totalorder %s293, %s295
      %p302 = scmp.eq.s32.totalorder %s33, 1
      %p303 = por %p301, %p302
      %p304 = scmp.ne.s32.totalorder %s295, %s296
      %p305 = scmp.eq.s32.totalorder %s33, 0
      %p306 = por %p304, %p305
      %p307 = scmp.ne.s32.totalorder %s295, %s296
      %p308 = scmp.eq.s32.totalorder %s34, 1
      %p309 = por %p307, %p308
      %p311 = scmp.ne.s32.totalorder %s296, %s310
      %p312 = scmp.eq.s32.totalorder %s34, 0
      %p313 = por %p311, %p312
      %s315 = sadd.s32 %s314, 1
      %p318 = scmp.eq.s32.totalorder %s28, 1
      %p319 = scmp.ne.s32.totalorder %s314, %s316
      %p320 = scmp.eq.s32.totalorder %s28, 0
      %p321 = por %p319, %p320
      %p322 = scmp.ne.s32.totalorder %s314, %s316
      %p323 = scmp.eq.s32.totalorder %s33, 1
      %p324 = por %p322, %p323
      %p325 = scmp.ne.s32.totalorder %s316, %s317
      %p326 = scmp.eq.s32.totalorder %s33, 0
      %p327 = por %p325, %p326
      %p328 = scmp.ne.s32.totalorder %s316, %s317
      %p329 = scmp.eq.s32.totalorder %s34, 1
      %p330 = por %p328, %p329
      %p332 = scmp.ne.s32.totalorder %s317, %s331
      %p333 = scmp.eq.s32.totalorder %s34, 0
      %p334 = por %p332, %p333
      %s336 = sadd.s32 %s335, 1
      %p339 = scmp.eq.s32.totalorder %s28, 1
      %p340 = scmp.ne.s32.totalorder %s335, %s337
      %p341 = scmp.eq.s32.totalorder %s28, 0
      %p342 = por %p340, %p341
      %p343 = scmp.ne.s32.totalorder %s335, %s337
      %p344 = scmp.eq.s32.totalorder %s33, 1
      %p345 = por %p343, %p344
      %p346 = scmp.ne.s32.totalorder %s337, %s338
      %p347 = scmp.eq.s32.totalorder %s33, 0
      %p348 = por %p346, %p347
      %p349 = scmp.ne.s32.totalorder %s337, %s338
      %p350 = scmp.eq.s32.totalorder %s34, 1
      %p351 = por %p349, %p350
      %p353 = scmp.ne.s32.totalorder %s338, %s352
      %p354 = scmp.eq.s32.totalorder %s34, 0
      %p355 = por %p353, %p354
      %s357 = sadd.s32 %s356, 1
      %p360 = scmp.eq.s32.totalorder %s28, 1
      %p361 = scmp.ne.s32.totalorder %s356, %s358
      %p362 = scmp.eq.s32.totalorder %s28, 0
      %p363 = por %p361, %p362
      %p364 = scmp.ne.s32.totalorder %s356, %s358
      %p365 = scmp.eq.s32.totalorder %s33, 1
      %p366 = por %p364, %p365
      %p367 = scmp.ne.s32.totalorder %s358, %s359
      %p368 = scmp.eq.s32.totalorder %s33, 0
      %p369 = por %p367, %p368
      %p370 = scmp.ne.s32.totalorder %s358, %s359
      %p371 = scmp.eq.s32.totalorder %s34, 1
      %p372 = por %p370, %p371
      %p374 = scmp.ne.s32.totalorder %s359, %s373
      %p375 = scmp.eq.s32.totalorder %s34, 0
      %p376 = por %p374, %p375
      %s378 = sadd.s32 %s377, 1
      %p381 = scmp.eq.s32.totalorder %s28, 1
      %p382 = scmp.ne.s32.totalorder %s377, %s379
      %p383 = scmp.eq.s32.totalorder %s28, 0
      %p384 = por %p382, %p383
      %p385 = scmp.ne.s32.totalorder %s377, %s379
      %p386 = scmp.eq.s32.totalorder %s33, 1
      %p387 = por %p385, %p386
      %p388 = scmp.ne.s32.totalorder %s379, %s380
      %p389 = scmp.eq.s32.totalorder %s33, 0
      %p390 = por %p388, %p389
      %p391 = scmp.ne.s32.totalorder %s379, %s380
      %p392 = scmp.eq.s32.totalorder %s34, 1
      %p393 = por %p391, %p392
      %p395 = scmp.ne.s32.totalorder %s380, %s394
      %p396 = scmp.eq.s32.totalorder %s34, 0
      %p397 = por %p395, %p396
      %s398 = ssub.s32 %s28, %s35
      %p399 = scmp.eq.s32.totalorder %s398, 0
      %s401 = sadd.s32 %s400, 1
      %s402 = scalar_select %p399, %s400, %s401
      %p405 = pneg %p399
      %p406 = scmp.eq.s32.totalorder %s28, 1
      %p407 = por %p405, %p406
      %p408 = scmp.ne.s32.totalorder %s400, %s403
      %p409 = scmp.eq.s32.totalorder %s28, 0
      %p410 = por %p408, %p409
      %p411 = scmp.ne.s32.totalorder %s400, %s403
      %p412 = scmp.eq.s32.totalorder %s33, 1
      %p413 = por %p411, %p412
      %p414 = scmp.ne.s32.totalorder %s403, %s404
      %p415 = scmp.eq.s32.totalorder %s33, 0
      %p416 = por %p414, %p415
      %p417 = scmp.ne.s32.totalorder %s403, %s404
      %p418 = scmp.eq.s32.totalorder %s34, 1
      %p419 = por %p417, %p418
      %p421 = scmp.ne.s32.totalorder %s404, %s420
      %p422 = scmp.eq.s32.totalorder %s34, 0
      %p423 = por %p421, %p422
      %p424 = scmp.le.s32.totalorder 1, %s28
      %p425 = scmp.lt.s32.totalorder %s28, 3
      %p426 = pnand %p424, %p425
      %p427 = pneg %p426
      // Predicated region
      $region9: #{tpu_custom_call.1} parent=5 // pred_check
        _
      $region10: #{tpu_custom_call.1} parent=5 // pred_check_branch
        %429 = sbr.rel (%p426) target = $region12
      $region11: #{tpu_custom_call.1} parent=5 // pred_region
        %s430 = ssub.s32 %s28, 1
        // Predicated region
        $region13: #{tpu_custom_call.1} parent=11 // pred_check
          %p431 = pneg %p75
        $region14: #{tpu_custom_call.1} parent=11 // pred_check_branch
          %433 = sbr.rel (%p431) target = $region16
        $region15: #{tpu_custom_call.1} parent=11 // pred_region
          %435 = vsyncadd [#allocation9], 0
          %s437 = sshll.u32 %s1, 4
          %s438 = int_to_ptr.vmem [resolvable:$true] %s437
          %440 = dma.vmem_to_smem %s438, 64, [#allocation6], [#allocation9]
        $region16: #{tpu_custom_call.1} parent=11 // pred_fallthru
          _
        // Predicated region
        $region17: #{tpu_custom_call.1} parent=11 // pred_check
          %p441 = pneg %p96
        $region18: #{tpu_custom_call.1} parent=11 // pred_check_branch
          %443 = sbr.rel (%p441) target = $region20
        $region19: #{tpu_custom_call.1} parent=11 // pred_region
          %445 = vsyncadd [#allocation8], 0
          %s447 = sshll.u32 %s2, 4
          %s448 = int_to_ptr.hbm [resolvable:$true] %s447
          %450 = dma.hbm_to_smem %s448, 16, [#allocation10], [#allocation8]
        $region20: #{tpu_custom_call.1} parent=11 // pred_fallthru
          _
        // Predicated region
        $region21: #{tpu_custom_call.1} parent=11 // pred_check
          %p451 = pneg %p117
        $region22: #{tpu_custom_call.1} parent=11 // pred_check_branch
          %453 = sbr.rel (%p451) target = $region24
        $region23: #{tpu_custom_call.1} parent=11 // pred_region
          _
        $region24: #{tpu_custom_call.1} parent=11 // pred_fallthru
          _
        // Predicated region
        $region25: #{tpu_custom_call.1} parent=11 // pred_check
          %p454 = pneg %p138
        $region26: #{tpu_custom_call.1} parent=11 // pred_check_branch
          %456 = sbr.rel (%p454) target = $region28
        $region27: #{tpu_custom_call.1} parent=11 // pred_region
          _
        $region28: #{tpu_custom_call.1} parent=11 // pred_fallthru
          _
        // Predicated region
        $region29: #{tpu_custom_call.1} parent=11 // pred_check
          %p457 = pneg %p159
        $region30: #{tpu_custom_call.1} parent=11 // pred_check_branch
          %459 = sbr.rel (%p457) target = $region32
        $region31: #{tpu_custom_call.1} parent=11 // pred_region
          _
        $region32: #{tpu_custom_call.1} parent=11 // pred_fallthru
          _
        // Predicated region
        $region33: #{tpu_custom_call.1} parent=11 // pred_check
          %p460 = pneg %p180
        $region34: #{tpu_custom_call.1} parent=11 // pred_check_branch
          %462 = sbr.rel (%p460) target = $region36
        $region35: #{tpu_custom_call.1} parent=11 // pred_region
          _
        $region36: #{tpu_custom_call.1} parent=11 // pred_fallthru
          _
        // Predicated region
        $region37: #{tpu_custom_call.1} parent=11 // pred_check
          %p463 = pneg %p201
        $region38: #{tpu_custom_call.1} parent=11 // pred_check_branch
          %465 = sbr.rel (%p463) target = $region40
        $region39: #{tpu_custom_call.1} parent=11 // pred_region
          %467 = vsyncadd [#allocation7], 0
          %s468 = sshll.u32 %s7, 4
          %s469 = int_to_ptr.hbm [resolvable:$true] %s468
          %s470 = sshll.u32 [#allocation11], 4
          %s471 = int_to_ptr.vmem [resolvable:$true] %s470
          %476 = dma.hbm_to_vmem [thread:$0]  %s469, 512, %s471, [#allocation7], 128, 128, 8
        $region40: #{tpu_custom_call.1} parent=11 // pred_fallthru
          _
        // Predicated region
        $region41: #{tpu_custom_call.1} parent=11 // pred_check
          %p477 = pneg %p222
        $region42: #{tpu_custom_call.1} parent=11 // pred_check_branch
          %479 = sbr.rel (%p477) target = $region44
        $region43: #{tpu_custom_call.1} parent=11 // pred_region
          _
        $region44: #{tpu_custom_call.1} parent=11 // pred_fallthru
          _
        // Predicated region
        $region45: #{tpu_custom_call.1} parent=11 // pred_check
          %p480 = pneg %p243
        $region46: #{tpu_custom_call.1} parent=11 // pred_check_branch
          %482 = sbr.rel (%p480) target = $region48
        $region47: #{tpu_custom_call.1} parent=11 // pred_region
          %484 = vsyncadd [#allocation13], 0
          %s485 = sshll.u32 %s9, 4
          %s486 = int_to_ptr.hbm [resolvable:$true] %s485
          %s487 = sshll.u32 [#allocation12], 4
          %s488 = int_to_ptr.vmem [resolvable:$true] %s487
          %493 = dma.hbm_to_vmem [thread:$0]  %s486, 1024, %s488, [#allocation13], 128, 128, 8
        $region48: #{tpu_custom_call.1} parent=11 // pred_fallthru
          _
        // Predicated region
        $region49: #{tpu_custom_call.1} parent=11 // pred_check
          %p494 = pneg %p264
        $region50: #{tpu_custom_call.1} parent=11 // pred_check_branch
          %496 = sbr.rel (%p494) target = $region52
        $region51: #{tpu_custom_call.1} parent=11 // pred_region
          %498 = vsyncadd [#allocation13], 0
          %s499 = sshll.u32 %s10, 4
          %s500 = int_to_ptr.hbm [resolvable:$true] %s499
          %s501 = sshll.u32 [#allocation14], 4
          %s502 = int_to_ptr.vmem [resolvable:$true] %s501
          %507 = dma.hbm_to_vmem [thread:$0]  %s500, 256, %s502, [#allocation13], 128, 128, 8
        $region52: #{tpu_custom_call.1} parent=11 // pred_fallthru
          _
        // Predicated region
        $region53: #{tpu_custom_call.1} parent=11 // pred_check
          %p508 = pneg %p285
        $region54: #{tpu_custom_call.1} parent=11 // pred_check_branch
          %510 = sbr.rel (%p508) target = $region56
        $region55: #{tpu_custom_call.1} parent=11 // pred_region
          %512 = vsyncadd [#allocation16], 0
          %s513 = sshll.u32 %s11, 4
          %s514 = int_to_ptr.hbm [resolvable:$true] %s513
          %s515 = sshll.u32 [#allocation15], 4
          %s516 = int_to_ptr.vmem [resolvable:$true] %s515
          %521 = dma.hbm_to_vmem [thread:$0]  %s514, 512, %s516, [#allocation16], 128, 128, 8
        $region56: #{tpu_custom_call.1} parent=11 // pred_fallthru
          _
        // Predicated region
        $region57: #{tpu_custom_call.1} parent=11 // pred_check
          %p522 = pneg %p306
        $region58: #{tpu_custom_call.1} parent=11 // pred_check_branch
          %524 = sbr.rel (%p522) target = $region60
        $region59: #{tpu_custom_call.1} parent=11 // pred_region
          _
        $region60: #{tpu_custom_call.1} parent=11 // pred_fallthru
          _
        // Predicated region
        $region61: #{tpu_custom_call.1} parent=11 // pred_check
          %p525 = pneg %p327
        $region62: #{tpu_custom_call.1} parent=11 // pred_check_branch
          %527 = sbr.rel (%p525) target = $region64
        $region63: #{tpu_custom_call.1} parent=11 // pred_region
          _
        $region64: #{tpu_custom_call.1} parent=11 // pred_fallthru
          _
        // Predicated region
        $region65: #{tpu_custom_call.1} parent=11 // pred_check
          %p528 = pneg %p348
        $region66: #{tpu_custom_call.1} parent=11 // pred_check_branch
          %530 = sbr.rel (%p528) target = $region68
        $region67: #{tpu_custom_call.1} parent=11 // pred_region
          %532 = vsyncadd [#allocation16], 0
          %s533 = sshll.u32 %s14, 4
          %s534 = int_to_ptr.hbm [resolvable:$true] %s533
          %s535 = sshll.u32 [#allocation17], 4
          %s536 = int_to_ptr.vmem [resolvable:$true] %s535
          %541 = dma.hbm_to_vmem [thread:$0]  %s534, 1024, %s536, [#allocation16], 128, 128, 8
        $region68: #{tpu_custom_call.1} parent=11 // pred_fallthru
          _
        // Predicated region
        $region69: #{tpu_custom_call.1} parent=11 // pred_check
          %p542 = pneg %p369
        $region70: #{tpu_custom_call.1} parent=11 // pred_check_branch
          %544 = sbr.rel (%p542) target = $region72
        $region71: #{tpu_custom_call.1} parent=11 // pred_region
          _
        $region72: #{tpu_custom_call.1} parent=11 // pred_fallthru
          _
        // Predicated region
        $region73: #{tpu_custom_call.1} parent=11 // pred_check
          %p545 = pneg %p390
        $region74: #{tpu_custom_call.1} parent=11 // pred_check_branch
          %547 = sbr.rel (%p545) target = $region76
        $region75: #{tpu_custom_call.1} parent=11 // pred_region
          _
        $region76: #{tpu_custom_call.1} parent=11 // pred_fallthru
          _
      $region12: #{tpu_custom_call.1} parent=5 // pred_fallthru
        _
      %p548 = scmp.lt.s32.totalorder %s28, 2
      // Predicated region
      $region77: #{tpu_custom_call.1} parent=5 // pred_check
        %p549 = pneg %p548
      $region78: #{tpu_custom_call.1} parent=5 // pred_check_branch
        %551 = sbr.rel (%p549) target = $region80
      $region79: #{tpu_custom_call.1} parent=5 // pred_region
        // Predicated region
        $region81: #{tpu_custom_call.1} parent=79 // pred_check
          %p552 = pneg %p48
        $region82: #{tpu_custom_call.1} parent=79 // pred_check_branch
          %554 = sbr.rel (%p552) target = $region84
        $region83: #{tpu_custom_call.1} parent=79 // pred_region
          %s555 = smul.u32 2, %s28
          %p556 = scmp.lt.s32.totalorder %s555, 3
          %s557 = scalar_select %p556, %s555, 3
          %s558 = smul.addr %s557, 8
          %s559 = scalar_lea.vmem %s0, %s558
          %s560 = smul.u32 2, %s28
        $region84: #{tpu_custom_call.1} parent=79 // pred_fallthru
          _
      $region80: #{tpu_custom_call.1} parent=5 // pred_fallthru
        _
      %p561 = scmp.le.s32.totalorder 1, %s28
      %p562 = scmp.lt.s32.totalorder %s28, 3
      %p563 = pnand %p561, %p562
      %p564 = pneg %p563
      // Predicated region
      $region85: #{tpu_custom_call.1} parent=5 // pred_check
        _
      $region86: #{tpu_custom_call.1} parent=5 // pred_check_branch
        %566 = sbr.rel (%p563) target = $region88
      $region87: #{tpu_custom_call.1} parent=5 // pred_region
        %s567 = ssub.s32 %s28, 1
        // Predicated region
        $region89: #{tpu_custom_call.1} parent=87 // pred_check
          %p568 = pneg %p75
        $region90: #{tpu_custom_call.1} parent=87 // pred_check_branch
          %570 = sbr.rel (%p568) target = $region92
        $region91: #{tpu_custom_call.1} parent=87 // pred_region
          %572 = dma.done [#allocation9], 64
        $region92: #{tpu_custom_call.1} parent=87 // pred_fallthru
          _
        // Predicated region
        $region93: #{tpu_custom_call.1} parent=87 // pred_check
          %p573 = pneg %p96
        $region94: #{tpu_custom_call.1} parent=87 // pred_check_branch
          %575 = sbr.rel (%p573) target = $region96
        $region95: #{tpu_custom_call.1} parent=87 // pred_region
          %577 = dma.done [#allocation8], 16
        $region96: #{tpu_custom_call.1} parent=87 // pred_fallthru
          _
        // Predicated region
        $region97: #{tpu_custom_call.1} parent=87 // pred_check
          %p578 = pneg %p201
        $region98: #{tpu_custom_call.1} parent=87 // pred_check_branch
          %580 = sbr.rel (%p578) target = $region100
        $region99: #{tpu_custom_call.1} parent=87 // pred_region
          %582 = dma.done [#allocation7], 512
        $region100: #{tpu_custom_call.1} parent=87 // pred_fallthru
          _
        // Predicated region
        $region101: #{tpu_custom_call.1} parent=87 // pred_check
          %p583 = pneg %p243
        $region102: #{tpu_custom_call.1} parent=87 // pred_check_branch
          %585 = sbr.rel (%p583) target = $region104
        $region103: #{tpu_custom_call.1} parent=87 // pred_region
          %587 = dma.done [#allocation13], 1024
        $region104: #{tpu_custom_call.1} parent=87 // pred_fallthru
          _
        // Predicated region
        $region105: #{tpu_custom_call.1} parent=87 // pred_check
          %p588 = pneg %p264
        $region106: #{tpu_custom_call.1} parent=87 // pred_check_branch
          %590 = sbr.rel (%p588) target = $region108
        $region107: #{tpu_custom_call.1} parent=87 // pred_region
          %592 = dma.done [#allocation13], 256
        $region108: #{tpu_custom_call.1} parent=87 // pred_fallthru
          _
        // Predicated region
        $region109: #{tpu_custom_call.1} parent=87 // pred_check
          %p593 = pneg %p285
        $region110: #{tpu_custom_call.1} parent=87 // pred_check_branch
          %595 = sbr.rel (%p593) target = $region112
        $region111: #{tpu_custom_call.1} parent=87 // pred_region
          %597 = dma.done [#allocation16], 512
        $region112: #{tpu_custom_call.1} parent=87 // pred_fallthru
          _
        // Predicated region
        $region113: #{tpu_custom_call.1} parent=87 // pred_check
          %p598 = pneg %p348
        $region114: #{tpu_custom_call.1} parent=87 // pred_check_branch
          %600 = sbr.rel (%p598) target = $region116
        $region115: #{tpu_custom_call.1} parent=87 // pred_region
          %602 = dma.done [#allocation16], 1024
        $region116: #{tpu_custom_call.1} parent=87 // pred_fallthru
          _
        %603 = sfence
        %s604 = smul.u32 2, %s33
        %p605 = scmp.lt.s32.totalorder %s604, 3
        %s606 = scalar_select %p605, %s604, 3
        %s607 = smul.addr %s606, 8
        %s608 = scalar_lea.vmem %s0, %s607
        %p609 = pneg %p54
        %p610 = pneg %p51
        %p611 = pneg %p75
        %p612 = pneg %p72
        %p613 = pneg %p96
        %p614 = pneg %p93
        %p615 = pneg %p117
        %p616 = pneg %p114
        %p617 = pneg %p138
        %p618 = pneg %p135
        %p619 = pneg %p159
        %p620 = pneg %p156
        %p621 = pneg %p180
        %p622 = pneg %p177
        %p623 = pneg %p201
        %p624 = pneg %p198
        %p625 = pneg %p222
        %p626 = pneg %p219
        %p627 = pneg %p243
        %p628 = pneg %p240
        %p629 = pneg %p264
        %p630 = pneg %p261
        %p631 = pneg %p285
        %p632 = pneg %p282
        %p633 = pneg %p306
        %p634 = pneg %p303
        %p635 = pneg %p327
        %p636 = pneg %p324
        %p637 = pneg %p348
        %p638 = pneg %p345
        %p639 = pneg %p369
        %p640 = pneg %p366
        %p641 = pneg %p390
        %p642 = pneg %p387
        %p643 = pneg %p416
        %p644 = pneg %p413
        %s645 = smul.u32 2, %s33
        %p646 = scmp.lt.s32.totalorder %s645, 3
        %s647 = scalar_select %p646, %s645, 3
        %s648 = smul.addr %s647, 2
        %s649 = smul.addr %s648, 8
        %s650 = scalar_lea.vmem %s17, %s649
        %s651 = smul.u32 2, %s33
        %p652 = scmp.lt.s32.totalorder %s651, 3
        %s653 = scalar_select %p652, %s651, 3
        %s654 = smul.addr %s653, 8
        %s655 = scalar_lea.vmem %s0, %s654
        %s656 = smul.u32 2, %s33
        %s657 = smul.u32 2, %s33
        %p658 = scmp.lt.s32.totalorder %s657, 3
        %s659 = scalar_select %p658, %s657, 3
        %s660 = smul.addr %s659, 2
        %s661 = smul.addr %s660, 8
        %s662 = scalar_lea.vmem %s17, %s661
        %s663 = smul.u32 2, %s33
        %vm664 = vcmask 15360
        %665 = vst.msk [vmem:[#allocation2] sm:$0xff] %vm664, 0.0
        %vm666 = vcmask 556560
        %667 = vst.msk [vmem:[#allocation2] sm:$0xff] %vm666, 0.0
        %vm668 = vcmask 97280
        %669 = vst.msk [vmem:[#allocation3] sm:$0xff] %vm668, 0.0
        %670 = vst.msk [vmem:[#allocation3 + $0x8] sm:$0xff] %vm668, 0.0
        %671 = vst.msk [vmem:[#allocation3 + $0x10] sm:$0xff] %vm668, 0.0
        %672 = vst.msk [vmem:[#allocation3 + $0x18] sm:$0xff] %vm668, 0.0
        %vm673 = vcmask 720480
        %674 = vst.msk [vmem:[#allocation3] sm:$0xff] %vm673, 0.0
        %675 = vst.msk [vmem:[#allocation3 + $0x8] sm:$0xff] %vm673, 0.0
        %676 = vst.msk [vmem:[#allocation3 + $0x10] sm:$0xff] %vm673, 0.0
        %677 = vst.msk [vmem:[#allocation3 + $0x18] sm:$0xff] %vm673, 0.0
        %vm678 = vcmask 113664
        %679 = vst.msk [vmem:[#allocation5] sm:$0xff] %vm678, 0.0
        %680 = vst.msk [vmem:[#allocation5 + $0x8] sm:$0xff] %vm678, 0.0
        %681 = vst.msk [vmem:[#allocation5 + $0x10] sm:$0xff] %vm678, 0.0
        %682 = vst.msk [vmem:[#allocation5 + $0x18] sm:$0xff] %vm678, 0.0
        %v683 = vld [vmem:[%s3] sm:$0xff]
        %v684 = vld [vmem:[%s3 + $0x8] sm:$0xff]
        %v685 = vld [vmem:[%s3 + $0x10] sm:$0xff]
        %v686 = vld [vmem:[%s3 + $0x18] sm:$0xff]
        %v687 = vld [vmem:[%s3 + $0x20] sm:$0xff]
        %v688 = vld [vmem:[%s3 + $0x28] sm:$0xff]
        %v689 = vld [vmem:[%s3 + $0x30] sm:$0xff]
        %v690 = vld [vmem:[%s3 + $0x38] sm:$0xff]
        %v691 = vld [vmem:[%s3 + $0x40] sm:$0xff]
        %v692 = vld [vmem:[%s3 + $0x48] sm:$0xff]
        %v693 = vld [vmem:[%s3 + $0x50] sm:$0xff]
        %v694 = vld [vmem:[%s3 + $0x58] sm:$0xff]
        %v695 = vld [vmem:[%s4] sm:$0xff]
        %v696 = vld [vmem:[%s4 + $0x8] sm:$0xff]
        %v697 = vld [vmem:[%s4 + $0x10] sm:$0xff]
        %v698 = vld [vmem:[%s4 + $0x18] sm:$0xff]
        %v699 = vld [vmem:[%s5] sm:$0xff]
        %v700 = vld [vmem:[%s5 + $0x8] sm:$0xff]
        %v701 = vld [vmem:[%s5 + $0x10] sm:$0xff]
        %v702 = vld [vmem:[%s5 + $0x18] sm:$0xff]
        %v703 = vld [vmem:[%s6] sm:$0xff]
        %v704 = vld [vmem:[%s6 + $0x8] sm:$0xff]
        %v705 = vld [vmem:[%s6 + $0x10] sm:$0xff]
        %v706 = vld [vmem:[%s6 + $0x18] sm:$0xff]
        %v707 = vld [vmem:[#allocation11] sm:$0xff]
        %v708 = vld [vmem:[#allocation11 + $0x8] sm:$0xff]
        %v709 = vld [vmem:[#allocation11 + $0x10] sm:$0xff]
        %v710 = vld [vmem:[#allocation11 + $0x18] sm:$0xff]
        %v711 = vld [vmem:[%s8] sm:$0xff]
        %v712 = vld [vmem:[%s8 + $0x8] sm:$0xff]
        %v713 = vld [vmem:[%s8 + $0x10] sm:$0xff]
        %v714 = vld [vmem:[%s8 + $0x18] sm:$0xff]
        %v715 = vld [vmem:[#allocation12] sm:$0xff]
        %v716 = vld [vmem:[#allocation12 + $0x8] sm:$0xff]
        %v717 = vld [vmem:[#allocation12 + $0x10] sm:$0xff]
        %v718 = vld [vmem:[#allocation12 + $0x18] sm:$0xff]
        %v719 = vld [vmem:[#allocation12 + $0x20] sm:$0xff]
        %v720 = vld [vmem:[#allocation12 + $0x28] sm:$0xff]
        %v721 = vld [vmem:[#allocation12 + $0x30] sm:$0xff]
        %v722 = vld [vmem:[#allocation12 + $0x38] sm:$0xff]
        %v723 = vld [vmem:[%s655] sm:$0xff]
        %s724 = scalar_lea.vmem %s655, 8
        %v725 = vld [vmem:[%s724] sm:$0xff]
        %vm726 = vcmask 523264
        %v727 = vsel %vm726, %v723, 0.0
        %728 = vadd.xlane.f32.xlu0 %v727
        %v729 = vpop.xlane.xlu0 %728
        %v730 = vsel %vm726, %v725, 0.0
        %731 = vadd.xlane.f32.xlu0 %v730
        %v732 = vpop.xlane.xlu0 %731
        %v733 = vadd.f32 %v729, %v732
        %v734 = vmul.f32 %v733, 0.0078125
        %v735 = vsub.f32 %v723, %v734
        %v736 = vsub.f32 %v725, %v734
        %v737 = vmul.f32 %v735, %v735
        %v738 = vsel %vm726, %v737, 0.0
        %739 = vadd.xlane.f32.xlu0 %v738
        %v740 = vpop.xlane.xlu0 %739
        %v741 = vmul.f32 %v736, %v736
        %v742 = vsel %vm726, %v741, 0.0
        %743 = vadd.xlane.f32.xlu0 %v742
        %v744 = vpop.xlane.xlu0 %743
        %v745 = vadd.f32 %v740, %v744
        %v746 = vmul.f32 %v745, 0.007874016
        %v747 = vrsqrt.pop %v746
        %v748 = vmul.f32 %v747, %v746
        %v749 = vmul.f32 %v748, %v747
        %v750 = vmul.f32 0.5, %v749
        %v751 = vsub.f32 1.5, %v750
        %v752 = vmul.f32 %v747, %v751
        %v753 = vmul.f32 %v746, %v752
        %vm754 = vcmp.eq.f32.partialorder %v746, inf
        %v755 = vsel %vm754, %v746, %v753
        %vm756 = vcmp.eq.f32.partialorder %v746, 0.0
        %v757 = vand.u32 %v746, 2147483648
        %v758 = vsel %vm756, %v757, %v755
        %v759 = vadd.f32 %v758, 0.001
        %v760 = vrcp.pop %v759
        %v761 = vmul.f32 %v735, %v760
        %v762 = vmul.f32 %v736, %v760
        %764 = vrot.lane.b32.xlu0 %v761, 2
        %v765 = vpop.permute.xlu0 %764
        %vm767 = vcmask 539664
        %768 = vst.msk [vmem:[#allocation2] sm:$0xff] %vm767, %v765
        %v769 = vld [vmem:[#allocation2] sm:$0xff]
        %s770 = sld [smem:[#allocation6]]
        %v771 = vstv %s770
        %v772 = vmul.f32 %v771, %v769
        %s773 = sld [smem:[#allocation6 + $0x1]]
        %v774 = vstv %s773
        %v775 = vmul.f32 %v774, %v769
        %777 = vrot.lane.b32.xlu0 %v775, 127
        %v778 = vpop.permute.xlu0 %777
        %v780 = vadd.f32 %v772, %v778
        %s781 = sld [smem:[#allocation6 + $0x2]]
        %v782 = vstv %s781
        %v783 = vmul.f32 %v782, %v769
        %785 = vrot.lane.b32.xlu0 %v783, 126
        %v786 = vpop.permute.xlu0 %785
        %v788 = vadd.f32 %v780, %v786
        %s789 = sld [smem:[#allocation6 + $0x3]]
        %v790 = vstv %s789
        %v791 = vmul.f32 %v790, %v769
        %793 = vrot.lane.b32.xlu0 %v791, 125
        %v794 = vpop.permute.xlu0 %793
        %v796 = vadd.f32 %v788, %v794
        %s797 = sld [smem:[#allocation6 + $0x4]]
        %v798 = vstv %s797
        %v799 = vmul.f32 %v798, %v769
        %801 = vrot.lane.b32.xlu0 %v799, 124
        %v802 = vpop.permute.xlu0 %801
        %v804 = vadd.f32 %v796, %v802
        %s805 = sld [smem:[#allocation10]]
        %v806 = vstv %s805
        %v807 = vadd.f32 %v804, %v806
        %809 = vrot.lane.b32.xlu0 %v807, 12
        %v810 = vpop.permute.xlu0 %809
        %vm812 = vcmask 621664
        %813 = vst.msk [vmem:[#allocation3] sm:$0xff] %vm812, %v810
        %s814 = sld [smem:[#allocation6 + $0x80]]
        %v815 = vstv %s814
        %v816 = vmul.f32 %v815, %v769
        %s817 = sld [smem:[#allocation6 + $0x81]]
        %v818 = vstv %s817
        %v819 = vmul.f32 %v818, %v769
        %821 = vrot.lane.b32.xlu0 %v819, 127
        %v822 = vpop.permute.xlu0 %821
        %v824 = vadd.f32 %v816, %v822
        %s825 = sld [smem:[#allocation6 + $0x82]]
        %v826 = vstv %s825
        %v827 = vmul.f32 %v826, %v769
        %829 = vrot.lane.b32.xlu0 %v827, 126
        %v830 = vpop.permute.xlu0 %829
        %v832 = vadd.f32 %v824, %v830
        %s833 = sld [smem:[#allocation6 + $0x83]]
        %v834 = vstv %s833
        %v835 = vmul.f32 %v834, %v769
        %837 = vrot.lane.b32.xlu0 %v835, 125
        %v838 = vpop.permute.xlu0 %837
        %v840 = vadd.f32 %v832, %v838
        %s841 = sld [smem:[#allocation6 + $0x84]]
        %v842 = vstv %s841
        %v843 = vmul.f32 %v842, %v769
        %845 = vrot.lane.b32.xlu0 %v843, 124
        %v846 = vpop.permute.xlu0 %845
        %v848 = vadd.f32 %v840, %v846
        %s849 = sld [smem:[#allocation10 + $0x1]]
        %v850 = vstv %s849
        %v851 = vadd.f32 %v848, %v850
        %853 = vrot.lane.b32.xlu0 %v851, 12
        %v854 = vpop.permute.xlu0 %853
        %856 = vst.msk [vmem:[#allocation3 + $0x8] sm:$0xff] %vm812, %v854
        %s857 = sld [smem:[#allocation6 + $0x100]]
        %v858 = vstv %s857
        %v859 = vmul.f32 %v858, %v769
        %s860 = sld [smem:[#allocation6 + $0x101]]
        %v861 = vstv %s860
        %v862 = vmul.f32 %v861, %v769
        %864 = vrot.lane.b32.xlu0 %v862, 127
        %v865 = vpop.permute.xlu0 %864
        %v867 = vadd.f32 %v859, %v865
        %s868 = sld [smem:[#allocation6 + $0x102]]
        %v869 = vstv %s868
        %v870 = vmul.f32 %v869, %v769
        %872 = vrot.lane.b32.xlu0 %v870, 126
        %v873 = vpop.permute.xlu0 %872
        %v875 = vadd.f32 %v867, %v873
        %s876 = sld [smem:[#allocation6 + $0x103]]
        %v877 = vstv %s876
        %v878 = vmul.f32 %v877, %v769
        %880 = vrot.lane.b32.xlu0 %v878, 125
        %v881 = vpop.permute.xlu0 %880
        %v883 = vadd.f32 %v875, %v881
        %s884 = sld [smem:[#allocation6 + $0x104]]
        %v885 = vstv %s884
        %v886 = vmul.f32 %v885, %v769
        %888 = vrot.lane.b32.xlu0 %v886, 124
        %v889 = vpop.permute.xlu0 %888
        %v891 = vadd.f32 %v883, %v889
        %s892 = sld [smem:[#allocation10 + $0x2]]
        %v893 = vstv %s892
        %v894 = vadd.f32 %v891, %v893
        %896 = vrot.lane.b32.xlu0 %v894, 12
        %v897 = vpop.permute.xlu0 %896
        %899 = vst.msk [vmem:[#allocation3 + $0x10] sm:$0xff] %vm812, %v897
        %s900 = sld [smem:[#allocation6 + $0x180]]
        %v901 = vstv %s900
        %v902 = vmul.f32 %v901, %v769
        %s903 = sld [smem:[#allocation6 + $0x181]]
        %v904 = vstv %s903
        %v905 = vmul.f32 %v904, %v769
        %907 = vrot.lane.b32.xlu0 %v905, 127
        %v908 = vpop.permute.xlu0 %907
        %v910 = vadd.f32 %v902, %v908
        %s911 = sld [smem:[#allocation6 + $0x182]]
        %v912 = vstv %s911
        %v913 = vmul.f32 %v912, %v769
        %915 = vrot.lane.b32.xlu0 %v913, 126
        %v916 = vpop.permute.xlu0 %915
        %v918 = vadd.f32 %v910, %v916
        %s919 = sld [smem:[#allocation6 + $0x183]]
        %v920 = vstv %s919
        %v921 = vmul.f32 %v920, %v769
        %923 = vrot.lane.b32.xlu0 %v921, 125
        %v924 = vpop.permute.xlu0 %923
        %v926 = vadd.f32 %v918, %v924
        %s927 = sld [smem:[#allocation6 + $0x184]]
        %v928 = vstv %s927
        %v929 = vmul.f32 %v928, %v769
        %931 = vrot.lane.b32.xlu0 %v929, 124
        %v932 = vpop.permute.xlu0 %931
        %v934 = vadd.f32 %v926, %v932
        %s935 = sld [smem:[#allocation10 + $0x3]]
        %v936 = vstv %s935
        %v937 = vadd.f32 %v934, %v936
        %939 = vrot.lane.b32.xlu0 %v937, 12
        %v940 = vpop.permute.xlu0 %939
        %942 = vst.msk [vmem:[#allocation3 + $0x18] sm:$0xff] %vm812, %v940
        %v943 = vld [vmem:[#allocation3] sm:$0xff]
        %v944 = vld [vmem:[#allocation3 + $0x8] sm:$0xff]
        %v945 = vld [vmem:[#allocation3 + $0x10] sm:$0xff]
        %v946 = vld [vmem:[#allocation3 + $0x18] sm:$0xff]
        %951 = vrot.lane.b32.xlu0 %v943, 117
        %v952 = vpop.permute.xlu0 %951
        %953 = vrot.lane.b32.xlu0 %v944, 117
        %v954 = vpop.permute.xlu0 %953
        %955 = vrot.lane.b32.xlu0 %v945, 117
        %v956 = vpop.permute.xlu0 %955
        %957 = vrot.lane.b32.xlu0 %v946, 117
        %v958 = vpop.permute.xlu0 %957
        %963 = vst.msk [vmem:[#allocation4] sm:$0xff] %vm726, %v952
        %964 = vst.msk [vmem:[#allocation4 + $0x8] sm:$0xff] %vm726, %v954
        %965 = vst.msk [vmem:[#allocation4 + $0x10] sm:$0xff] %vm726, %v956
        %966 = vst.msk [vmem:[#allocation4 + $0x18] sm:$0xff] %vm726, %v958
        %967 = vrot.lane.b32.xlu0 %v943, 116
        %v968 = vpop.permute.xlu0 %967
        %969 = vrot.lane.b32.xlu0 %v944, 116
        %v970 = vpop.permute.xlu0 %969
        %971 = vrot.lane.b32.xlu0 %v945, 116
        %v972 = vpop.permute.xlu0 %971
        %973 = vrot.lane.b32.xlu0 %v946, 116
        %v974 = vpop.permute.xlu0 %973
        %979 = vst.msk [vmem:[#allocation4 + $0x20] sm:$0xff] %vm726, %v968
        %980 = vst.msk [vmem:[#allocation4 + $0x28] sm:$0xff] %vm726, %v970
        %981 = vst.msk [vmem:[#allocation4 + $0x30] sm:$0xff] %vm726, %v972
        %982 = vst.msk [vmem:[#allocation4 + $0x38] sm:$0xff] %vm726, %v974
        %983 = vrot.lane.b32.xlu0 %v943, 115
        %v984 = vpop.permute.xlu0 %983
        %985 = vrot.lane.b32.xlu0 %v944, 115
        %v986 = vpop.permute.xlu0 %985
        %987 = vrot.lane.b32.xlu0 %v945, 115
        %v988 = vpop.permute.xlu0 %987
        %989 = vrot.lane.b32.xlu0 %v946, 115
        %v990 = vpop.permute.xlu0 %989
        %995 = vst.msk [vmem:[#allocation4 + $0x40] sm:$0xff] %vm726, %v984
        %996 = vst.msk [vmem:[#allocation4 + $0x48] sm:$0xff] %vm726, %v986
        %997 = vst.msk [vmem:[#allocation4 + $0x50] sm:$0xff] %vm726, %v988
        %998 = vst.msk [vmem:[#allocation4 + $0x58] sm:$0xff] %vm726, %v990
        %999 = vrot.lane.b32.xlu0 %v943, 119
        %v1000 = vpop.permute.xlu0 %999
        %1001 = vrot.lane.b32.xlu0 %v944, 119
        %v1002 = vpop.permute.xlu0 %1001
        %1003 = vrot.lane.b32.xlu0 %v945, 119
        %v1004 = vpop.permute.xlu0 %1003
        %1005 = vrot.lane.b32.xlu0 %v946, 119
        %v1006 = vpop.permute.xlu0 %1005
        %1011 = vst.msk [vmem:[#allocation4 + $0x60] sm:$0xff] %vm726, %v1000
        %1012 = vst.msk [vmem:[#allocation4 + $0x68] sm:$0xff] %vm726, %v1002
        %1013 = vst.msk [vmem:[#allocation4 + $0x70] sm:$0xff] %vm726, %v1004
        %1014 = vst.msk [vmem:[#allocation4 + $0x78] sm:$0xff] %vm726, %v1006
        %1015 = vst.msk [vmem:[#allocation4 + $0x80] sm:$0xff] %vm726, %v968
        %1016 = vst.msk [vmem:[#allocation4 + $0x88] sm:$0xff] %vm726, %v970
        %1017 = vst.msk [vmem:[#allocation4 + $0x90] sm:$0xff] %vm726, %v972
        %1018 = vst.msk [vmem:[#allocation4 + $0x98] sm:$0xff] %vm726, %v974
        %1019 = vrot.lane.b32.xlu0 %v943, 113
        %v1020 = vpop.permute.xlu0 %1019
        %1021 = vrot.lane.b32.xlu0 %v944, 113
        %v1022 = vpop.permute.xlu0 %1021
        %1023 = vrot.lane.b32.xlu0 %v945, 113
        %v1024 = vpop.permute.xlu0 %1023
        %1025 = vrot.lane.b32.xlu0 %v946, 113
        %v1026 = vpop.permute.xlu0 %1025
        %1031 = vst.msk [vmem:[#allocation4 + $0xa0] sm:$0xff] %vm726, %v1020
        %1032 = vst.msk [vmem:[#allocation4 + $0xa8] sm:$0xff] %vm726, %v1022
        %1033 = vst.msk [vmem:[#allocation4 + $0xb0] sm:$0xff] %vm726, %v1024
        %1034 = vst.msk [vmem:[#allocation4 + $0xb8] sm:$0xff] %vm726, %v1026
        %1035 = vrot.lane.b32.xlu0 %v943, 122
        %v1036 = vpop.permute.xlu0 %1035
        %1037 = vrot.lane.b32.xlu0 %v944, 122
        %v1038 = vpop.permute.xlu0 %1037
        %1039 = vrot.lane.b32.xlu0 %v945, 122
        %v1040 = vpop.permute.xlu0 %1039
        %1041 = vrot.lane.b32.xlu0 %v946, 122
        %v1042 = vpop.permute.xlu0 %1041
        %1047 = vst.msk [vmem:[#allocation4 + $0xc0] sm:$0xff] %vm726, %v1036
        %1048 = vst.msk [vmem:[#allocation4 + $0xc8] sm:$0xff] %vm726, %v1038
        %1049 = vst.msk [vmem:[#allocation4 + $0xd0] sm:$0xff] %vm726, %v1040
        %1050 = vst.msk [vmem:[#allocation4 + $0xd8] sm:$0xff] %vm726, %v1042
        %1051 = vst.msk [vmem:[#allocation4 + $0xe0] sm:$0xff] %vm726, %v968
        %1052 = vst.msk [vmem:[#allocation4 + $0xe8] sm:$0xff] %vm726, %v970
        %1053 = vst.msk [vmem:[#allocation4 + $0xf0] sm:$0xff] %vm726, %v972
        %1054 = vst.msk [vmem:[#allocation4 + $0xf8] sm:$0xff] %vm726, %v974
        %1055 = vrot.lane.b32.xlu0 %v943, 110
        %v1056 = vpop.permute.xlu0 %1055
        %1057 = vrot.lane.b32.xlu0 %v944, 110
        %v1058 = vpop.permute.xlu0 %1057
        %1059 = vrot.lane.b32.xlu0 %v945, 110
        %v1060 = vpop.permute.xlu0 %1059
        %1061 = vrot.lane.b32.xlu0 %v946, 110
        %v1062 = vpop.permute.xlu0 %1061
        %1067 = vst.msk [vmem:[#allocation4 + $0x100] sm:$0xff] %vm726, %v1056
        %1068 = vst.msk [vmem:[#allocation4 + $0x108] sm:$0xff] %vm726, %v1058
        %1069 = vst.msk [vmem:[#allocation4 + $0x110] sm:$0xff] %vm726, %v1060
        %1070 = vst.msk [vmem:[#allocation4 + $0x118] sm:$0xff] %vm726, %v1062
        %1071 = vst.msk [vmem:[#allocation4 + $0x120] sm:$0xff] %vm726, %v943
        %1072 = vst.msk [vmem:[#allocation4 + $0x128] sm:$0xff] %vm726, %v944
        %1073 = vst.msk [vmem:[#allocation4 + $0x130] sm:$0xff] %vm726, %v945
        %1074 = vst.msk [vmem:[#allocation4 + $0x138] sm:$0xff] %vm726, %v946
        %1075 = vst.msk [vmem:[#allocation4 + $0x140] sm:$0xff] %vm726, %v968
        %1076 = vst.msk [vmem:[#allocation4 + $0x148] sm:$0xff] %vm726, %v970
        %1077 = vst.msk [vmem:[#allocation4 + $0x150] sm:$0xff] %vm726, %v972
        %1078 = vst.msk [vmem:[#allocation4 + $0x158] sm:$0xff] %vm726, %v974
        %1079 = vrot.lane.b32.xlu0 %v943, 104
        %v1080 = vpop.permute.xlu0 %1079
        %1081 = vrot.lane.b32.xlu0 %v944, 104
        %v1082 = vpop.permute.xlu0 %1081
        %1083 = vrot.lane.b32.xlu0 %v945, 104
        %v1084 = vpop.permute.xlu0 %1083
        %1085 = vrot.lane.b32.xlu0 %v946, 104
        %v1086 = vpop.permute.xlu0 %1085
        %1091 = vst.msk [vmem:[#allocation4 + $0x160] sm:$0xff] %vm726, %v1080
        %1092 = vst.msk [vmem:[#allocation4 + $0x168] sm:$0xff] %vm726, %v1082
        %1093 = vst.msk [vmem:[#allocation4 + $0x170] sm:$0xff] %vm726, %v1084
        %1094 = vst.msk [vmem:[#allocation4 + $0x178] sm:$0xff] %vm726, %v1086
        %v1095 = vld [vmem:[#allocation4] sm:$0xff]
        %v1096 = vld [vmem:[#allocation4 + $0x8] sm:$0xff]
        %v1097 = vld [vmem:[#allocation4 + $0x10] sm:$0xff]
        %v1098 = vld [vmem:[#allocation4 + $0x18] sm:$0xff]
        %v1099 = vld [vmem:[#allocation4 + $0x20] sm:$0xff]
        %v1100 = vld [vmem:[#allocation4 + $0x28] sm:$0xff]
        %v1101 = vld [vmem:[#allocation4 + $0x30] sm:$0xff]
        %v1102 = vld [vmem:[#allocation4 + $0x38] sm:$0xff]
        %v1103 = vld [vmem:[#allocation4 + $0x40] sm:$0xff]
        %v1104 = vld [vmem:[#allocation4 + $0x48] sm:$0xff]
        %v1105 = vld [vmem:[#allocation4 + $0x50] sm:$0xff]
        %v1106 = vld [vmem:[#allocation4 + $0x58] sm:$0xff]
        %v1107 = vld [vmem:[#allocation4 + $0x60] sm:$0xff]
        %v1108 = vld [vmem:[#allocation4 + $0x68] sm:$0xff]
        %v1109 = vld [vmem:[#allocation4 + $0x70] sm:$0xff]
        %v1110 = vld [vmem:[#allocation4 + $0x78] sm:$0xff]
        %v1111 = vld [vmem:[#allocation4 + $0x80] sm:$0xff]
        %v1112 = vld [vmem:[#allocation4 + $0x88] sm:$0xff]
        %v1113 = vld [vmem:[#allocation4 + $0x90] sm:$0xff]
        %v1114 = vld [vmem:[#allocation4 + $0x98] sm:$0xff]
        %v1115 = vld [vmem:[#allocation4 + $0xa0] sm:$0xff]
        %v1116 = vld [vmem:[#allocation4 + $0xa8] sm:$0xff]
        %v1117 = vld [vmem:[#allocation4 + $0xb0] sm:$0xff]
        %v1118 = vld [vmem:[#allocation4 + $0xb8] sm:$0xff]
        %v1119 = vld [vmem:[#allocation4 + $0xc0] sm:$0xff]
        %v1120 = vld [vmem:[#allocation4 + $0xc8] sm:$0xff]
        %v1121 = vld [vmem:[#allocation4 + $0xd0] sm:$0xff]
        %v1122 = vld [vmem:[#allocation4 + $0xd8] sm:$0xff]
        %v1123 = vld [vmem:[#allocation4 + $0xe0] sm:$0xff]
        %v1124 = vld [vmem:[#allocation4 + $0xe8] sm:$0xff]
        %v1125 = vld [vmem:[#allocation4 + $0xf0] sm:$0xff]
        %v1126 = vld [vmem:[#allocation4 + $0xf8] sm:$0xff]
        %v1127 = vld [vmem:[#allocation4 + $0x100] sm:$0xff]
        %v1128 = vld [vmem:[#allocation4 + $0x108] sm:$0xff]
        %v1129 = vld [vmem:[#allocation4 + $0x110] sm:$0xff]
        %v1130 = vld [vmem:[#allocation4 + $0x118] sm:$0xff]
        %v1131 = vld [vmem:[#allocation4 + $0x120] sm:$0xff]
        %v1132 = vld [vmem:[#allocation4 + $0x128] sm:$0xff]
        %v1133 = vld [vmem:[#allocation4 + $0x130] sm:$0xff]
        %v1134 = vld [vmem:[#allocation4 + $0x138] sm:$0xff]
        %v1135 = vld [vmem:[#allocation4 + $0x140] sm:$0xff]
        %v1136 = vld [vmem:[#allocation4 + $0x148] sm:$0xff]
        %v1137 = vld [vmem:[#allocation4 + $0x150] sm:$0xff]
        %v1138 = vld [vmem:[#allocation4 + $0x158] sm:$0xff]
        %v1139 = vld [vmem:[#allocation4 + $0x160] sm:$0xff]
        %v1140 = vld [vmem:[#allocation4 + $0x168] sm:$0xff]
        %v1141 = vld [vmem:[#allocation4 + $0x170] sm:$0xff]
        %v1142 = vld [vmem:[#allocation4 + $0x178] sm:$0xff]
        %1144 = vset.pattern.permute.xlu0 0
        %1145 = vperm.xlu0 %1144, %v695
        %v1146 = vpop.permute.xlu0 %1145
        %1149 = vset.pattern.permute.xlu0 0
        %1150 = vperm.xlu0 %1149, %v696
        %v1151 = vpop.permute.xlu0 %1150
        %1154 = vset.pattern.permute.xlu0 0
        %1155 = vperm.xlu0 %1154, %v697
        %v1156 = vpop.permute.xlu0 %1155
        %1159 = vset.pattern.permute.xlu0 0
        %1160 = vperm.xlu0 %1159, %v698
        %v1161 = vpop.permute.xlu0 %1160
        %1163 = vmatpush.msra.mxu0 %v1110
        %1164 = vmatpush.msra.mxu0 %v1109
        %1165 = vmatpush.msra.mxu0 %v1108
        %1166 = vmatpush.msra.mxu0 %v1107
        %1167 = vmatpush.msra.mxu0 %v1106
        %1168 = vmatpush.msra.mxu0 %v1105
        %1169 = vmatpush.msra.mxu0 %v1104
        %1170 = vmatpush.msra.mxu0 %v1103
        %1171 = vmatpush.msra.mxu0 %v1102
        %1172 = vmatpush.msra.mxu0 %v1101
        %1173 = vmatpush.msra.mxu0 %v1100
        %1174 = vmatpush.msra.mxu0 %v1099
        %1175 = vmatpush.msra.mxu0 %v1098
        %1176 = vmatpush.msra.mxu0 %v1097
        %1177 = vmatpush.msra.mxu0 %v1096
        %1178 = vmatpush.msra.mxu0 %v1095
        %1179 = vmatmul.f32.gmra.mxu0 %v683
        %v1180 = vpop.f32.mrf.mxu0
        %v1181 = vadd.f32 %v1146, %v1180
        %1182 = vmatmul.f32.gmra.mxu0 %v686
        %v1183 = vpop.f32.mrf.mxu0
        %v1184 = vadd.f32 %v1151, %v1183
        %1185 = vmatmul.f32.gmra.mxu0 %v689
        %v1186 = vpop.f32.mrf.mxu0
        %v1187 = vadd.f32 %v1156, %v1186
        %1188 = vmatmul.f32.gmra.mxu0 %v692
        %v1189 = vpop.f32.mrf.mxu0
        %v1190 = vadd.f32 %v1161, %v1189
        %1191 = vdwg.mxu0
        %1192 = vmatpush.msra.mxu0 %v1126
        %1193 = vmatpush.msra.mxu0 %v1125
        %1194 = vmatpush.msra.mxu0 %v1124
        %1195 = vmatpush.msra.mxu0 %v1123
        %1196 = vmatpush.msra.mxu0 %v1122
        %1197 = vmatpush.msra.mxu0 %v1121
        %1198 = vmatpush.msra.mxu0 %v1120
        %1199 = vmatpush.msra.mxu0 %v1119
        %1200 = vmatpush.msra.mxu0 %v1118
        %1201 = vmatpush.msra.mxu0 %v1117
        %1202 = vmatpush.msra.mxu0 %v1116
        %1203 = vmatpush.msra.mxu0 %v1115
        %1204 = vmatpush.msra.mxu0 %v1114
        %1205 = vmatpush.msra.mxu0 %v1113
        %1206 = vmatpush.msra.mxu0 %v1112
        %1207 = vmatpush.msra.mxu0 %v1111
        %1208 = vmatmul.f32.gmra.mxu0 %v684
        %v1209 = vpop.f32.mrf.mxu0
        %v1210 = vadd.f32 %v1181, %v1209
        %1211 = vmatmul.f32.gmra.mxu0 %v687
        %v1212 = vpop.f32.mrf.mxu0
        %v1213 = vadd.f32 %v1184, %v1212
        %1214 = vmatmul.f32.gmra.mxu0 %v690
        %v1215 = vpop.f32.mrf.mxu0
        %v1216 = vadd.f32 %v1187, %v1215
        %1217 = vmatmul.f32.gmra.mxu0 %v693
        %v1218 = vpop.f32.mrf.mxu0
        %v1219 = vadd.f32 %v1190, %v1218
        %1220 = vdwg.mxu0
        %1221 = vmatpush.msra.mxu0 %v1142
        %1222 = vmatpush.msra.mxu0 %v1141
        %1223 = vmatpush.msra.mxu0 %v1140
        %1224 = vmatpush.msra.mxu0 %v1139
        %1225 = vmatpush.msra.mxu0 %v1138
        %1226 = vmatpush.msra.mxu0 %v1137
        %1227 = vmatpush.msra.mxu0 %v1136
        %1228 = vmatpush.msra.mxu0 %v1135
        %1229 = vmatpush.msra.mxu0 %v1134
        %1230 = vmatpush.msra.mxu0 %v1133
        %1231 = vmatpush.msra.mxu0 %v1132
        %1232 = vmatpush.msra.mxu0 %v1131
        %1233 = vmatpush.msra.mxu0 %v1130
        %1234 = vmatpush.msra.mxu0 %v1129
        %1235 = vmatpush.msra.mxu0 %v1128
        %1236 = vmatpush.msra.mxu0 %v1127
        %1237 = vmatmul.f32.gmra.mxu0 %v685
        %v1238 = vpop.f32.mrf.mxu0
        %v1239 = vadd.f32 %v1210, %v1238
        %1240 = vmatmul.f32.gmra.mxu0 %v688
        %v1241 = vpop.f32.mrf.mxu0
        %v1242 = vadd.f32 %v1213, %v1241
        %1243 = vmatmul.f32.gmra.mxu0 %v691
        %v1244 = vpop.f32.mrf.mxu0
        %v1245 = vadd.f32 %v1216, %v1244
        %1246 = vmatmul.f32.gmra.mxu0 %v694
        %v1247 = vpop.f32.mrf.mxu0
        %v1248 = vadd.f32 %v1219, %v1247
        %1249 = vdwg.mxu0
        %1254 = vrot.lane.b32.xlu0 %v1239, 14
        %v1255 = vpop.permute.xlu0 %1254
        %1256 = vrot.lane.b32.xlu0 %v1242, 14
        %v1257 = vpop.permute.xlu0 %1256
        %1258 = vrot.lane.b32.xlu0 %v1245, 14
        %v1259 = vpop.permute.xlu0 %1258
        %1260 = vrot.lane.b32.xlu0 %v1248, 14
        %v1261 = vpop.permute.xlu0 %1260
        %vm1266 = vcmask 638064
        %1267 = vst.msk [vmem:[#allocation5] sm:$0xff] %vm1266, %v1255
        %1268 = vst.msk [vmem:[#allocation5 + $0x8] sm:$0xff] %vm1266, %v1257
        %1269 = vst.msk [vmem:[#allocation5 + $0x10] sm:$0xff] %vm1266, %v1259
        %1270 = vst.msk [vmem:[#allocation5 + $0x18] sm:$0xff] %vm1266, %v1261
        %v1271 = vld [vmem:[#allocation5] sm:$0xff]
        %v1272 = vld [vmem:[#allocation5 + $0x8] sm:$0xff]
        %v1273 = vld [vmem:[#allocation5 + $0x10] sm:$0xff]
        %v1274 = vld [vmem:[#allocation5 + $0x18] sm:$0xff]
        %1276 = vset.pattern.permute.xlu0 0
        %1277 = vperm.xlu0 %1276, %v699
        %v1278 = vpop.permute.xlu0 %1277
        %1281 = vset.pattern.permute.xlu0 0
        %1282 = vperm.xlu0 %1281, %v700
        %v1283 = vpop.permute.xlu0 %1282
        %1286 = vset.pattern.permute.xlu0 0
        %1287 = vperm.xlu0 %1286, %v701
        %v1288 = vpop.permute.xlu0 %1287
        %1291 = vset.pattern.permute.xlu0 0
        %1292 = vperm.xlu0 %1291, %v702
        %v1293 = vpop.permute.xlu0 %1292
        %v1295 = vmul.f32 %v1278, %v1271
        %v1296 = vmul.f32 %v1283, %v1272
        %v1297 = vmul.f32 %v1288, %v1273
        %v1298 = vmul.f32 %v1293, %v1274
        %1299 = vset.pattern.permute.xlu0 1
        %1300 = vperm.xlu0 %1299, %v699
        %v1301 = vpop.permute.xlu0 %1300
        %1303 = vset.pattern.permute.xlu0 1
        %1304 = vperm.xlu0 %1303, %v700
        %v1305 = vpop.permute.xlu0 %1304
        %1307 = vset.pattern.permute.xlu0 1
        %1308 = vperm.xlu0 %1307, %v701
        %v1309 = vpop.permute.xlu0 %1308
        %1311 = vset.pattern.permute.xlu0 1
        %1312 = vperm.xlu0 %1311, %v702
        %v1313 = vpop.permute.xlu0 %1312
        %v1315 = vmul.f32 %v1301, %v1271
        %v1316 = vmul.f32 %v1305, %v1272
        %v1317 = vmul.f32 %v1309, %v1273
        %v1318 = vmul.f32 %v1313, %v1274
        %1323 = vrot.lane.b32.xlu0 %v1315, 127
        %v1324 = vpop.permute.xlu0 %1323
        %1325 = vrot.lane.b32.xlu0 %v1316, 127
        %v1326 = vpop.permute.xlu0 %1325
        %1327 = vrot.lane.b32.xlu0 %v1317, 127
        %v1328 = vpop.permute.xlu0 %1327
        %1329 = vrot.lane.b32.xlu0 %v1318, 127
        %v1330 = vpop.permute.xlu0 %1329
        %v1335 = vadd.f32 %v1295, %v1324
        %v1336 = vadd.f32 %v1296, %v1326
        %v1337 = vadd.f32 %v1297, %v1328
        %v1338 = vadd.f32 %v1298, %v1330
        %1339 = vset.pattern.permute.xlu0 2
        %1340 = vperm.xlu0 %1339, %v699
        %v1341 = vpop.permute.xlu0 %1340
        %1343 = vset.pattern.permute.xlu0 2
        %1344 = vperm.xlu0 %1343, %v700
        %v1345 = vpop.permute.xlu0 %1344
        %1347 = vset.pattern.permute.xlu0 2
        %1348 = vperm.xlu0 %1347, %v701
        %v1349 = vpop.permute.xlu0 %1348
        %1351 = vset.pattern.permute.xlu0 2
        %1352 = vperm.xlu0 %1351, %v702
        %v1353 = vpop.permute.xlu0 %1352
        %v1355 = vmul.f32 %v1341, %v1271
        %v1356 = vmul.f32 %v1345, %v1272
        %v1357 = vmul.f32 %v1349, %v1273
        %v1358 = vmul.f32 %v1353, %v1274
        %1363 = vrot.lane.b32.xlu0 %v1355, 126
        %v1364 = vpop.permute.xlu0 %1363
        %1365 = vrot.lane.b32.xlu0 %v1356, 126
        %v1366 = vpop.permute.xlu0 %1365
        %1367 = vrot.lane.b32.xlu0 %v1357, 126
        %v1368 = vpop.permute.xlu0 %1367
        %1369 = vrot.lane.b32.xlu0 %v1358, 126
        %v1370 = vpop.permute.xlu0 %1369
        %v1375 = vadd.f32 %v1335, %v1364
        %v1376 = vadd.f32 %v1336, %v1366
        %v1377 = vadd.f32 %v1337, %v1368
        %v1378 = vadd.f32 %v1338, %v1370
        %1379 = vset.pattern.permute.xlu0 3
        %1380 = vperm.xlu0 %1379, %v699
        %v1381 = vpop.permute.xlu0 %1380
        %1383 = vset.pattern.permute.xlu0 3
        %1384 = vperm.xlu0 %1383, %v700
        %v1385 = vpop.permute.xlu0 %1384
        %1387 = vset.pattern.permute.xlu0 3
        %1388 = vperm.xlu0 %1387, %v701
        %v1389 = vpop.permute.xlu0 %1388
        %1391 = vset.pattern.permute.xlu0 3
        %1392 = vperm.xlu0 %1391, %v702
        %v1393 = vpop.permute.xlu0 %1392
        %v1395 = vmul.f32 %v1381, %v1271
        %v1396 = vmul.f32 %v1385, %v1272
        %v1397 = vmul.f32 %v1389, %v1273
        %v1398 = vmul.f32 %v1393, %v1274
        %1403 = vrot.lane.b32.xlu0 %v1395, 125
        %v1404 = vpop.permute.xlu0 %1403
        %1405 = vrot.lane.b32.xlu0 %v1396, 125
        %v1406 = vpop.permute.xlu0 %1405
        %1407 = vrot.lane.b32.xlu0 %v1397, 125
        %v1408 = vpop.permute.xlu0 %1407
        %1409 = vrot.lane.b32.xlu0 %v1398, 125
        %v1410 = vpop.permute.xlu0 %1409
        %v1415 = vadd.f32 %v1375, %v1404
        %v1416 = vadd.f32 %v1376, %v1406
        %v1417 = vadd.f32 %v1377, %v1408
        %v1418 = vadd.f32 %v1378, %v1410
        %1419 = vset.pattern.permute.xlu0 4
        %1420 = vperm.xlu0 %1419, %v699
        %v1421 = vpop.permute.xlu0 %1420
        %1423 = vset.pattern.permute.xlu0 4
        %1424 = vperm.xlu0 %1423, %v700
        %v1425 = vpop.permute.xlu0 %1424
        %1427 = vset.pattern.permute.xlu0 4
        %1428 = vperm.xlu0 %1427, %v701
        %v1429 = vpop.permute.xlu0 %1428
        %1431 = vset.pattern.permute.xlu0 4
        %1432 = vperm.xlu0 %1431, %v702
        %v1433 = vpop.permute.xlu0 %1432
        %v1435 = vmul.f32 %v1421, %v1271
        %v1436 = vmul.f32 %v1425, %v1272
        %v1437 = vmul.f32 %v1429, %v1273
        %v1438 = vmul.f32 %v1433, %v1274
        %1443 = vrot.lane.b32.xlu0 %v1435, 124
        %v1444 = vpop.permute.xlu0 %1443
        %1445 = vrot.lane.b32.xlu0 %v1436, 124
        %v1446 = vpop.permute.xlu0 %1445
        %1447 = vrot.lane.b32.xlu0 %v1437, 124
        %v1448 = vpop.permute.xlu0 %1447
        %1449 = vrot.lane.b32.xlu0 %v1438, 124
        %v1450 = vpop.permute.xlu0 %1449
        %v1455 = vadd.f32 %v1415, %v1444
        %v1456 = vadd.f32 %v1416, %v1446
        %v1457 = vadd.f32 %v1417, %v1448
        %v1458 = vadd.f32 %v1418, %v1450
        %1459 = vset.pattern.permute.xlu0 5
        %1460 = vperm.xlu0 %1459, %v699
        %v1461 = vpop.permute.xlu0 %1460
        %1463 = vset.pattern.permute.xlu0 5
        %1464 = vperm.xlu0 %1463, %v700
        %v1465 = vpop.permute.xlu0 %1464
        %1467 = vset.pattern.permute.xlu0 5
        %1468 = vperm.xlu0 %1467, %v701
        %v1469 = vpop.permute.xlu0 %1468
        %1471 = vset.pattern.permute.xlu0 5
        %1472 = vperm.xlu0 %1471, %v702
        %v1473 = vpop.permute.xlu0 %1472
        %v1475 = vmul.f32 %v1461, %v1271
        %v1476 = vmul.f32 %v1465, %v1272
        %v1477 = vmul.f32 %v1469, %v1273
        %v1478 = vmul.f32 %v1473, %v1274
        %1483 = vrot.lane.b32.xlu0 %v1475, 123
        %v1484 = vpop.permute.xlu0 %1483
        %1485 = vrot.lane.b32.xlu0 %v1476, 123
        %v1486 = vpop.permute.xlu0 %1485
        %1487 = vrot.lane.b32.xlu0 %v1477, 123
        %v1488 = vpop.permute.xlu0 %1487
        %1489 = vrot.lane.b32.xlu0 %v1478, 123
        %v1490 = vpop.permute.xlu0 %1489
        %v1495 = vadd.f32 %v1455, %v1484
        %v1496 = vadd.f32 %v1456, %v1486
        %v1497 = vadd.f32 %v1457, %v1488
        %v1498 = vadd.f32 %v1458, %v1490
        %1499 = vset.pattern.permute.xlu0 6
        %1500 = vperm.xlu0 %1499, %v699
        %v1501 = vpop.permute.xlu0 %1500
        %1503 = vset.pattern.permute.xlu0 6
        %1504 = vperm.xlu0 %1503, %v700
        %v1505 = vpop.permute.xlu0 %1504
        %1507 = vset.pattern.permute.xlu0 6
        %1508 = vperm.xlu0 %1507, %v701
        %v1509 = vpop.permute.xlu0 %1508
        %1511 = vset.pattern.permute.xlu0 6
        %1512 = vperm.xlu0 %1511, %v702
        %v1513 = vpop.permute.xlu0 %1512
        %v1515 = vmul.f32 %v1501, %v1271
        %v1516 = vmul.f32 %v1505, %v1272
        %v1517 = vmul.f32 %v1509, %v1273
        %v1518 = vmul.f32 %v1513, %v1274
        %1523 = vrot.lane.b32.xlu0 %v1515, 122
        %v1524 = vpop.permute.xlu0 %1523
        %1525 = vrot.lane.b32.xlu0 %v1516, 122
        %v1526 = vpop.permute.xlu0 %1525
        %1527 = vrot.lane.b32.xlu0 %v1517, 122
        %v1528 = vpop.permute.xlu0 %1527
        %1529 = vrot.lane.b32.xlu0 %v1518, 122
        %v1530 = vpop.permute.xlu0 %1529
        %v1535 = vadd.f32 %v1495, %v1524
        %v1536 = vadd.f32 %v1496, %v1526
        %v1537 = vadd.f32 %v1497, %v1528
        %v1538 = vadd.f32 %v1498, %v1530
        %1539 = vset.pattern.permute.xlu0 7
        %1540 = vperm.xlu0 %1539, %v699
        %v1541 = vpop.permute.xlu0 %1540
        %1543 = vset.pattern.permute.xlu0 7
        %1544 = vperm.xlu0 %1543, %v700
        %v1545 = vpop.permute.xlu0 %1544
        %1547 = vset.pattern.permute.xlu0 7
        %1548 = vperm.xlu0 %1547, %v701
        %v1549 = vpop.permute.xlu0 %1548
        %1551 = vset.pattern.permute.xlu0 7
        %1552 = vperm.xlu0 %1551, %v702
        %v1553 = vpop.permute.xlu0 %1552
        %v1555 = vmul.f32 %v1541, %v1271
        %v1556 = vmul.f32 %v1545, %v1272
        %v1557 = vmul.f32 %v1549, %v1273
        %v1558 = vmul.f32 %v1553, %v1274
        %1563 = vrot.lane.b32.xlu0 %v1555, 121
        %v1564 = vpop.permute.xlu0 %1563
        %1565 = vrot.lane.b32.xlu0 %v1556, 121
        %v1566 = vpop.permute.xlu0 %1565
        %1567 = vrot.lane.b32.xlu0 %v1557, 121
        %v1568 = vpop.permute.xlu0 %1567
        %1569 = vrot.lane.b32.xlu0 %v1558, 121
        %v1570 = vpop.permute.xlu0 %1569
        %v1575 = vadd.f32 %v1535, %v1564
        %v1576 = vadd.f32 %v1536, %v1566
        %v1577 = vadd.f32 %v1537, %v1568
        %v1578 = vadd.f32 %v1538, %v1570
        %1579 = vset.pattern.permute.xlu0 8
        %1580 = vperm.xlu0 %1579, %v699
        %v1581 = vpop.permute.xlu0 %1580
        %1583 = vset.pattern.permute.xlu0 8
        %1584 = vperm.xlu0 %1583, %v700
        %v1585 = vpop.permute.xlu0 %1584
        %1587 = vset.pattern.permute.xlu0 8
        %1588 = vperm.xlu0 %1587, %v701
        %v1589 = vpop.permute.xlu0 %1588
        %1591 = vset.pattern.permute.xlu0 8
        %1592 = vperm.xlu0 %1591, %v702
        %v1593 = vpop.permute.xlu0 %1592
        %v1595 = vmul.f32 %v1581, %v1271
        %v1596 = vmul.f32 %v1585, %v1272
        %v1597 = vmul.f32 %v1589, %v1273
        %v1598 = vmul.f32 %v1593, %v1274
        %1603 = vrot.lane.b32.xlu0 %v1595, 120
        %v1604 = vpop.permute.xlu0 %1603
        %1605 = vrot.lane.b32.xlu0 %v1596, 120
        %v1606 = vpop.permute.xlu0 %1605
        %1607 = vrot.lane.b32.xlu0 %v1597, 120
        %v1608 = vpop.permute.xlu0 %1607
        %1609 = vrot.lane.b32.xlu0 %v1598, 120
        %v1610 = vpop.permute.xlu0 %1609
        %v1615 = vadd.f32 %v1575, %v1604
        %v1616 = vadd.f32 %v1576, %v1606
        %v1617 = vadd.f32 %v1577, %v1608
        %v1618 = vadd.f32 %v1578, %v1610
        %1619 = vset.pattern.permute.xlu0 9
        %1620 = vperm.xlu0 %1619, %v699
        %v1621 = vpop.permute.xlu0 %1620
        %1623 = vset.pattern.permute.xlu0 9
        %1624 = vperm.xlu0 %1623, %v700
        %v1625 = vpop.permute.xlu0 %1624
        %1627 = vset.pattern.permute.xlu0 9
        %1628 = vperm.xlu0 %1627, %v701
        %v1629 = vpop.permute.xlu0 %1628
        %1631 = vset.pattern.permute.xlu0 9
        %1632 = vperm.xlu0 %1631, %v702
        %v1633 = vpop.permute.xlu0 %1632
        %v1635 = vmul.f32 %v1621, %v1271
        %v1636 = vmul.f32 %v1625, %v1272
        %v1637 = vmul.f32 %v1629, %v1273
        %v1638 = vmul.f32 %v1633, %v1274
        %1643 = vrot.lane.b32.xlu0 %v1635, 119
        %v1644 = vpop.permute.xlu0 %1643
        %1645 = vrot.lane.b32.xlu0 %v1636, 119
        %v1646 = vpop.permute.xlu0 %1645
        %1647 = vrot.lane.b32.xlu0 %v1637, 119
        %v1648 = vpop.permute.xlu0 %1647
        %1649 = vrot.lane.b32.xlu0 %v1638, 119
        %v1650 = vpop.permute.xlu0 %1649
        %v1655 = vadd.f32 %v1615, %v1644
        %v1656 = vadd.f32 %v1616, %v1646
        %v1657 = vadd.f32 %v1617, %v1648
        %v1658 = vadd.f32 %v1618, %v1650
        %1659 = vset.pattern.permute.xlu0 10
        %1660 = vperm.xlu0 %1659, %v699
        %v1661 = vpop.permute.xlu0 %1660
        %1663 = vset.pattern.permute.xlu0 10
        %1664 = vperm.xlu0 %1663, %v700
        %v1665 = vpop.permute.xlu0 %1664
        %1667 = vset.pattern.permute.xlu0 10
        %1668 = vperm.xlu0 %1667, %v701
        %v1669 = vpop.permute.xlu0 %1668
        %1671 = vset.pattern.permute.xlu0 10
        %1672 = vperm.xlu0 %1671, %v702
        %v1673 = vpop.permute.xlu0 %1672
        %v1675 = vmul.f32 %v1661, %v1271
        %v1676 = vmul.f32 %v1665, %v1272
        %v1677 = vmul.f32 %v1669, %v1273
        %v1678 = vmul.f32 %v1673, %v1274
        %1683 = vrot.lane.b32.xlu0 %v1675, 118
        %v1684 = vpop.permute.xlu0 %1683
        %1685 = vrot.lane.b32.xlu0 %v1676, 118
        %v1686 = vpop.permute.xlu0 %1685
        %1687 = vrot.lane.b32.xlu0 %v1677, 118
        %v1688 = vpop.permute.xlu0 %1687
        %1689 = vrot.lane.b32.xlu0 %v1678, 118
        %v1690 = vpop.permute.xlu0 %1689
        %v1695 = vadd.f32 %v1655, %v1684
        %v1696 = vadd.f32 %v1656, %v1686
        %v1697 = vadd.f32 %v1657, %v1688
        %v1698 = vadd.f32 %v1658, %v1690
        %1699 = vset.pattern.permute.xlu0 11
        %1700 = vperm.xlu0 %1699, %v699
        %v1701 = vpop.permute.xlu0 %1700
        %1703 = vset.pattern.permute.xlu0 11
        %1704 = vperm.xlu0 %1703, %v700
        %v1705 = vpop.permute.xlu0 %1704
        %1707 = vset.pattern.permute.xlu0 11
        %1708 = vperm.xlu0 %1707, %v701
        %v1709 = vpop.permute.xlu0 %1708
        %1711 = vset.pattern.permute.xlu0 11
        %1712 = vperm.xlu0 %1711, %v702
        %v1713 = vpop.permute.xlu0 %1712
        %v1715 = vmul.f32 %v1701, %v1271
        %v1716 = vmul.f32 %v1705, %v1272
        %v1717 = vmul.f32 %v1709, %v1273
        %v1718 = vmul.f32 %v1713, %v1274
        %1723 = vrot.lane.b32.xlu0 %v1715, 117
        %v1724 = vpop.permute.xlu0 %1723
        %1725 = vrot.lane.b32.xlu0 %v1716, 117
        %v1726 = vpop.permute.xlu0 %1725
        %1727 = vrot.lane.b32.xlu0 %v1717, 117
        %v1728 = vpop.permute.xlu0 %1727
        %1729 = vrot.lane.b32.xlu0 %v1718, 117
        %v1730 = vpop.permute.xlu0 %1729
        %v1735 = vadd.f32 %v1695, %v1724
        %v1736 = vadd.f32 %v1696, %v1726
        %v1737 = vadd.f32 %v1697, %v1728
        %v1738 = vadd.f32 %v1698, %v1730
        %1739 = vset.pattern.permute.xlu0 12
        %1740 = vperm.xlu0 %1739, %v699
        %v1741 = vpop.permute.xlu0 %1740
        %1743 = vset.pattern.permute.xlu0 12
        %1744 = vperm.xlu0 %1743, %v700
        %v1745 = vpop.permute.xlu0 %1744
        %1747 = vset.pattern.permute.xlu0 12
        %1748 = vperm.xlu0 %1747, %v701
        %v1749 = vpop.permute.xlu0 %1748
        %1751 = vset.pattern.permute.xlu0 12
        %1752 = vperm.xlu0 %1751, %v702
        %v1753 = vpop.permute.xlu0 %1752
        %v1755 = vmul.f32 %v1741, %v1271
        %v1756 = vmul.f32 %v1745, %v1272
        %v1757 = vmul.f32 %v1749, %v1273
        %v1758 = vmul.f32 %v1753, %v1274
        %1763 = vrot.lane.b32.xlu0 %v1755, 116
        %v1764 = vpop.permute.xlu0 %1763
        %1765 = vrot.lane.b32.xlu0 %v1756, 116
        %v1766 = vpop.permute.xlu0 %1765
        %1767 = vrot.lane.b32.xlu0 %v1757, 116
        %v1768 = vpop.permute.xlu0 %1767
        %1769 = vrot.lane.b32.xlu0 %v1758, 116
        %v1770 = vpop.permute.xlu0 %1769
        %v1775 = vadd.f32 %v1735, %v1764
        %v1776 = vadd.f32 %v1736, %v1766
        %v1777 = vadd.f32 %v1737, %v1768
        %v1778 = vadd.f32 %v1738, %v1770
        %1779 = vset.pattern.permute.xlu0 13
        %1780 = vperm.xlu0 %1779, %v699
        %v1781 = vpop.permute.xlu0 %1780
        %1783 = vset.pattern.permute.xlu0 13
        %1784 = vperm.xlu0 %1783, %v700
        %v1785 = vpop.permute.xlu0 %1784
        %1787 = vset.pattern.permute.xlu0 13
        %1788 = vperm.xlu0 %1787, %v701
        %v1789 = vpop.permute.xlu0 %1788
        %1791 = vset.pattern.permute.xlu0 13
        %1792 = vperm.xlu0 %1791, %v702
        %v1793 = vpop.permute.xlu0 %1792
        %v1795 = vmul.f32 %v1781, %v1271
        %v1796 = vmul.f32 %v1785, %v1272
        %v1797 = vmul.f32 %v1789, %v1273
        %v1798 = vmul.f32 %v1793, %v1274
        %1803 = vrot.lane.b32.xlu0 %v1795, 115
        %v1804 = vpop.permute.xlu0 %1803
        %1805 = vrot.lane.b32.xlu0 %v1796, 115
        %v1806 = vpop.permute.xlu0 %1805
        %1807 = vrot.lane.b32.xlu0 %v1797, 115
        %v1808 = vpop.permute.xlu0 %1807
        %1809 = vrot.lane.b32.xlu0 %v1798, 115
        %v1810 = vpop.permute.xlu0 %1809
        %v1815 = vadd.f32 %v1775, %v1804
        %v1816 = vadd.f32 %v1776, %v1806
        %v1817 = vadd.f32 %v1777, %v1808
        %v1818 = vadd.f32 %v1778, %v1810
        %1819 = vset.pattern.permute.xlu0 14
        %1820 = vperm.xlu0 %1819, %v699
        %v1821 = vpop.permute.xlu0 %1820
        %1823 = vset.pattern.permute.xlu0 14
        %1824 = vperm.xlu0 %1823, %v700
        %v1825 = vpop.permute.xlu0 %1824
        %1827 = vset.pattern.permute.xlu0 14
        %1828 = vperm.xlu0 %1827, %v701
        %v1829 = vpop.permute.xlu0 %1828
        %1831 = vset.pattern.permute.xlu0 14
        %1832 = vperm.xlu0 %1831, %v702
        %v1833 = vpop.permute.xlu0 %1832
        %v1835 = vmul.f32 %v1821, %v1271
        %v1836 = vmul.f32 %v1825, %v1272
        %v1837 = vmul.f32 %v1829, %v1273
        %v1838 = vmul.f32 %v1833, %v1274
        %1843 = vrot.lane.b32.xlu0 %v1835, 114
        %v1844 = vpop.permute.xlu0 %1843
        %1845 = vrot.lane.b32.xlu0 %v1836, 114
        %v1846 = vpop.permute.xlu0 %1845
        %1847 = vrot.lane.b32.xlu0 %v1837, 114
        %v1848 = vpop.permute.xlu0 %1847
        %1849 = vrot.lane.b32.xlu0 %v1838, 114
        %v1850 = vpop.permute.xlu0 %1849
        %v1855 = vadd.f32 %v1815, %v1844
        %v1856 = vadd.f32 %v1816, %v1846
        %v1857 = vadd.f32 %v1817, %v1848
        %v1858 = vadd.f32 %v1818, %v1850
        %1860 = vset.pattern.permute.xlu0 0
        %1861 = vperm.xlu0 %1860, %v703
        %v1862 = vpop.permute.xlu0 %1861
        %1865 = vset.pattern.permute.xlu0 0
        %1866 = vperm.xlu0 %1865, %v704
        %v1867 = vpop.permute.xlu0 %1866
        %1870 = vset.pattern.permute.xlu0 0
        %1871 = vperm.xlu0 %1870, %v705
        %v1872 = vpop.permute.xlu0 %1871
        %1875 = vset.pattern.permute.xlu0 0
        %1876 = vperm.xlu0 %1875, %v706
        %v1877 = vpop.permute.xlu0 %1876
        %v1879 = vadd.f32 %v1855, %v1862
        %v1880 = vadd.f32 %v1856, %v1867
        %v1881 = vadd.f32 %v1857, %v1872
        %v1882 = vadd.f32 %v1858, %v1877
        %v1883 = vmax.f32 %v1879, 0.0
        %v1884 = vmax.f32 %v1880, 0.0
        %v1885 = vmax.f32 %v1881, 0.0
        %v1886 = vmax.f32 %v1882, 0.0
        %v1888 = vsel %vm726, %v1883, 0
        %v1891 = vsel %vm726, %v1884, 0
        %v1894 = vsel %vm726, %v1885, 0
        %v1897 = vsel %vm726, %v1886, 0
        %1899 = vmatpush.msra.mxu0 0.0
        %1900 = vmatpush.msra.mxu0 0.0
        %1901 = vmatpush.msra.mxu0 0.0
        %1902 = vmatpush.msra.mxu0 0.0
        %1903 = vmatpush.msra.mxu0 0.0
        %1904 = vmatpush.msra.mxu0 0.0
        %1905 = vmatpush.msra.mxu0 0.0
        %1906 = vmatpush.msra.mxu0 0.0
        %1907 = vmatpush.msra.mxu0 %v722
        %1908 = vmatpush.msra.mxu0 %v721
        %1909 = vmatpush.msra.mxu0 %v720
        %1910 = vmatpush.msra.mxu0 %v719
        %1911 = vmatpush.msra.mxu0 %v718
        %1912 = vmatpush.msra.mxu0 %v717
        %1913 = vmatpush.msra.mxu0 %v716
        %1914 = vmatpush.msra.mxu0 %v715
        %1915 = vmatmul.f32.gmra.mxu0 %v1888
        %v1916 = vpop.f32.mrf.mxu0
        %v1917 = vadd.f32 0.0, %v1916
        %1918 = vmatmul.f32.gmra.mxu0 %v1891
        %v1919 = vpop.f32.mrf.mxu0
        %v1920 = vadd.f32 0.0, %v1919
        %1921 = vmatmul.f32.gmra.mxu0 %v1894
        %v1922 = vpop.f32.mrf.mxu0
        %v1923 = vadd.f32 0.0, %v1922
        %1924 = vmatmul.f32.gmra.mxu0 %v1897
        %v1925 = vpop.f32.mrf.mxu0
        %v1926 = vadd.f32 0.0, %v1925
        %1927 = vdwg.mxu0
        %1929 = vset.pattern.permute.xlu0 0
        %1930 = vperm.xlu0 %1929, %v711
        %v1931 = vpop.permute.xlu0 %1930
        %1934 = vset.pattern.permute.xlu0 0
        %1935 = vperm.xlu0 %1934, %v712
        %v1936 = vpop.permute.xlu0 %1935
        %1939 = vset.pattern.permute.xlu0 0
        %1940 = vperm.xlu0 %1939, %v713
        %v1941 = vpop.permute.xlu0 %1940
        %1944 = vset.pattern.permute.xlu0 0
        %1945 = vperm.xlu0 %1944, %v714
        %v1946 = vpop.permute.xlu0 %1945
        %vm1948 = vcmask 261120
        %v1950 = vsel %vm1948, %v707, 0
        %v1953 = vsel %vm1948, %v708, 0
        %v1956 = vsel %vm1948, %v709, 0
        %v1959 = vsel %vm1948, %v710, 0
        %1961 = vmatpush.msra.mxu0 0.0
        %1962 = vmatpush.msra.mxu0 0.0
        %1963 = vmatpush.msra.mxu0 0.0
        %1964 = vmatpush.msra.mxu0 0.0
        %1965 = vmatpush.msra.mxu0 0.0
        %1966 = vmatpush.msra.mxu0 0.0
        %1967 = vmatpush.msra.mxu0 0.0
        %1968 = vmatpush.msra.mxu0 0.0
        %1969 = vmatpush.msra.mxu0 0.0
        %1970 = vmatpush.msra.mxu0 0.0
        %1971 = vmatpush.msra.mxu0 0.0
        %1972 = vmatpush.msra.mxu0 0.0
        %1973 = vmatpush.msra.mxu0 %v1926
        %1974 = vmatpush.msra.mxu0 %v1923
        %1975 = vmatpush.msra.mxu0 %v1920
        %1976 = vmatpush.msra.mxu0 %v1917
        %1977 = vmatmul.f32.gmra.mxu0 %v1950
        %v1978 = vpop.f32.mrf.mxu0
        %v1979 = vadd.f32 %v1931, %v1978
        %1980 = vmatmul.f32.gmra.mxu0 %v1953
        %v1981 = vpop.f32.mrf.mxu0
        %v1982 = vadd.f32 %v1936, %v1981
        %1983 = vmatmul.f32.gmra.mxu0 %v1956
        %v1984 = vpop.f32.mrf.mxu0
        %v1985 = vadd.f32 %v1941, %v1984
        %1986 = vmatmul.f32.gmra.mxu0 %v1959
        %v1987 = vpop.f32.mrf.mxu0
        %v1988 = vadd.f32 %v1946, %v1987
        %1989 = vdwg.mxu0
        %v1990 = vsel %vm726, %v1979, -inf
        %v1991 = vsel %vm726, %v1982, -inf
        %v1992 = vsel %vm726, %v1985, -inf
        %v1993 = vsel %vm726, %v1988, -inf
        %v1994 = vmax.f32 %v1990, %v1991
        %v1995 = vmax.f32 %v1992, %v1993
        %v1996 = vmax.f32 %v1994, %v1995
        %v1997 = vrot.slane %v1996, 4
        %v1998 = vmax.f32 %v1996, %v1997
        %v1999 = vrot.slane %v1998, 2
        %v2000 = vmax.f32 %v1998, %v1999
        %v2001 = vrot.slane %v2000, 1
        %v2002 = vmax.f32 %v2000, %v2001
        %v2003 = vsub.f32 %v1979, %v2002
        %v2004 = vsub.f32 %v1982, %v2002
        %v2005 = vsub.f32 %v1985, %v2002
        %v2006 = vsub.f32 %v1988, %v2002
        %v2007 = vmul.f32 %v2003, 1.442695
        %v2008 = vpow.pop %v2007
        %v2009 = vmul.f32 %v2004, 1.442695
        %v2010 = vpow.pop %v2009
        %v2011 = vmul.f32 %v2005, 1.442695
        %v2012 = vpow.pop %v2011
        %v2013 = vmul.f32 %v2006, 1.442695
        %v2014 = vpow.pop %v2013
        %v2015 = vsel %vm726, %v2008, 0.0
        %v2016 = vsel %vm726, %v2010, 0.0
        %v2017 = vadd.f32 %v2015, %v2016
        %v2018 = vsel %vm726, %v2012, 0.0
        %v2019 = vadd.f32 %v2017, %v2018
        %v2020 = vsel %vm726, %v2014, 0.0
        %v2021 = vadd.f32 %v2019, %v2020
        %v2022 = vrot.slane %v2021, 4
        %v2023 = vadd.f32 %v2021, %v2022
        %v2024 = vrot.slane %v2023, 2
        %v2025 = vadd.f32 %v2023, %v2024
        %v2026 = vrot.slane %v2025, 1
        %v2027 = vadd.f32 %v2025, %v2026
        %v2028 = vrcp.pop %v2027
        %v2029 = vmul.f32 %v2008, %v2028
        %v2030 = vmul.f32 %v2010, %v2028
        %v2031 = vmul.f32 %v2012, %v2028
        %v2032 = vmul.f32 %v2014, %v2028
        %v2033 = vmax.f32 %v1239, 0.0
        %v2034 = vmax.f32 %v1242, 0.0
        %v2035 = vmax.f32 %v1245, 0.0
        %v2036 = vmax.f32 %v1248, 0.0
        %v2037 = vmul.f32 %v2029, %v2033
        %v2038 = vmul.f32 %v2030, %v2034
        %v2039 = vmul.f32 %v2031, %v2035
        %v2040 = vmul.f32 %v2032, %v2036
        %v2041 = vld [vmem:[#allocation14] sm:$0xff]
        %v2042 = vld [vmem:[#allocation14 + $0x8] sm:$0xff]
        %v2044 = vsel %vm726, %v2041, 0
        %v2047 = vsel %vm726, %v2042, 0
        %v2050 = vsel %vm726, %v2037, 0
        %v2053 = vsel %vm726, %v2038, 0
        %v2056 = vsel %vm726, %v2039, 0
        %v2059 = vsel %vm726, %v2040, 0
        %2061 = vmatpush.xpose.msra.mxu0 0.0
        %2062 = vmatpush.xpose.msra.mxu0 0.0
        %2063 = vmatpush.xpose.msra.mxu0 0.0
        %2064 = vmatpush.xpose.msra.mxu0 0.0
        %2065 = vmatpush.xpose.msra.mxu0 0.0
        %2066 = vmatpush.xpose.msra.mxu0 0.0
        %2067 = vmatpush.xpose.msra.mxu0 0.0
        %2068 = vmatpush.xpose.msra.mxu0 0.0
        %2069 = vmatpush.xpose.msra.mxu0 0.0
        %2070 = vmatpush.xpose.msra.mxu0 0.0
        %2071 = vmatpush.xpose.msra.mxu0 0.0
        %2072 = vmatpush.xpose.msra.mxu0 0.0
        %2073 = vmatpush.xpose.msra.mxu0 %v2059
        %2074 = vmatpush.xpose.msra.mxu0 %v2056
        %2075 = vmatpush.xpose.msra.mxu0 %v2053
        %2076 = vmatpush.xpose.msra.mxu0 %v2050
        %2077 = vmatmul.f32.gmra.mxu0 %v2044
        %v2078 = vpop.f32.mrf.mxu0
        %v2079 = vadd.f32 0.0, %v2078
        %2080 = vmatmul.f32.gmra.mxu0 %v2047
        %v2081 = vpop.f32.mrf.mxu0
        %v2082 = vadd.f32 0.0, %v2081
        %2083 = vdwg.mxu0
        %2085 = vrot.lane.b32.xlu0 %v762, 2
        %v2086 = vpop.permute.xlu0 %2085
        %2088 = vst.msk [vmem:[#allocation2] sm:$0xff] %vm767, %v2086
        %v2089 = vld [vmem:[#allocation2] sm:$0xff]
        %s2090 = sld [smem:[#allocation6]]
        %v2091 = vstv %s2090
        %v2092 = vmul.f32 %v2091, %v2089
        %s2093 = sld [smem:[#allocation6 + $0x1]]
        %v2094 = vstv %s2093
        %v2095 = vmul.f32 %v2094, %v2089
        %2097 = vrot.lane.b32.xlu0 %v2095, 127
        %v2098 = vpop.permute.xlu0 %2097
        %v2100 = vadd.f32 %v2092, %v2098
        %s2101 = sld [smem:[#allocation6 + $0x2]]
        %v2102 = vstv %s2101
        %v2103 = vmul.f32 %v2102, %v2089
        %2105 = vrot.lane.b32.xlu0 %v2103, 126
        %v2106 = vpop.permute.xlu0 %2105
        %v2108 = vadd.f32 %v2100, %v2106
        %s2109 = sld [smem:[#allocation6 + $0x3]]
        %v2110 = vstv %s2109
        %v2111 = vmul.f32 %v2110, %v2089
        %2113 = vrot.lane.b32.xlu0 %v2111, 125
        %v2114 = vpop.permute.xlu0 %2113
        %v2116 = vadd.f32 %v2108, %v2114
        %s2117 = sld [smem:[#allocation6 + $0x4]]
        %v2118 = vstv %s2117
        %v2119 = vmul.f32 %v2118, %v2089
        %2121 = vrot.lane.b32.xlu0 %v2119, 124
        %v2122 = vpop.permute.xlu0 %2121
        %v2124 = vadd.f32 %v2116, %v2122
        %s2125 = sld [smem:[#allocation10]]
        %v2126 = vstv %s2125
        %v2127 = vadd.f32 %v2124, %v2126
        %2129 = vrot.lane.b32.xlu0 %v2127, 12
        %v2130 = vpop.permute.xlu0 %2129
        %2132 = vst.msk [vmem:[#allocation3] sm:$0xff] %vm812, %v2130
        %s2133 = sld [smem:[#allocation6 + $0x80]]
        %v2134 = vstv %s2133
        %v2135 = vmul.f32 %v2134, %v2089
        %s2136 = sld [smem:[#allocation6 + $0x81]]
        %v2137 = vstv %s2136
        %v2138 = vmul.f32 %v2137, %v2089
        %2140 = vrot.lane.b32.xlu0 %v2138, 127
        %v2141 = vpop.permute.xlu0 %2140
        %v2143 = vadd.f32 %v2135, %v2141
        %s2144 = sld [smem:[#allocation6 + $0x82]]
        %v2145 = vstv %s2144
        %v2146 = vmul.f32 %v2145, %v2089
        %2148 = vrot.lane.b32.xlu0 %v2146, 126
        %v2149 = vpop.permute.xlu0 %2148
        %v2151 = vadd.f32 %v2143, %v2149
        %s2152 = sld [smem:[#allocation6 + $0x83]]
        %v2153 = vstv %s2152
        %v2154 = vmul.f32 %v2153, %v2089
        %2156 = vrot.lane.b32.xlu0 %v2154, 125
        %v2157 = vpop.permute.xlu0 %2156
        %v2159 = vadd.f32 %v2151, %v2157
        %s2160 = sld [smem:[#allocation6 + $0x84]]
        %v2161 = vstv %s2160
        %v2162 = vmul.f32 %v2161, %v2089
        %2164 = vrot.lane.b32.xlu0 %v2162, 124
        %v2165 = vpop.permute.xlu0 %2164
        %v2167 = vadd.f32 %v2159, %v2165
        %s2168 = sld [smem:[#allocation10 + $0x1]]
        %v2169 = vstv %s2168
        %v2170 = vadd.f32 %v2167, %v2169
        %2172 = vrot.lane.b32.xlu0 %v2170, 12
        %v2173 = vpop.permute.xlu0 %2172
        %2175 = vst.msk [vmem:[#allocation3 + $0x8] sm:$0xff] %vm812, %v2173
        %s2176 = sld [smem:[#allocation6 + $0x100]]
        %v2177 = vstv %s2176
        %v2178 = vmul.f32 %v2177, %v2089
        %s2179 = sld [smem:[#allocation6 + $0x101]]
        %v2180 = vstv %s2179
        %v2181 = vmul.f32 %v2180, %v2089
        %2183 = vrot.lane.b32.xlu0 %v2181, 127
        %v2184 = vpop.permute.xlu0 %2183
        %v2186 = vadd.f32 %v2178, %v2184
        %s2187 = sld [smem:[#allocation6 + $0x102]]
        %v2188 = vstv %s2187
        %v2189 = vmul.f32 %v2188, %v2089
        %2191 = vrot.lane.b32.xlu0 %v2189, 126
        %v2192 = vpop.permute.xlu0 %2191
        %v2194 = vadd.f32 %v2186, %v2192
        %s2195 = sld [smem:[#allocation6 + $0x103]]
        %v2196 = vstv %s2195
        %v2197 = vmul.f32 %v2196, %v2089
        %2199 = vrot.lane.b32.xlu0 %v2197, 125
        %v2200 = vpop.permute.xlu0 %2199
        %v2202 = vadd.f32 %v2194, %v2200
        %s2203 = sld [smem:[#allocation6 + $0x104]]
        %v2204 = vstv %s2203
        %v2205 = vmul.f32 %v2204, %v2089
        %2207 = vrot.lane.b32.xlu0 %v2205, 124
        %v2208 = vpop.permute.xlu0 %2207
        %v2210 = vadd.f32 %v2202, %v2208
        %s2211 = sld [smem:[#allocation10 + $0x2]]
        %v2212 = vstv %s2211
        %v2213 = vadd.f32 %v2210, %v2212
        %2215 = vrot.lane.b32.xlu0 %v2213, 12
        %v2216 = vpop.permute.xlu0 %2215
        %2218 = vst.msk [vmem:[#allocation3 + $0x10] sm:$0xff] %vm812, %v2216
        %s2219 = sld [smem:[#allocation6 + $0x180]]
        %v2220 = vstv %s2219
        %v2221 = vmul.f32 %v2220, %v2089
        %s2222 = sld [smem:[#allocation6 + $0x181]]
        %v2223 = vstv %s2222
        %v2224 = vmul.f32 %v2223, %v2089
        %2226 = vrot.lane.b32.xlu0 %v2224, 127
        %v2227 = vpop.permute.xlu0 %2226
        %v2229 = vadd.f32 %v2221, %v2227
        %s2230 = sld [smem:[#allocation6 + $0x182]]
        %v2231 = vstv %s2230
        %v2232 = vmul.f32 %v2231, %v2089
        %2234 = vrot.lane.b32.xlu0 %v2232, 126
        %v2235 = vpop.permute.xlu0 %2234
        %v2237 = vadd.f32 %v2229, %v2235
        %s2238 = sld [smem:[#allocation6 + $0x183]]
        %v2239 = vstv %s2238
        %v2240 = vmul.f32 %v2239, %v2089
        %2242 = vrot.lane.b32.xlu0 %v2240, 125
        %v2243 = vpop.permute.xlu0 %2242
        %v2245 = vadd.f32 %v2237, %v2243
        %s2246 = sld [smem:[#allocation6 + $0x184]]
        %v2247 = vstv %s2246
        %v2248 = vmul.f32 %v2247, %v2089
        %2250 = vrot.lane.b32.xlu0 %v2248, 124
        %v2251 = vpop.permute.xlu0 %2250
        %v2253 = vadd.f32 %v2245, %v2251
        %s2254 = sld [smem:[#allocation10 + $0x3]]
        %v2255 = vstv %s2254
        %v2256 = vadd.f32 %v2253, %v2255
        %2258 = vrot.lane.b32.xlu0 %v2256, 12
        %v2259 = vpop.permute.xlu0 %2258
        %2261 = vst.msk [vmem:[#allocation3 + $0x18] sm:$0xff] %vm812, %v2259
        %v2262 = vld [vmem:[#allocation3] sm:$0xff]
        %v2263 = vld [vmem:[#allocation3 + $0x8] sm:$0xff]
        %v2264 = vld [vmem:[#allocation3 + $0x10] sm:$0xff]
        %v2265 = vld [vmem:[#allocation3 + $0x18] sm:$0xff]
        %2270 = vrot.lane.b32.xlu0 %v2262, 117
        %v2271 = vpop.permute.xlu0 %2270
        %2272 = vrot.lane.b32.xlu0 %v2263, 117
        %v2273 = vpop.permute.xlu0 %2272
        %2274 = vrot.lane.b32.xlu0 %v2264, 117
        %v2275 = vpop.permute.xlu0 %2274
        %2276 = vrot.lane.b32.xlu0 %v2265, 117
        %v2277 = vpop.permute.xlu0 %2276
        %2282 = vst.msk [vmem:[#allocation4] sm:$0xff] %vm726, %v2271
        %2283 = vst.msk [vmem:[#allocation4 + $0x8] sm:$0xff] %vm726, %v2273
        %2284 = vst.msk [vmem:[#allocation4 + $0x10] sm:$0xff] %vm726, %v2275
        %2285 = vst.msk [vmem:[#allocation4 + $0x18] sm:$0xff] %vm726, %v2277
        %2286 = vrot.lane.b32.xlu0 %v2262, 116
        %v2287 = vpop.permute.xlu0 %2286
        %2288 = vrot.lane.b32.xlu0 %v2263, 116
        %v2289 = vpop.permute.xlu0 %2288
        %2290 = vrot.lane.b32.xlu0 %v2264, 116
        %v2291 = vpop.permute.xlu0 %2290
        %2292 = vrot.lane.b32.xlu0 %v2265, 116
        %v2293 = vpop.permute.xlu0 %2292
        %2298 = vst.msk [vmem:[#allocation4 + $0x20] sm:$0xff] %vm726, %v2287
        %2299 = vst.msk [vmem:[#allocation4 + $0x28] sm:$0xff] %vm726, %v2289
        %2300 = vst.msk [vmem:[#allocation4 + $0x30] sm:$0xff] %vm726, %v2291
        %2301 = vst.msk [vmem:[#allocation4 + $0x38] sm:$0xff] %vm726, %v2293
        %2302 = vrot.lane.b32.xlu0 %v2262, 115
        %v2303 = vpop.permute.xlu0 %2302
        %2304 = vrot.lane.b32.xlu0 %v2263, 115
        %v2305 = vpop.permute.xlu0 %2304
        %2306 = vrot.lane.b32.xlu0 %v2264, 115
        %v2307 = vpop.permute.xlu0 %2306
        %2308 = vrot.lane.b32.xlu0 %v2265, 115
        %v2309 = vpop.permute.xlu0 %2308
        %2314 = vst.msk [vmem:[#allocation4 + $0x40] sm:$0xff] %vm726, %v2303
        %2315 = vst.msk [vmem:[#allocation4 + $0x48] sm:$0xff] %vm726, %v2305
        %2316 = vst.msk [vmem:[#allocation4 + $0x50] sm:$0xff] %vm726, %v2307
        %2317 = vst.msk [vmem:[#allocation4 + $0x58] sm:$0xff] %vm726, %v2309
        %2318 = vrot.lane.b32.xlu0 %v2262, 119
        %v2319 = vpop.permute.xlu0 %2318
        %2320 = vrot.lane.b32.xlu0 %v2263, 119
        %v2321 = vpop.permute.xlu0 %2320
        %2322 = vrot.lane.b32.xlu0 %v2264, 119
        %v2323 = vpop.permute.xlu0 %2322
        %2324 = vrot.lane.b32.xlu0 %v2265, 119
        %v2325 = vpop.permute.xlu0 %2324
        %2330 = vst.msk [vmem:[#allocation4 + $0x60] sm:$0xff] %vm726, %v2319
        %2331 = vst.msk [vmem:[#allocation4 + $0x68] sm:$0xff] %vm726, %v2321
        %2332 = vst.msk [vmem:[#allocation4 + $0x70] sm:$0xff] %vm726, %v2323
        %2333 = vst.msk [vmem:[#allocation4 + $0x78] sm:$0xff] %vm726, %v2325
        %2334 = vst.msk [vmem:[#allocation4 + $0x80] sm:$0xff] %vm726, %v2287
        %2335 = vst.msk [vmem:[#allocation4 + $0x88] sm:$0xff] %vm726, %v2289
        %2336 = vst.msk [vmem:[#allocation4 + $0x90] sm:$0xff] %vm726, %v2291
        %2337 = vst.msk [vmem:[#allocation4 + $0x98] sm:$0xff] %vm726, %v2293
        %2338 = vrot.lane.b32.xlu0 %v2262, 113
        %v2339 = vpop.permute.xlu0 %2338
        %2340 = vrot.lane.b32.xlu0 %v2263, 113
        %v2341 = vpop.permute.xlu0 %2340
        %2342 = vrot.lane.b32.xlu0 %v2264, 113
        %v2343 = vpop.permute.xlu0 %2342
        %2344 = vrot.lane.b32.xlu0 %v2265, 113
        %v2345 = vpop.permute.xlu0 %2344
        %2350 = vst.msk [vmem:[#allocation4 + $0xa0] sm:$0xff] %vm726, %v2339
        %2351 = vst.msk [vmem:[#allocation4 + $0xa8] sm:$0xff] %vm726, %v2341
        %2352 = vst.msk [vmem:[#allocation4 + $0xb0] sm:$0xff] %vm726, %v2343
        %2353 = vst.msk [vmem:[#allocation4 + $0xb8] sm:$0xff] %vm726, %v2345
        %2354 = vrot.lane.b32.xlu0 %v2262, 122
        %v2355 = vpop.permute.xlu0 %2354
        %2356 = vrot.lane.b32.xlu0 %v2263, 122
        %v2357 = vpop.permute.xlu0 %2356
        %2358 = vrot.lane.b32.xlu0 %v2264, 122
        %v2359 = vpop.permute.xlu0 %2358
        %2360 = vrot.lane.b32.xlu0 %v2265, 122
        %v2361 = vpop.permute.xlu0 %2360
        %2366 = vst.msk [vmem:[#allocation4 + $0xc0] sm:$0xff] %vm726, %v2355
        %2367 = vst.msk [vmem:[#allocation4 + $0xc8] sm:$0xff] %vm726, %v2357
        %2368 = vst.msk [vmem:[#allocation4 + $0xd0] sm:$0xff] %vm726, %v2359
        %2369 = vst.msk [vmem:[#allocation4 + $0xd8] sm:$0xff] %vm726, %v2361
        %2370 = vst.msk [vmem:[#allocation4 + $0xe0] sm:$0xff] %vm726, %v2287
        %2371 = vst.msk [vmem:[#allocation4 + $0xe8] sm:$0xff] %vm726, %v2289
        %2372 = vst.msk [vmem:[#allocation4 + $0xf0] sm:$0xff] %vm726, %v2291
        %2373 = vst.msk [vmem:[#allocation4 + $0xf8] sm:$0xff] %vm726, %v2293
        %2374 = vrot.lane.b32.xlu0 %v2262, 110
        %v2375 = vpop.permute.xlu0 %2374
        %2376 = vrot.lane.b32.xlu0 %v2263, 110
        %v2377 = vpop.permute.xlu0 %2376
        %2378 = vrot.lane.b32.xlu0 %v2264, 110
        %v2379 = vpop.permute.xlu0 %2378
        %2380 = vrot.lane.b32.xlu0 %v2265, 110
        %v2381 = vpop.permute.xlu0 %2380
        %2386 = vst.msk [vmem:[#allocation4 + $0x100] sm:$0xff] %vm726, %v2375
        %2387 = vst.msk [vmem:[#allocation4 + $0x108] sm:$0xff] %vm726, %v2377
        %2388 = vst.msk [vmem:[#allocation4 + $0x110] sm:$0xff] %vm726, %v2379
        %2389 = vst.msk [vmem:[#allocation4 + $0x118] sm:$0xff] %vm726, %v2381
        %2390 = vst.msk [vmem:[#allocation4 + $0x120] sm:$0xff] %vm726, %v2262
        %2391 = vst.msk [vmem:[#allocation4 + $0x128] sm:$0xff] %vm726, %v2263
        %2392 = vst.msk [vmem:[#allocation4 + $0x130] sm:$0xff] %vm726, %v2264
        %2393 = vst.msk [vmem:[#allocation4 + $0x138] sm:$0xff] %vm726, %v2265
        %2394 = vst.msk [vmem:[#allocation4 + $0x140] sm:$0xff] %vm726, %v2287
        %2395 = vst.msk [vmem:[#allocation4 + $0x148] sm:$0xff] %vm726, %v2289
        %2396 = vst.msk [vmem:[#allocation4 + $0x150] sm:$0xff] %vm726, %v2291
        %2397 = vst.msk [vmem:[#allocation4 + $0x158] sm:$0xff] %vm726, %v2293
        %2398 = vrot.lane.b32.xlu0 %v2262, 104
        %v2399 = vpop.permute.xlu0 %2398
        %2400 = vrot.lane.b32.xlu0 %v2263, 104
        %v2401 = vpop.permute.xlu0 %2400
        %2402 = vrot.lane.b32.xlu0 %v2264, 104
        %v2403 = vpop.permute.xlu0 %2402
        %2404 = vrot.lane.b32.xlu0 %v2265, 104
        %v2405 = vpop.permute.xlu0 %2404
        %2410 = vst.msk [vmem:[#allocation4 + $0x160] sm:$0xff] %vm726, %v2399
        %2411 = vst.msk [vmem:[#allocation4 + $0x168] sm:$0xff] %vm726, %v2401
        %2412 = vst.msk [vmem:[#allocation4 + $0x170] sm:$0xff] %vm726, %v2403
        %2413 = vst.msk [vmem:[#allocation4 + $0x178] sm:$0xff] %vm726, %v2405
        %v2414 = vld [vmem:[#allocation4] sm:$0xff]
        %v2415 = vld [vmem:[#allocation4 + $0x8] sm:$0xff]
        %v2416 = vld [vmem:[#allocation4 + $0x10] sm:$0xff]
        %v2417 = vld [vmem:[#allocation4 + $0x18] sm:$0xff]
        %v2418 = vld [vmem:[#allocation4 + $0x20] sm:$0xff]
        %v2419 = vld [vmem:[#allocation4 + $0x28] sm:$0xff]
        %v2420 = vld [vmem:[#allocation4 + $0x30] sm:$0xff]
        %v2421 = vld [vmem:[#allocation4 + $0x38] sm:$0xff]
        %v2422 = vld [vmem:[#allocation4 + $0x40] sm:$0xff]
        %v2423 = vld [vmem:[#allocation4 + $0x48] sm:$0xff]
        %v2424 = vld [vmem:[#allocation4 + $0x50] sm:$0xff]
        %v2425 = vld [vmem:[#allocation4 + $0x58] sm:$0xff]
        %v2426 = vld [vmem:[#allocation4 + $0x60] sm:$0xff]
        %v2427 = vld [vmem:[#allocation4 + $0x68] sm:$0xff]
        %v2428 = vld [vmem:[#allocation4 + $0x70] sm:$0xff]
        %v2429 = vld [vmem:[#allocation4 + $0x78] sm:$0xff]
        %v2430 = vld [vmem:[#allocation4 + $0x80] sm:$0xff]
        %v2431 = vld [vmem:[#allocation4 + $0x88] sm:$0xff]
        %v2432 = vld [vmem:[#allocation4 + $0x90] sm:$0xff]
        %v2433 = vld [vmem:[#allocation4 + $0x98] sm:$0xff]
        %v2434 = vld [vmem:[#allocation4 + $0xa0] sm:$0xff]
        %v2435 = vld [vmem:[#allocation4 + $0xa8] sm:$0xff]
        %v2436 = vld [vmem:[#allocation4 + $0xb0] sm:$0xff]
        %v2437 = vld [vmem:[#allocation4 + $0xb8] sm:$0xff]
        %v2438 = vld [vmem:[#allocation4 + $0xc0] sm:$0xff]
        %v2439 = vld [vmem:[#allocation4 + $0xc8] sm:$0xff]
        %v2440 = vld [vmem:[#allocation4 + $0xd0] sm:$0xff]
        %v2441 = vld [vmem:[#allocation4 + $0xd8] sm:$0xff]
        %v2442 = vld [vmem:[#allocation4 + $0xe0] sm:$0xff]
        %v2443 = vld [vmem:[#allocation4 + $0xe8] sm:$0xff]
        %v2444 = vld [vmem:[#allocation4 + $0xf0] sm:$0xff]
        %v2445 = vld [vmem:[#allocation4 + $0xf8] sm:$0xff]
        %v2446 = vld [vmem:[#allocation4 + $0x100] sm:$0xff]
        %v2447 = vld [vmem:[#allocation4 + $0x108] sm:$0xff]
        %v2448 = vld [vmem:[#allocation4 + $0x110] sm:$0xff]
        %v2449 = vld [vmem:[#allocation4 + $0x118] sm:$0xff]
        %v2450 = vld [vmem:[#allocation4 + $0x120] sm:$0xff]
        %v2451 = vld [vmem:[#allocation4 + $0x128] sm:$0xff]
        %v2452 = vld [vmem:[#allocation4 + $0x130] sm:$0xff]
        %v2453 = vld [vmem:[#allocation4 + $0x138] sm:$0xff]
        %v2454 = vld [vmem:[#allocation4 + $0x140] sm:$0xff]
        %v2455 = vld [vmem:[#allocation4 + $0x148] sm:$0xff]
        %v2456 = vld [vmem:[#allocation4 + $0x150] sm:$0xff]
        %v2457 = vld [vmem:[#allocation4 + $0x158] sm:$0xff]
        %v2458 = vld [vmem:[#allocation4 + $0x160] sm:$0xff]
        %v2459 = vld [vmem:[#allocation4 + $0x168] sm:$0xff]
        %v2460 = vld [vmem:[#allocation4 + $0x170] sm:$0xff]
        %v2461 = vld [vmem:[#allocation4 + $0x178] sm:$0xff]
        %2462 = vmatpush.msra.mxu0 %v2429
        %2463 = vmatpush.msra.mxu0 %v2428
        %2464 = vmatpush.msra.mxu0 %v2427
        %2465 = vmatpush.msra.mxu0 %v2426
        %2466 = vmatpush.msra.mxu0 %v2425
        %2467 = vmatpush.msra.mxu0 %v2424
        %2468 = vmatpush.msra.mxu0 %v2423
        %2469 = vmatpush.msra.mxu0 %v2422
        %2470 = vmatpush.msra.mxu0 %v2421
        %2471 = vmatpush.msra.mxu0 %v2420
        %2472 = vmatpush.msra.mxu0 %v2419
        %2473 = vmatpush.msra.mxu0 %v2418
        %2474 = vmatpush.msra.mxu0 %v2417
        %2475 = vmatpush.msra.mxu0 %v2416
        %2476 = vmatpush.msra.mxu0 %v2415
        %2477 = vmatpush.msra.mxu0 %v2414
        %2478 = vmatmul.f32.gmra.mxu0 %v683
        %v2479 = vpop.f32.mrf.mxu0
        %v2480 = vadd.f32 %v1146, %v2479
        %2481 = vmatmul.f32.gmra.mxu0 %v686
        %v2482 = vpop.f32.mrf.mxu0
        %v2483 = vadd.f32 %v1151, %v2482
        %2484 = vmatmul.f32.gmra.mxu0 %v689
        %v2485 = vpop.f32.mrf.mxu0
        %v2486 = vadd.f32 %v1156, %v2485
        %2487 = vmatmul.f32.gmra.mxu0 %v692
        %v2488 = vpop.f32.mrf.mxu0
        %v2489 = vadd.f32 %v1161, %v2488
        %2490 = vdwg.mxu0
        %2491 = vmatpush.msra.mxu0 %v2445
        %2492 = vmatpush.msra.mxu0 %v2444
        %2493 = vmatpush.msra.mxu0 %v2443
        %2494 = vmatpush.msra.mxu0 %v2442
        %2495 = vmatpush.msra.mxu0 %v2441
        %2496 = vmatpush.msra.mxu0 %v2440
        %2497 = vmatpush.msra.mxu0 %v2439
        %2498 = vmatpush.msra.mxu0 %v2438
        %2499 = vmatpush.msra.mxu0 %v2437
        %2500 = vmatpush.msra.mxu0 %v2436
        %2501 = vmatpush.msra.mxu0 %v2435
        %2502 = vmatpush.msra.mxu0 %v2434
        %2503 = vmatpush.msra.mxu0 %v2433
        %2504 = vmatpush.msra.mxu0 %v2432
        %2505 = vmatpush.msra.mxu0 %v2431
        %2506 = vmatpush.msra.mxu0 %v2430
        %2507 = vmatmul.f32.gmra.mxu0 %v684
        %v2508 = vpop.f32.mrf.mxu0
        %v2509 = vadd.f32 %v2480, %v2508
        %2510 = vmatmul.f32.gmra.mxu0 %v687
        %v2511 = vpop.f32.mrf.mxu0
        %v2512 = vadd.f32 %v2483, %v2511
        %2513 = vmatmul.f32.gmra.mxu0 %v690
        %v2514 = vpop.f32.mrf.mxu0
        %v2515 = vadd.f32 %v2486, %v2514
        %2516 = vmatmul.f32.gmra.mxu0 %v693
        %v2517 = vpop.f32.mrf.mxu0
        %v2518 = vadd.f32 %v2489, %v2517
        %2519 = vdwg.mxu0
        %2520 = vmatpush.msra.mxu0 %v2461
        %2521 = vmatpush.msra.mxu0 %v2460
        %2522 = vmatpush.msra.mxu0 %v2459
        %2523 = vmatpush.msra.mxu0 %v2458
        %2524 = vmatpush.msra.mxu0 %v2457
        %2525 = vmatpush.msra.mxu0 %v2456
        %2526 = vmatpush.msra.mxu0 %v2455
        %2527 = vmatpush.msra.mxu0 %v2454
        %2528 = vmatpush.msra.mxu0 %v2453
        %2529 = vmatpush.msra.mxu0 %v2452
        %2530 = vmatpush.msra.mxu0 %v2451
        %2531 = vmatpush.msra.mxu0 %v2450
        %2532 = vmatpush.msra.mxu0 %v2449
        %2533 = vmatpush.msra.mxu0 %v2448
        %2534 = vmatpush.msra.mxu0 %v2447
        %2535 = vmatpush.msra.mxu0 %v2446
        %2536 = vmatmul.f32.gmra.mxu0 %v685
        %v2537 = vpop.f32.mrf.mxu0
        %v2538 = vadd.f32 %v2509, %v2537
        %2539 = vmatmul.f32.gmra.mxu0 %v688
        %v2540 = vpop.f32.mrf.mxu0
        %v2541 = vadd.f32 %v2512, %v2540
        %2542 = vmatmul.f32.gmra.mxu0 %v691
        %v2543 = vpop.f32.mrf.mxu0
        %v2544 = vadd.f32 %v2515, %v2543
        %2545 = vmatmul.f32.gmra.mxu0 %v694
        %v2546 = vpop.f32.mrf.mxu0
        %v2547 = vadd.f32 %v2518, %v2546
        %2548 = vdwg.mxu0
        %2553 = vrot.lane.b32.xlu0 %v2538, 14
        %v2554 = vpop.permute.xlu0 %2553
        %2555 = vrot.lane.b32.xlu0 %v2541, 14
        %v2556 = vpop.permute.xlu0 %2555
        %2557 = vrot.lane.b32.xlu0 %v2544, 14
        %v2558 = vpop.permute.xlu0 %2557
        %2559 = vrot.lane.b32.xlu0 %v2547, 14
        %v2560 = vpop.permute.xlu0 %2559
        %2565 = vst.msk [vmem:[#allocation5] sm:$0xff] %vm1266, %v2554
        %2566 = vst.msk [vmem:[#allocation5 + $0x8] sm:$0xff] %vm1266, %v2556
        %2567 = vst.msk [vmem:[#allocation5 + $0x10] sm:$0xff] %vm1266, %v2558
        %2568 = vst.msk [vmem:[#allocation5 + $0x18] sm:$0xff] %vm1266, %v2560
        %v2569 = vld [vmem:[#allocation5] sm:$0xff]
        %v2570 = vld [vmem:[#allocation5 + $0x8] sm:$0xff]
        %v2571 = vld [vmem:[#allocation5 + $0x10] sm:$0xff]
        %v2572 = vld [vmem:[#allocation5 + $0x18] sm:$0xff]
        %v2573 = vmul.f32 %v1278, %v2569
        %v2574 = vmul.f32 %v1283, %v2570
        %v2575 = vmul.f32 %v1288, %v2571
        %v2576 = vmul.f32 %v1293, %v2572
        %v2577 = vmul.f32 %v1301, %v2569
        %v2578 = vmul.f32 %v1305, %v2570
        %v2579 = vmul.f32 %v1309, %v2571
        %v2580 = vmul.f32 %v1313, %v2572
        %2585 = vrot.lane.b32.xlu0 %v2577, 127
        %v2586 = vpop.permute.xlu0 %2585
        %2587 = vrot.lane.b32.xlu0 %v2578, 127
        %v2588 = vpop.permute.xlu0 %2587
        %2589 = vrot.lane.b32.xlu0 %v2579, 127
        %v2590 = vpop.permute.xlu0 %2589
        %2591 = vrot.lane.b32.xlu0 %v2580, 127
        %v2592 = vpop.permute.xlu0 %2591
        %v2597 = vadd.f32 %v2573, %v2586
        %v2598 = vadd.f32 %v2574, %v2588
        %v2599 = vadd.f32 %v2575, %v2590
        %v2600 = vadd.f32 %v2576, %v2592
        %v2601 = vmul.f32 %v1341, %v2569
        %v2602 = vmul.f32 %v1345, %v2570
        %v2603 = vmul.f32 %v1349, %v2571
        %v2604 = vmul.f32 %v1353, %v2572
        %2609 = vrot.lane.b32.xlu0 %v2601, 126
        %v2610 = vpop.permute.xlu0 %2609
        %2611 = vrot.lane.b32.xlu0 %v2602, 126
        %v2612 = vpop.permute.xlu0 %2611
        %2613 = vrot.lane.b32.xlu0 %v2603, 126
        %v2614 = vpop.permute.xlu0 %2613
        %2615 = vrot.lane.b32.xlu0 %v2604, 126
        %v2616 = vpop.permute.xlu0 %2615
        %v2621 = vadd.f32 %v2597, %v2610
        %v2622 = vadd.f32 %v2598, %v2612
        %v2623 = vadd.f32 %v2599, %v2614
        %v2624 = vadd.f32 %v2600, %v2616
        %v2625 = vmul.f32 %v1381, %v2569
        %v2626 = vmul.f32 %v1385, %v2570
        %v2627 = vmul.f32 %v1389, %v2571
        %v2628 = vmul.f32 %v1393, %v2572
        %2633 = vrot.lane.b32.xlu0 %v2625, 125
        %v2634 = vpop.permute.xlu0 %2633
        %2635 = vrot.lane.b32.xlu0 %v2626, 125
        %v2636 = vpop.permute.xlu0 %2635
        %2637 = vrot.lane.b32.xlu0 %v2627, 125
        %v2638 = vpop.permute.xlu0 %2637
        %2639 = vrot.lane.b32.xlu0 %v2628, 125
        %v2640 = vpop.permute.xlu0 %2639
        %v2645 = vadd.f32 %v2621, %v2634
        %v2646 = vadd.f32 %v2622, %v2636
        %v2647 = vadd.f32 %v2623, %v2638
        %v2648 = vadd.f32 %v2624, %v2640
        %v2649 = vmul.f32 %v1421, %v2569
        %v2650 = vmul.f32 %v1425, %v2570
        %v2651 = vmul.f32 %v1429, %v2571
        %v2652 = vmul.f32 %v1433, %v2572
        %2657 = vrot.lane.b32.xlu0 %v2649, 124
        %v2658 = vpop.permute.xlu0 %2657
        %2659 = vrot.lane.b32.xlu0 %v2650, 124
        %v2660 = vpop.permute.xlu0 %2659
        %2661 = vrot.lane.b32.xlu0 %v2651, 124
        %v2662 = vpop.permute.xlu0 %2661
        %2663 = vrot.lane.b32.xlu0 %v2652, 124
        %v2664 = vpop.permute.xlu0 %2663
        %v2669 = vadd.f32 %v2645, %v2658
        %v2670 = vadd.f32 %v2646, %v2660
        %v2671 = vadd.f32 %v2647, %v2662
        %v2672 = vadd.f32 %v2648, %v2664
        %v2673 = vmul.f32 %v1461, %v2569
        %v2674 = vmul.f32 %v1465, %v2570
        %v2675 = vmul.f32 %v1469, %v2571
        %v2676 = vmul.f32 %v1473, %v2572
        %2681 = vrot.lane.b32.xlu0 %v2673, 123
        %v2682 = vpop.permute.xlu0 %2681
        %2683 = vrot.lane.b32.xlu0 %v2674, 123
        %v2684 = vpop.permute.xlu0 %2683
        %2685 = vrot.lane.b32.xlu0 %v2675, 123
        %v2686 = vpop.permute.xlu0 %2685
        %2687 = vrot.lane.b32.xlu0 %v2676, 123
        %v2688 = vpop.permute.xlu0 %2687
        %v2693 = vadd.f32 %v2669, %v2682
        %v2694 = vadd.f32 %v2670, %v2684
        %v2695 = vadd.f32 %v2671, %v2686
        %v2696 = vadd.f32 %v2672, %v2688
        %v2697 = vmul.f32 %v1501, %v2569
        %v2698 = vmul.f32 %v1505, %v2570
        %v2699 = vmul.f32 %v1509, %v2571
        %v2700 = vmul.f32 %v1513, %v2572
        %2705 = vrot.lane.b32.xlu0 %v2697, 122
        %v2706 = vpop.permute.xlu0 %2705
        %2707 = vrot.lane.b32.xlu0 %v2698, 122
        %v2708 = vpop.permute.xlu0 %2707
        %2709 = vrot.lane.b32.xlu0 %v2699, 122
        %v2710 = vpop.permute.xlu0 %2709
        %2711 = vrot.lane.b32.xlu0 %v2700, 122
        %v2712 = vpop.permute.xlu0 %2711
        %v2717 = vadd.f32 %v2693, %v2706
        %v2718 = vadd.f32 %v2694, %v2708
        %v2719 = vadd.f32 %v2695, %v2710
        %v2720 = vadd.f32 %v2696, %v2712
        %v2721 = vmul.f32 %v1541, %v2569
        %v2722 = vmul.f32 %v1545, %v2570
        %v2723 = vmul.f32 %v1549, %v2571
        %v2724 = vmul.f32 %v1553, %v2572
        %2729 = vrot.lane.b32.xlu0 %v2721, 121
        %v2730 = vpop.permute.xlu0 %2729
        %2731 = vrot.lane.b32.xlu0 %v2722, 121
        %v2732 = vpop.permute.xlu0 %2731
        %2733 = vrot.lane.b32.xlu0 %v2723, 121
        %v2734 = vpop.permute.xlu0 %2733
        %2735 = vrot.lane.b32.xlu0 %v2724, 121
        %v2736 = vpop.permute.xlu0 %2735
        %v2741 = vadd.f32 %v2717, %v2730
        %v2742 = vadd.f32 %v2718, %v2732
        %v2743 = vadd.f32 %v2719, %v2734
        %v2744 = vadd.f32 %v2720, %v2736
        %v2745 = vmul.f32 %v1581, %v2569
        %v2746 = vmul.f32 %v1585, %v2570
        %v2747 = vmul.f32 %v1589, %v2571
        %v2748 = vmul.f32 %v1593, %v2572
        %2753 = vrot.lane.b32.xlu0 %v2745, 120
        %v2754 = vpop.permute.xlu0 %2753
        %2755 = vrot.lane.b32.xlu0 %v2746, 120
        %v2756 = vpop.permute.xlu0 %2755
        %2757 = vrot.lane.b32.xlu0 %v2747, 120
        %v2758 = vpop.permute.xlu0 %2757
        %2759 = vrot.lane.b32.xlu0 %v2748, 120
        %v2760 = vpop.permute.xlu0 %2759
        %v2765 = vadd.f32 %v2741, %v2754
        %v2766 = vadd.f32 %v2742, %v2756
        %v2767 = vadd.f32 %v2743, %v2758
        %v2768 = vadd.f32 %v2744, %v2760
        %v2769 = vmul.f32 %v1621, %v2569
        %v2770 = vmul.f32 %v1625, %v2570
        %v2771 = vmul.f32 %v1629, %v2571
        %v2772 = vmul.f32 %v1633, %v2572
        %2777 = vrot.lane.b32.xlu0 %v2769, 119
        %v2778 = vpop.permute.xlu0 %2777
        %2779 = vrot.lane.b32.xlu0 %v2770, 119
        %v2780 = vpop.permute.xlu0 %2779
        %2781 = vrot.lane.b32.xlu0 %v2771, 119
        %v2782 = vpop.permute.xlu0 %2781
        %2783 = vrot.lane.b32.xlu0 %v2772, 119
        %v2784 = vpop.permute.xlu0 %2783
        %v2789 = vadd.f32 %v2765, %v2778
        %v2790 = vadd.f32 %v2766, %v2780
        %v2791 = vadd.f32 %v2767, %v2782
        %v2792 = vadd.f32 %v2768, %v2784
        %v2793 = vmul.f32 %v1661, %v2569
        %v2794 = vmul.f32 %v1665, %v2570
        %v2795 = vmul.f32 %v1669, %v2571
        %v2796 = vmul.f32 %v1673, %v2572
        %2801 = vrot.lane.b32.xlu0 %v2793, 118
        %v2802 = vpop.permute.xlu0 %2801
        %2803 = vrot.lane.b32.xlu0 %v2794, 118
        %v2804 = vpop.permute.xlu0 %2803
        %2805 = vrot.lane.b32.xlu0 %v2795, 118
        %v2806 = vpop.permute.xlu0 %2805
        %2807 = vrot.lane.b32.xlu0 %v2796, 118
        %v2808 = vpop.permute.xlu0 %2807
        %v2813 = vadd.f32 %v2789, %v2802
        %v2814 = vadd.f32 %v2790, %v2804
        %v2815 = vadd.f32 %v2791, %v2806
        %v2816 = vadd.f32 %v2792, %v2808
        %v2817 = vmul.f32 %v1701, %v2569
        %v2818 = vmul.f32 %v1705, %v2570
        %v2819 = vmul.f32 %v1709, %v2571
        %v2820 = vmul.f32 %v1713, %v2572
        %2825 = vrot.lane.b32.xlu0 %v2817, 117
        %v2826 = vpop.permute.xlu0 %2825
        %2827 = vrot.lane.b32.xlu0 %v2818, 117
        %v2828 = vpop.permute.xlu0 %2827
        %2829 = vrot.lane.b32.xlu0 %v2819, 117
        %v2830 = vpop.permute.xlu0 %2829
        %2831 = vrot.lane.b32.xlu0 %v2820, 117
        %v2832 = vpop.permute.xlu0 %2831
        %v2837 = vadd.f32 %v2813, %v2826
        %v2838 = vadd.f32 %v2814, %v2828
        %v2839 = vadd.f32 %v2815, %v2830
        %v2840 = vadd.f32 %v2816, %v2832
        %v2841 = vmul.f32 %v1741, %v2569
        %v2842 = vmul.f32 %v1745, %v2570
        %v2843 = vmul.f32 %v1749, %v2571
        %v2844 = vmul.f32 %v1753, %v2572
        %2849 = vrot.lane.b32.xlu0 %v2841, 116
        %v2850 = vpop.permute.xlu0 %2849
        %2851 = vrot.lane.b32.xlu0 %v2842, 116
        %v2852 = vpop.permute.xlu0 %2851
        %2853 = vrot.lane.b32.xlu0 %v2843, 116
        %v2854 = vpop.permute.xlu0 %2853
        %2855 = vrot.lane.b32.xlu0 %v2844, 116
        %v2856 = vpop.permute.xlu0 %2855
        %v2861 = vadd.f32 %v2837, %v2850
        %v2862 = vadd.f32 %v2838, %v2852
        %v2863 = vadd.f32 %v2839, %v2854
        %v2864 = vadd.f32 %v2840, %v2856
        %v2865 = vmul.f32 %v1781, %v2569
        %v2866 = vmul.f32 %v1785, %v2570
        %v2867 = vmul.f32 %v1789, %v2571
        %v2868 = vmul.f32 %v1793, %v2572
        %2873 = vrot.lane.b32.xlu0 %v2865, 115
        %v2874 = vpop.permute.xlu0 %2873
        %2875 = vrot.lane.b32.xlu0 %v2866, 115
        %v2876 = vpop.permute.xlu0 %2875
        %2877 = vrot.lane.b32.xlu0 %v2867, 115
        %v2878 = vpop.permute.xlu0 %2877
        %2879 = vrot.lane.b32.xlu0 %v2868, 115
        %v2880 = vpop.permute.xlu0 %2879
        %v2885 = vadd.f32 %v2861, %v2874
        %v2886 = vadd.f32 %v2862, %v2876
        %v2887 = vadd.f32 %v2863, %v2878
        %v2888 = vadd.f32 %v2864, %v2880
        %v2889 = vmul.f32 %v1821, %v2569
        %v2890 = vmul.f32 %v1825, %v2570
        %v2891 = vmul.f32 %v1829, %v2571
        %v2892 = vmul.f32 %v1833, %v2572
        %2897 = vrot.lane.b32.xlu0 %v2889, 114
        %v2898 = vpop.permute.xlu0 %2897
        %2899 = vrot.lane.b32.xlu0 %v2890, 114
        %v2900 = vpop.permute.xlu0 %2899
        %2901 = vrot.lane.b32.xlu0 %v2891, 114
        %v2902 = vpop.permute.xlu0 %2901
        %2903 = vrot.lane.b32.xlu0 %v2892, 114
        %v2904 = vpop.permute.xlu0 %2903
        %v2909 = vadd.f32 %v2885, %v2898
        %v2910 = vadd.f32 %v2886, %v2900
        %v2911 = vadd.f32 %v2887, %v2902
        %v2912 = vadd.f32 %v2888, %v2904
        %v2913 = vadd.f32 %v2909, %v1862
        %v2914 = vadd.f32 %v2910, %v1867
        %v2915 = vadd.f32 %v2911, %v1872
        %v2916 = vadd.f32 %v2912, %v1877
        %v2917 = vmax.f32 %v2913, 0.0
        %v2918 = vmax.f32 %v2914, 0.0
        %v2919 = vmax.f32 %v2915, 0.0
        %v2920 = vmax.f32 %v2916, 0.0
        %v2922 = vsel %vm726, %v2917, 0
        %v2925 = vsel %vm726, %v2918, 0
        %v2928 = vsel %vm726, %v2919, 0
        %v2931 = vsel %vm726, %v2920, 0
        %2933 = vmatpush.msra.mxu0 0.0
        %2934 = vmatpush.msra.mxu0 0.0
        %2935 = vmatpush.msra.mxu0 0.0
        %2936 = vmatpush.msra.mxu0 0.0
        %2937 = vmatpush.msra.mxu0 0.0
        %2938 = vmatpush.msra.mxu0 0.0
        %2939 = vmatpush.msra.mxu0 0.0
        %2940 = vmatpush.msra.mxu0 0.0
        %2941 = vmatpush.msra.mxu0 %v722
        %2942 = vmatpush.msra.mxu0 %v721
        %2943 = vmatpush.msra.mxu0 %v720
        %2944 = vmatpush.msra.mxu0 %v719
        %2945 = vmatpush.msra.mxu0 %v718
        %2946 = vmatpush.msra.mxu0 %v717
        %2947 = vmatpush.msra.mxu0 %v716
        %2948 = vmatpush.msra.mxu0 %v715
        %2949 = vmatmul.f32.gmra.mxu0 %v2922
        %v2950 = vpop.f32.mrf.mxu0
        %v2951 = vadd.f32 0.0, %v2950
        %2952 = vmatmul.f32.gmra.mxu0 %v2925
        %v2953 = vpop.f32.mrf.mxu0
        %v2954 = vadd.f32 0.0, %v2953
        %2955 = vmatmul.f32.gmra.mxu0 %v2928
        %v2956 = vpop.f32.mrf.mxu0
        %v2957 = vadd.f32 0.0, %v2956
        %2958 = vmatmul.f32.gmra.mxu0 %v2931
        %v2959 = vpop.f32.mrf.mxu0
        %v2960 = vadd.f32 0.0, %v2959
        %2961 = vdwg.mxu0
        %2962 = vmatpush.msra.mxu0 0.0
        %2963 = vmatpush.msra.mxu0 0.0
        %2964 = vmatpush.msra.mxu0 0.0
        %2965 = vmatpush.msra.mxu0 0.0
        %2966 = vmatpush.msra.mxu0 0.0
        %2967 = vmatpush.msra.mxu0 0.0
        %2968 = vmatpush.msra.mxu0 0.0
        %2969 = vmatpush.msra.mxu0 0.0
        %2970 = vmatpush.msra.mxu0 0.0
        %2971 = vmatpush.msra.mxu0 0.0
        %2972 = vmatpush.msra.mxu0 0.0
        %2973 = vmatpush.msra.mxu0 0.0
        %2974 = vmatpush.msra.mxu0 %v2960
        %2975 = vmatpush.msra.mxu0 %v2957
        %2976 = vmatpush.msra.mxu0 %v2954
        %2977 = vmatpush.msra.mxu0 %v2951
        %2978 = vmatmul.f32.gmra.mxu0 %v1950
        %v2979 = vpop.f32.mrf.mxu0
        %v2980 = vadd.f32 %v1931, %v2979
        %2981 = vmatmul.f32.gmra.mxu0 %v1953
        %v2982 = vpop.f32.mrf.mxu0
        %v2983 = vadd.f32 %v1936, %v2982
        %2984 = vmatmul.f32.gmra.mxu0 %v1956
        %v2985 = vpop.f32.mrf.mxu0
        %v2986 = vadd.f32 %v1941, %v2985
        %2987 = vmatmul.f32.gmra.mxu0 %v1959
        %v2988 = vpop.f32.mrf.mxu0
        %v2989 = vadd.f32 %v1946, %v2988
        %2990 = vdwg.mxu0
        %v2991 = vsel %vm726, %v2980, -inf
        %v2992 = vsel %vm726, %v2983, -inf
        %v2993 = vsel %vm726, %v2986, -inf
        %v2994 = vsel %vm726, %v2989, -inf
        %v2995 = vmax.f32 %v2991, %v2992
        %v2996 = vmax.f32 %v2993, %v2994
        %v2997 = vmax.f32 %v2995, %v2996
        %v2998 = vrot.slane %v2997, 4
        %v2999 = vmax.f32 %v2997, %v2998
        %v3000 = vrot.slane %v2999, 2
        %v3001 = vmax.f32 %v2999, %v3000
        %v3002 = vrot.slane %v3001, 1
        %v3003 = vmax.f32 %v3001, %v3002
        %v3004 = vsub.f32 %v2980, %v3003
        %v3005 = vsub.f32 %v2983, %v3003
        %v3006 = vsub.f32 %v2986, %v3003
        %v3007 = vsub.f32 %v2989, %v3003
        %v3008 = vmul.f32 %v3004, 1.442695
        %v3009 = vpow.pop %v3008
        %v3010 = vmul.f32 %v3005, 1.442695
        %v3011 = vpow.pop %v3010
        %v3012 = vmul.f32 %v3006, 1.442695
        %v3013 = vpow.pop %v3012
        %v3014 = vmul.f32 %v3007, 1.442695
        %v3015 = vpow.pop %v3014
        %v3016 = vsel %vm726, %v3009, 0.0
        %v3017 = vsel %vm726, %v3011, 0.0
        %v3018 = vadd.f32 %v3016, %v3017
        %v3019 = vsel %vm726, %v3013, 0.0
        %v3020 = vadd.f32 %v3018, %v3019
        %v3021 = vsel %vm726, %v3015, 0.0
        %v3022 = vadd.f32 %v3020, %v3021
        %v3023 = vrot.slane %v3022, 4
        %v3024 = vadd.f32 %v3022, %v3023
        %v3025 = vrot.slane %v3024, 2
        %v3026 = vadd.f32 %v3024, %v3025
        %v3027 = vrot.slane %v3026, 1
        %v3028 = vadd.f32 %v3026, %v3027
        %v3029 = vrcp.pop %v3028
        %v3030 = vmul.f32 %v3009, %v3029
        %v3031 = vmul.f32 %v3011, %v3029
        %v3032 = vmul.f32 %v3013, %v3029
        %v3033 = vmul.f32 %v3015, %v3029
        %v3034 = vmax.f32 %v2538, 0.0
        %v3035 = vmax.f32 %v2541, 0.0
        %v3036 = vmax.f32 %v2544, 0.0
        %v3037 = vmax.f32 %v2547, 0.0
        %v3038 = vmul.f32 %v3030, %v3034
        %v3039 = vmul.f32 %v3031, %v3035
        %v3040 = vmul.f32 %v3032, %v3036
        %v3041 = vmul.f32 %v3033, %v3037
        %v3042 = vld [vmem:[#allocation14] sm:$0xff]
        %v3043 = vld [vmem:[#allocation14 + $0x8] sm:$0xff]
        %v3045 = vsel %vm726, %v3042, 0
        %v3048 = vsel %vm726, %v3043, 0
        %v3051 = vsel %vm726, %v3038, 0
        %v3054 = vsel %vm726, %v3039, 0
        %v3057 = vsel %vm726, %v3040, 0
        %v3060 = vsel %vm726, %v3041, 0
        %3062 = vmatpush.xpose.msra.mxu0 0.0
        %3063 = vmatpush.xpose.msra.mxu0 0.0
        %3064 = vmatpush.xpose.msra.mxu0 0.0
        %3065 = vmatpush.xpose.msra.mxu0 0.0
        %3066 = vmatpush.xpose.msra.mxu0 0.0
        %3067 = vmatpush.xpose.msra.mxu0 0.0
        %3068 = vmatpush.xpose.msra.mxu0 0.0
        %3069 = vmatpush.xpose.msra.mxu0 0.0
        %3070 = vmatpush.xpose.msra.mxu0 0.0
        %3071 = vmatpush.xpose.msra.mxu0 0.0
        %3072 = vmatpush.xpose.msra.mxu0 0.0
        %3073 = vmatpush.xpose.msra.mxu0 0.0
        %3074 = vmatpush.xpose.msra.mxu0 %v3060
        %3075 = vmatpush.xpose.msra.mxu0 %v3057
        %3076 = vmatpush.xpose.msra.mxu0 %v3054
        %3077 = vmatpush.xpose.msra.mxu0 %v3051
        %3078 = vmatmul.f32.gmra.mxu0 %v3045
        %v3079 = vpop.f32.mrf.mxu0
        %v3080 = vadd.f32 0.0, %v3079
        %3081 = vmatmul.f32.gmra.mxu0 %v3048
        %v3082 = vpop.f32.mrf.mxu0
        %v3083 = vadd.f32 0.0, %v3082
        %3084 = vdwg.mxu0
        %v3085 = vld [vmem:[#allocation15] sm:$0xff]
        %v3086 = vld [vmem:[#allocation15 + $0x8] sm:$0xff]
        %v3087 = vld [vmem:[#allocation15 + $0x10] sm:$0xff]
        %v3088 = vld [vmem:[#allocation15 + $0x18] sm:$0xff]
        %v3089 = vld [vmem:[%s12] sm:$0x1]
        %v3090 = vld [vmem:[%s12 + $0x1] sm:$0x1]
        %v3091 = vld [vmem:[%s12 + $0x2] sm:$0x1]
        %v3092 = vld [vmem:[%s13] sm:$0x1]
        %v3093 = vld [vmem:[#allocation17] sm:$0xff]
        %v3094 = vld [vmem:[#allocation17 + $0x8] sm:$0xff]
        %v3095 = vld [vmem:[#allocation17 + $0x10] sm:$0xff]
        %v3096 = vld [vmem:[#allocation17 + $0x18] sm:$0xff]
        %v3097 = vld [vmem:[#allocation17 + $0x20] sm:$0xff]
        %v3098 = vld [vmem:[#allocation17 + $0x28] sm:$0xff]
        %v3099 = vld [vmem:[#allocation17 + $0x30] sm:$0xff]
        %v3100 = vld [vmem:[#allocation17 + $0x38] sm:$0xff]
        %v3101 = vld [vmem:[%s15] sm:$0x1]
        %v3102 = vld [vmem:[%s15 + $0x1] sm:$0x1]
        %v3103 = vld [vmem:[%s15 + $0x2] sm:$0x1]
        %v3104 = vld [vmem:[%s16] sm:$0x1]
        %v3106 = vsel %vm1948, %v2079, 0
        %v3109 = vsel %vm1948, %v2082, 0
        %3111 = vmatpush.msra.mxu0 0.0
        %3112 = vmatpush.msra.mxu0 0.0
        %3113 = vmatpush.msra.mxu0 0.0
        %3114 = vmatpush.msra.mxu0 0.0
        %3115 = vmatpush.msra.mxu0 0.0
        %3116 = vmatpush.msra.mxu0 0.0
        %3117 = vmatpush.msra.mxu0 0.0
        %3118 = vmatpush.msra.mxu0 0.0
        %3119 = vmatpush.msra.mxu0 0.0
        %3120 = vmatpush.msra.mxu0 0.0
        %3121 = vmatpush.msra.mxu0 0.0
        %3122 = vmatpush.msra.mxu0 0.0
        %3123 = vmatpush.msra.mxu0 %v3088
        %3124 = vmatpush.msra.mxu0 %v3087
        %3125 = vmatpush.msra.mxu0 %v3086
        %3126 = vmatpush.msra.mxu0 %v3085
        %3127 = vmatmul.f32.gmra.mxu0 %v3106
        %v3128 = vpop.f32.mrf.mxu0
        %v3129 = vadd.f32 0.0, %v3128
        %3130 = vmatmul.f32.gmra.mxu0 %v3109
        %v3131 = vpop.f32.mrf.mxu0
        %v3132 = vadd.f32 0.0, %v3131
        %3133 = vdwg.mxu0
        %v3134 = vperm.slane %v3089, 0
        %v3135 = vmul.f32 %v3134, %v3129
        %v3136 = vmul.f32 %v3134, %v3132
        %v3137 = vperm.slane %v3090, 0
        %v3138 = vmul.f32 %v3137, %v3129
        %v3139 = vmul.f32 %v3137, %v3132
        %vm3142 = vcmask 1046528
        %v3143 = vrot.slane %v3138, 1
        %v3144 = vrot.slane %v3139, 1
        %v3145 = vsel %vm3142, %v3143, %v3144
        %v3148 = vadd.f32 %v3135, %v3145
        %v3149 = vadd.f32 %v3136, %v3144
        %v3150 = vperm.slane %v3091, 0
        %v3151 = vmul.f32 %v3150, %v3129
        %v3152 = vmul.f32 %v3150, %v3132
        %vm3155 = vcmask 1045504
        %v3156 = vrot.slane %v3151, 2
        %v3157 = vrot.slane %v3152, 2
        %v3158 = vsel %vm3155, %v3156, %v3157
        %v3161 = vadd.f32 %v3148, %v3158
        %v3162 = vadd.f32 %v3149, %v3157
        %v3164 = vperm.slane %v3092, 0
        %v3166 = vadd.f32 %v3161, %v3164
        %v3167 = vadd.f32 %v3162, %v3164
        %v3168 = vmax.f32 %v3166, 0.0
        %v3169 = vmax.f32 %v3167, 0.0
        %v3171 = vsel %vm726, %v3168, 0
        %v3174 = vsel %vm726, %v3169, 0
        %3176 = vmatpush.msra.mxu0 0.0
        %3177 = vmatpush.msra.mxu0 0.0
        %3178 = vmatpush.msra.mxu0 0.0
        %3179 = vmatpush.msra.mxu0 0.0
        %3180 = vmatpush.msra.mxu0 0.0
        %3181 = vmatpush.msra.mxu0 0.0
        %3182 = vmatpush.msra.mxu0 0.0
        %3183 = vmatpush.msra.mxu0 0.0
        %3184 = vmatpush.msra.mxu0 %v3100
        %3185 = vmatpush.msra.mxu0 %v3099
        %3186 = vmatpush.msra.mxu0 %v3098
        %3187 = vmatpush.msra.mxu0 %v3097
        %3188 = vmatpush.msra.mxu0 %v3096
        %3189 = vmatpush.msra.mxu0 %v3095
        %3190 = vmatpush.msra.mxu0 %v3094
        %3191 = vmatpush.msra.mxu0 %v3093
        %3192 = vmatmul.f32.gmra.mxu0 %v3171
        %v3193 = vpop.f32.mrf.mxu0
        %v3194 = vadd.f32 0.0, %v3193
        %3195 = vmatmul.f32.gmra.mxu0 %v3174
        %v3196 = vpop.f32.mrf.mxu0
        %v3197 = vadd.f32 0.0, %v3196
        %3198 = vdwg.mxu0
        %v3199 = vperm.slane %v3101, 0
        %v3200 = vmul.f32 %v3199, %v3194
        %v3201 = vmul.f32 %v3199, %v3197
        %v3202 = vperm.slane %v3102, 0
        %v3203 = vmul.f32 %v3202, %v3194
        %v3204 = vmul.f32 %v3202, %v3197
        %v3207 = vrot.slane %v3203, 1
        %v3208 = vrot.slane %v3204, 1
        %v3209 = vsel %vm3142, %v3207, %v3208
        %v3212 = vadd.f32 %v3200, %v3209
        %v3213 = vadd.f32 %v3201, %v3208
        %v3214 = vperm.slane %v3103, 0
        %v3215 = vmul.f32 %v3214, %v3194
        %v3216 = vmul.f32 %v3214, %v3197
        %v3219 = vrot.slane %v3215, 2
        %v3220 = vrot.slane %v3216, 2
        %v3221 = vsel %vm3155, %v3219, %v3220
        %v3224 = vadd.f32 %v3212, %v3221
        %v3225 = vadd.f32 %v3213, %v3220
        %v3227 = vperm.slane %v3104, 0
        %v3229 = vadd.f32 %v3224, %v3227
        %v3230 = vadd.f32 %v3225, %v3227
        %v3231 = vmax.f32 %v3229, 0.0
        %v3232 = vmax.f32 %v3230, 0.0
        %v3234 = vsel %vm1948, %v3080, 0
        %v3237 = vsel %vm1948, %v3083, 0
        %3239 = vmatpush.msra.mxu0 0.0
        %3240 = vmatpush.msra.mxu0 0.0
        %3241 = vmatpush.msra.mxu0 0.0
        %3242 = vmatpush.msra.mxu0 0.0
        %3243 = vmatpush.msra.mxu0 0.0
        %3244 = vmatpush.msra.mxu0 0.0
        %3245 = vmatpush.msra.mxu0 0.0
        %3246 = vmatpush.msra.mxu0 0.0
        %3247 = vmatpush.msra.mxu0 0.0
        %3248 = vmatpush.msra.mxu0 0.0
        %3249 = vmatpush.msra.mxu0 0.0
        %3250 = vmatpush.msra.mxu0 0.0
        %3251 = vmatpush.msra.mxu0 %v3088
        %3252 = vmatpush.msra.mxu0 %v3087
        %3253 = vmatpush.msra.mxu0 %v3086
        %3254 = vmatpush.msra.mxu0 %v3085
        %3255 = vmatmul.f32.gmra.mxu0 %v3234
        %v3256 = vpop.f32.mrf.mxu0
        %v3257 = vadd.f32 0.0, %v3256
        %3258 = vmatmul.f32.gmra.mxu0 %v3237
        %v3259 = vpop.f32.mrf.mxu0
        %v3260 = vadd.f32 0.0, %v3259
        %3261 = vdwg.mxu0
        %v3262 = vmul.f32 %v3134, %v3257
        %v3263 = vmul.f32 %v3134, %v3260
        %v3264 = vmul.f32 %v3137, %v3257
        %v3265 = vmul.f32 %v3137, %v3260
        %v3268 = vrot.slane %v3264, 1
        %v3269 = vrot.slane %v3265, 1
        %v3270 = vsel %vm3142, %v3268, %v3269
        %v3273 = vadd.f32 %v3262, %v3270
        %v3274 = vadd.f32 %v3263, %v3269
        %v3275 = vmul.f32 %v3150, %v3257
        %v3276 = vmul.f32 %v3150, %v3260
        %v3279 = vrot.slane %v3275, 2
        %v3280 = vrot.slane %v3276, 2
        %v3281 = vsel %vm3155, %v3279, %v3280
        %v3284 = vadd.f32 %v3273, %v3281
        %v3285 = vadd.f32 %v3274, %v3280
        %v3286 = vadd.f32 %v3284, %v3164
        %v3287 = vadd.f32 %v3285, %v3164
        %v3288 = vmax.f32 %v3286, 0.0
        %v3289 = vmax.f32 %v3287, 0.0
        %v3291 = vsel %vm726, %v3288, 0
        %v3294 = vsel %vm726, %v3289, 0
        %3296 = vmatpush.msra.mxu0 0.0
        %3297 = vmatpush.msra.mxu0 0.0
        %3298 = vmatpush.msra.mxu0 0.0
        %3299 = vmatpush.msra.mxu0 0.0
        %3300 = vmatpush.msra.mxu0 0.0
        %3301 = vmatpush.msra.mxu0 0.0
        %3302 = vmatpush.msra.mxu0 0.0
        %3303 = vmatpush.msra.mxu0 0.0
        %3304 = vmatpush.msra.mxu0 %v3100
        %3305 = vmatpush.msra.mxu0 %v3099
        %3306 = vmatpush.msra.mxu0 %v3098
        %3307 = vmatpush.msra.mxu0 %v3097
        %3308 = vmatpush.msra.mxu0 %v3096
        %3309 = vmatpush.msra.mxu0 %v3095
        %3310 = vmatpush.msra.mxu0 %v3094
        %3311 = vmatpush.msra.mxu0 %v3093
        %3312 = vmatmul.f32.gmra.mxu0 %v3291
        %v3313 = vpop.f32.mrf.mxu0
        %v3314 = vadd.f32 0.0, %v3313
        %3315 = vmatmul.f32.gmra.mxu0 %v3294
        %v3316 = vpop.f32.mrf.mxu0
        %v3317 = vadd.f32 0.0, %v3316
        %3318 = vdwg.mxu0
        %v3319 = vmul.f32 %v3199, %v3314
        %v3320 = vmul.f32 %v3199, %v3317
        %v3321 = vmul.f32 %v3202, %v3314
        %v3322 = vmul.f32 %v3202, %v3317
        %v3325 = vrot.slane %v3321, 1
        %v3326 = vrot.slane %v3322, 1
        %v3327 = vsel %vm3142, %v3325, %v3326
        %v3330 = vadd.f32 %v3319, %v3327
        %v3331 = vadd.f32 %v3320, %v3326
        %v3332 = vmul.f32 %v3214, %v3314
        %v3333 = vmul.f32 %v3214, %v3317
        %v3336 = vrot.slane %v3332, 2
        %v3337 = vrot.slane %v3333, 2
        %v3338 = vsel %vm3155, %v3336, %v3337
        %v3341 = vadd.f32 %v3330, %v3338
        %v3342 = vadd.f32 %v3331, %v3337
        %v3343 = vadd.f32 %v3341, %v3227
        %v3344 = vadd.f32 %v3342, %v3227
        %v3345 = vmax.f32 %v3343, 0.0
        %v3346 = vmax.f32 %v3344, 0.0
        %3347 = vst [vmem:[%s662] sm:$0xff] %v3231
        %3348 = vst [vmem:[%s662 + $0x8] sm:$0xf] %v3232
        %s3349 = scalar_lea.vmem %s662, 16
        %3350 = vst [vmem:[%s3349] sm:$0xff] %v3345
        %3351 = vst [vmem:[%s3349 + $0x8] sm:$0xf] %v3346
        %s3352 = smul.u32 2, %s33
        %p3353 = scmp.lt.s32.totalorder %s3352, 3
        %s3354 = scalar_select %p3353, %s3352, 3
        %s3355 = smul.addr %s3354, 2
        %s3356 = smul.addr %s3355, 8
        %s3357 = scalar_lea.vmem %s17, %s3356
        // Predicated region
        $region117: #{tpu_custom_call.1} parent=87 // pred_check
          %p3358 = pneg %p413
        $region118: #{tpu_custom_call.1} parent=87 // pred_check_branch
          %3360 = sbr.rel (%p3358) target = $region120
        $region119: #{tpu_custom_call.1} parent=87 // pred_region
          %s3361 = smul.u32 2, %s33
        $region120: #{tpu_custom_call.1} parent=87 // pred_fallthru
          _
      $region88: #{tpu_custom_call.1} parent=5 // pred_fallthru
        _
      %p3362 = scmp.le.s32.totalorder 2, %s28
      // Predicated region
      $region121: #{tpu_custom_call.1} parent=5 // pred_check
        %p3363 = pneg %p3362
      $region122: #{tpu_custom_call.1} parent=5 // pred_check_branch
        %3365 = sbr.rel (%p3363) target = $region124
      $region123: #{tpu_custom_call.1} parent=5 // pred_region
        %s3366 = ssub.s32 %s28, 2
        // Predicated region
        $region125: #{tpu_custom_call.1} parent=123 // pred_check
          %p3367 = pneg %p419
        $region126: #{tpu_custom_call.1} parent=123 // pred_check_branch
          %3369 = sbr.rel (%p3367) target = $region128
        $region127: #{tpu_custom_call.1} parent=123 // pred_region
          %s3370 = smul.u32 2, %s34
          %p3371 = scmp.lt.s32.totalorder %s3370, 3
          %s3372 = scalar_select %p3371, %s3370, 3
          %s3373 = smul.addr %s3372, 2
          %s3374 = smul.addr %s3373, 8
          %s3375 = scalar_lea.vmem %s17, %s3374
        $region128: #{tpu_custom_call.1} parent=123 // pred_fallthru
          _
      $region124: #{tpu_custom_call.1} parent=5 // pred_fallthru
        _
    $region6: #{tpu_custom_call.1} parent=1 // loop_footer
      %s32 = sadd.s32 1, %s28
    $region7: #{tpu_custom_call.1} parent=1 // loop_footer_branch
      %27 = sbr.rel target = $region3
    $region8: #{tpu_custom_call.1} parent=1 // loop_exit
      _
    %3376 = vsyncpa [#allocation7], 1
    %s3377 = scalar_lea.sflag [#allocation7], 1
    %3378 = vsyncpa %s3377, 1
    %3379 = vsyncpa [#allocation13], 1
    %3380 = vsyncpa [#allocation16], 1
    %3381 = vsyncpa [#allocation8], 1
    %s3382 = scalar_lea.sflag [#allocation8], 1
    %3383 = vsyncpa %s3382, 1
    %3384 = vsyncpa [#allocation9], 1
    %s3385 = scalar_lea.sflag [#allocation9], 1
    %3386 = vsyncpa %s3385, 1

</llo_original>
